<compile_context>
chip_gen: v7x
topology: tpu7x:2x2x1
jax: 0.10.0
libtpu: 0.0.40
codegen_flags: <defaults>
</compile_context>

<pallas_src>
import functools
import math

import jax
import jax.numpy as jnp
from jax.experimental import pallas as pl
from jax.experimental.pallas import tpu as pltpu


def _round_up(x, m):
    return ((x + m - 1) // m) * m


def _default_num_blocks():
    """1 grid step on single-TC chips (v5e/v6e); 2 on dual-TC chips (v4/v7x)."""
    try:
        kind = getattr(jax.devices()[0], "device_kind", "").lower()
        if "v7" in kind or "v4" in kind:
            return 2
    except Exception:
        pass
    return 1


# --------------------------------------------------------------------------
# Kernel body
# --------------------------------------------------------------------------
def _actor_kernel(x_ref, w1_ref, w2_ref, w3_ref, b_ref, out_ref, *,
                  f1, f2, a_pad, max_action):
    hp = jax.lax.Precision.HIGHEST  # true f32 contraction on the MXU

    # Packed biases: row 0 -> b1[:f1], row 1 -> b2[:f2], row 2 -> b3[:a_pad].
    b1 = b_ref[0:1, :f1]
    b2 = b_ref[1:2, :f2]
    b3 = b_ref[2:3, :a_pad]

    # fc1 + relu
    h1 = jnp.dot(x_ref[...], w1_ref[...],
                 preferred_element_type=jnp.float32, precision=hp)
    h1 = jnp.maximum(h1 + b1, 0.0)

    # fc2 + relu
    h2 = jnp.dot(h1, w2_ref[...],
                 preferred_element_type=jnp.float32, precision=hp)
    h2 = jnp.maximum(h2 + b2, 0.0)

    # mu + tanh, scaled by max_action (output lane-padded to a_pad wide)
    mu = jnp.dot(h2, w3_ref[...],
                 preferred_element_type=jnp.float32, precision=hp)
    out_ref[...] = (jnp.tanh(mu + b3) * max_action).astype(out_ref.dtype)


# --------------------------------------------------------------------------
# One-time parameter packing (hoisted out of the per-call forward path)
# --------------------------------------------------------------------------
def pack_actor_params(params):
    """Pack raw Linear params into kernel-ready arrays. Call once per update."""
    w1 = jnp.asarray(params["w1"], jnp.float32)          # [D,  F1]
    w2 = jnp.asarray(params["w2"], jnp.float32)          # [F1, F2]
    w3 = jnp.asarray(params["w3"], jnp.float32)          # [F2, A ]
    F1 = w1.shape[1]
    F2 = w2.shape[1]
    A = w3.shape[1]

    # Lane-dense output: pad action dim up to a multiple of 128.
    A_pad = _round_up(A, 128)
    w3p = jnp.zeros((F2, A_pad), jnp.float32).at[:, :A].set(w3)

    # Pack the three bias rows into one [3, W] slab (fewer tiny DMAs).
    W = max(F1, F2, A_pad)
    b = jnp.zeros((3, W), jnp.float32)
    b = b.at[0, :F1].set(jnp.asarray(params["b1"], jnp.float32).reshape(-1))
    b = b.at[1, :F2].set(jnp.asarray(params["b2"], jnp.float32).reshape(-1))
    b = b.at[2, :A].set(jnp.asarray(params["b3"], jnp.float32).reshape(-1))

    return {"w1": w1, "w2": w2, "w3": w3p, "b": b}


# --------------------------------------------------------------------------
# Jitted forward (pad + pallas_call + slice all fused in one dispatch)
# --------------------------------------------------------------------------
@functools.partial(jax.jit,
                   static_argnames=("num_actions", "max_action", "num_blocks"))
def _actor_forward_impl(state, packed, *, num_actions, max_action, num_blocks):
    state = state.astype(jnp.float32)
    B, D = state.shape
    w1, w2, w3, b = packed["w1"], packed["w2"], packed["w3"], packed["b"]
    F1, F2 = w1.shape[1], w2.shape[1]
    A_pad, W = w3.shape[1], b.shape[1]

    # Grid / block choice: never create more blocks than 8-row groups.
    nblk = max(1, min(int(num_blocks), pl.cdiv(B, 8)))
    blk = _round_up(pl.cdiv(B, nblk), 8)          # f32 sublane-aligned rows
    Bp = blk * nblk
    if Bp != B:
        # Fuses into this jit; padded rows produce tanh(b3)*max_action garbage
        # that is sliced away below (never reduced over).
        state = jnp.pad(state, ((0, Bp - B), (0, 0)))

    kernel = functools.partial(_actor_kernel, f1=F1, f2=F2, a_pad=A_pad,
                               max_action=float(max_action))

    resident = lambda i: (0, 0)   # same block every grid step -> DMA'd once

    out = pl.pallas_call(
        kernel,
        out_shape=jax.ShapeDtypeStruct((Bp, A_pad), jnp.float32),
        grid=(nblk,),
        in_specs=[
            pl.BlockSpec((blk, D), lambda i: (i, 0)),   # streamed state blocks
            pl.BlockSpec((D, F1), resident),            # W1 (resident)
            pl.BlockSpec((F1, F2), resident),           # W2 (resident)
            pl.BlockSpec((F2, A_pad), resident),        # W3 padded (resident)
            pl.BlockSpec((3, W), resident),             # packed biases (resident)
        ],
        out_specs=pl.BlockSpec((blk, A_pad), lambda i: (i, 0)),
        compiler_params=pltpu.CompilerParams(
            dimension_semantics=("parallel",)),         # shard blocks across TCs
    )(state, w1, w2, w3, b)

    # Fused un-pad slice (no separate dispatch, no extra HBM round trip).
    return out[:B, :num_actions]


def actor_forward(state, packed_params, max_action, num_actions,
                  num_blocks=None):
    """TD3 actor forward: state [B, input_dims] -> actions [B, num_actions]."""
    if num_blocks is None:
        num_blocks = _default_num_blocks()
    return _actor_forward_impl(state, packed_params,
                               num_actions=int(num_actions),
                               max_action=float(max_action),
                               num_blocks=int(num_blocks))


# --------------------------------------------------------------------------
# Init + pure-JAX f32 reference
# --------------------------------------------------------------------------
def init_actor_params(key, input_dims, fc1_dim, fc2_dim, num_actions):
    """Deterministic init mirroring nn.Linear default (uniform +-1/sqrt(fan_in))."""
    def linear(k, fan_in, fan_out):
        kw, kb = jax.random.split(k)
        bound = 1.0 / math.sqrt(fan_in)
        w = jax.random.uniform(kw, (fan_in, fan_out), jnp.float32, -bound, bound)
        b = jax.random.uniform(kb, (1, fan_out), jnp.float32, -bound, bound)
        return w, b

    k1, k2, k3 = jax.random.split(key, 3)
    w1, b1 = linear(k1, input_dims, fc1_dim)
    w2, b2 = linear(k2, fc1_dim, fc2_dim)
    w3, b3 = linear(k3, fc2_dim, num_actions)
    return {"w1": w1, "b1": b1, "w2": w2, "b2": b2, "w3": w3, "b3": b3}


def actor_reference(state, params, max_action):
    """Pure-JAX f32 reference matching the PyTorch f32 Linear semantics."""
    hp = jax.lax.Precision.HIGHEST
    h1 = jnp.maximum(jnp.dot(state, params["w1"], precision=hp) + params["b1"], 0.0)
    h2 = jnp.maximum(jnp.dot(h1, params["w2"], precision=hp) + params["b2"], 0.0)
    return jnp.tanh(jnp.dot(h2, params["w3"], precision=hp) + params["b3"]) * max_action


# TODO(synk): The Adam optimiser and save/load_checkpoint file I/O of the
# PyTorch module are host-side concerns with no Pallas equivalent; only
# forward() is implemented here.

if __name__ == "__main__":
    # Shapes consistent with the module's inputs_dict.
    batch = 256           # typical TD3 mini-batch
    input_dims = 16       # sum(inputs_dict['input_dims'])
    fc1_dim = 32          # td3_layer_1_units
    fc2_dim = 32          # td3_layer_2_units
    num_actions = 4
    max_action = 2.0

    key = jax.random.PRNGKey(0)
    k_params, k_state = jax.random.split(key)
    params = init_actor_params(k_params, input_dims, fc1_dim, fc2_dim, num_actions)
    packed = pack_actor_params(params)      # one-time packing (hoisted)
    state = jax.random.normal(k_state, (batch, input_dims), jnp.float32)

    out = actor_forward(state, packed, max_action, num_actions)
    out = jax.block_until_ready(out)

    ref = actor_reference(state, params, max_action)
    assert out.shape == (batch, num_actions)
    err = float(jnp.max(jnp.abs(out - ref)))
    assert err < 1e-3, f"mismatch vs f32 reference: max abs err = {err}"

    print("KERNEL_OK")
</pallas_src>

<mosaic_0001>
module attributes {stable_mosaic.version = 11 : i64} {
  func.func @_actor_kernel(%arg0: i32, %arg1: memref<256x16xf32, #tpu.memory_space<vmem>>, %arg2: memref<16x32xf32, #tpu.memory_space<vmem>>, %arg3: memref<32x32xf32, #tpu.memory_space<vmem>>, %arg4: memref<32x128xf32, #tpu.memory_space<vmem>>, %arg5: memref<3x128xf32, #tpu.memory_space<vmem>>, %arg6: memref<256x128xf32, #tpu.memory_space<vmem>>) attributes {dimension_semantics = [#tpu.dimension_semantics<parallel>], iteration_bounds = array<i64: 1>, scalar_prefetch = 0 : i64, scratch_operands = 0 : i64, tpu.core_type = #tpu.core_type<tc>, window_params = [{transform_indices = @transform_0, window_bounds = array<i64: 256, 16>}, {pipeline_mode = #tpu.pipeline_mode<synchronous>, transform_indices = @transform_1, window_bounds = array<i64: 16, 32>}, {pipeline_mode = #tpu.pipeline_mode<synchronous>, transform_indices = @transform_2, window_bounds = array<i64: 32, 32>}, {pipeline_mode = #tpu.pipeline_mode<synchronous>, transform_indices = @transform_3, window_bounds = array<i64: 32, 128>}, {pipeline_mode = #tpu.pipeline_mode<synchronous>, transform_indices = @transform_4, window_bounds = array<i64: 3, 128>}, {transform_indices = @transform_5, window_bounds = array<i64: 256, 128>}]} {
    %c0 = arith.constant 0 : index
    %c0_0 = arith.constant 0 : index
    %0 = vector.load %arg5[%c0, %c0_0] : memref<3x128xf32, #tpu.memory_space<vmem>>, vector<1x32xf32>
    %c1 = arith.constant 1 : index
    %c0_1 = arith.constant 0 : index
    %1 = vector.load %arg5[%c1, %c0_1] : memref<3x128xf32, #tpu.memory_space<vmem>>, vector<1x32xf32>
    %c2 = arith.constant 2 : index
    %c0_2 = arith.constant 0 : index
    %2 = vector.load %arg5[%c2, %c0_2] : memref<3x128xf32, #tpu.memory_space<vmem>>, vector<1x128xf32>
    %c0_3 = arith.constant 0 : index
    %c0_4 = arith.constant 0 : index
    %3 = vector.load %arg1[%c0_3, %c0_4] : memref<256x16xf32, #tpu.memory_space<vmem>>, vector<256x16xf32>
    %c0_5 = arith.constant 0 : index
    %c0_6 = arith.constant 0 : index
    %4 = vector.load %arg2[%c0_5, %c0_6] : memref<16x32xf32, #tpu.memory_space<vmem>>, vector<16x32xf32>
    %cst = arith.constant dense<0.000000e+00> : vector<256x32xf32>
    %5 = tpu.matmul %3, %4, %cst {dimension_numbers = #tpu.dot_dimension_numbers<[1], [0], [0], [1], [0, 0, 1, 1], [], []>, precision = #tpu.contract_precision<fp32>} : vector<256x16xf32>, vector<16x32xf32>, vector<256x32xf32> -> vector<256x32xf32>
    %6 = vector.broadcast %0 : vector<1x32xf32> to vector<256x32xf32>
    %7 = arith.addf %5, %6 : vector<256x32xf32>
    %cst_7 = arith.constant 0.000000e+00 : f32
    %8 = vector.broadcast %cst_7 : f32 to vector<256x32xf32>
    %9 = arith.maximumf %7, %8 : vector<256x32xf32>
    %c0_8 = arith.constant 0 : index
    %c0_9 = arith.constant 0 : index
    %10 = vector.load %arg3[%c0_8, %c0_9] : memref<32x32xf32, #tpu.memory_space<vmem>>, vector<32x32xf32>
    %cst_10 = arith.constant dense<0.000000e+00> : vector<256x32xf32>
    %11 = tpu.matmul %9, %10, %cst_10 {dimension_numbers = #tpu.dot_dimension_numbers<[1], [0], [0], [1], [0, 0, 1, 1], [], []>, precision = #tpu.contract_precision<fp32>} : vector<256x32xf32>, vector<32x32xf32>, vector<256x32xf32> -> vector<256x32xf32>
    %12 = vector.broadcast %1 : vector<1x32xf32> to vector<256x32xf32>
    %13 = arith.addf %11, %12 : vector<256x32xf32>
    %cst_11 = arith.constant 0.000000e+00 : f32
    %14 = vector.broadcast %cst_11 : f32 to vector<256x32xf32>
    %15 = arith.maximumf %13, %14 : vector<256x32xf32>
    %c0_12 = arith.constant 0 : index
    %c0_13 = arith.constant 0 : index
    %16 = vector.load %arg4[%c0_12, %c0_13] : memref<32x128xf32, #tpu.memory_space<vmem>>, vector<32x128xf32>
    %cst_14 = arith.constant dense<0.000000e+00> : vector<256x128xf32>
    %17 = tpu.matmul %15, %16, %cst_14 {dimension_numbers = #tpu.dot_dimension_numbers<[1], [0], [0], [1], [0, 0, 1, 1], [], []>, precision = #tpu.contract_precision<fp32>} : vector<256x32xf32>, vector<32x128xf32>, vector<256x128xf32> -> vector<256x128xf32>
    %18 = vector.broadcast %2 : vector<1x128xf32> to vector<256x128xf32>
    %19 = arith.addf %17, %18 : vector<256x128xf32>
    %20 = math.tanh %19 : vector<256x128xf32>
    %cst_15 = arith.constant 2.000000e+00 : f32
    %21 = vector.broadcast %cst_15 : f32 to vector<256x128xf32>
    %22 = arith.mulf %20, %21 : vector<256x128xf32>
    %c0_16 = arith.constant 0 : index
    %c0_17 = arith.constant 0 : index
    %23 = vector.load %arg6[%c0_16, %c0_17] : memref<256x128xf32, #tpu.memory_space<vmem>>, vector<256x128xf32>
    tpu.vector_store %arg6[%c0_16, %c0_17], %22 {strides = array<i32>} : memref<256x128xf32, #tpu.memory_space<vmem>>, vector<256x128xf32>,
    return
  }
  func.func @transform_0(%arg0: i32) -> (i32, i32) {
    %c0_i32 = arith.constant 0 : i32
    %c0_i32_0 = arith.constant 0 : i32
    return %arg0, %c0_i32 : i32, i32
  }
  func.func @transform_1(%arg0: i32) -> (i32, i32) {
    %c0_i32 = arith.constant 0 : i32
    %c0_i32_0 = arith.constant 0 : i32
    %c0_i32_1 = arith.constant 0 : i32
    return %c0_i32, %c0_i32_0 : i32, i32
  }
  func.func @transform_2(%arg0: i32) -> (i32, i32) {
    %c0_i32 = arith.constant 0 : i32
    %c0_i32_0 = arith.constant 0 : i32
    %c0_i32_1 = arith.constant 0 : i32
    return %c0_i32, %c0_i32_0 : i32, i32
  }
  func.func @transform_3(%arg0: i32) -> (i32, i32) {
    %c0_i32 = arith.constant 0 : i32
    %c0_i32_0 = arith.constant 0 : i32
    %c0_i32_1 = arith.constant 0 : i32
    return %c0_i32, %c0_i32_0 : i32, i32
  }
  func.func @transform_4(%arg0: i32) -> (i32, i32) {
    %c0_i32 = arith.constant 0 : i32
    %c0_i32_0 = arith.constant 0 : i32
    %c0_i32_1 = arith.constant 0 : i32
    return %c0_i32, %c0_i32_0 : i32, i32
  }
  func.func @transform_5(%arg0: i32) -> (i32, i32) {
    %c0_i32 = arith.constant 0 : i32
    %c0_i32_0 = arith.constant 0 : i32
    return %arg0, %c0_i32 : i32, i32
  }
}

</mosaic_0001>

<llo_original>
// kernel: _actor_forward_impl.1
$region0: #{_actor_forward_impl.1}
  #allocation0 [shape = 'u32[]', space=smem, size = 0x4, offset = 0x4, fixed_abs, tag = 'smem constant byte address 0x4 - core index']
  #allocation1 [shape = 'u32[144,128]{1,0:T(1,128)}', space=vmem, size = 0x12000, scoped, tag = 'internal scratch']
  %s0 = inlined_call_operand.vmem [shape: f32[256,16], index: 0, kind: input, shape index: {}]
  %s1 = inlined_call_operand.vmem [shape: f32[16,32], index: 1, kind: input, shape index: {}]
  %s2 = inlined_call_operand.vmem [shape: f32[32,32], index: 2, kind: input, shape index: {}]
  %s3 = inlined_call_operand.vmem [shape: f32[32,128], index: 3, kind: input, shape index: {}]
  %s4 = inlined_call_operand.vmem [shape: f32[3,128], index: 4, kind: input, shape index: {}]
  %s5 = inlined_call_operand.vmem [shape: f32[256,128], index: 5, kind: output, shape index: {}]
  %s6 = sld [smem:[#allocation0]]
  $region30: #{_actor_forward_impl.1} parent=0
    _
  %s8 = ssub.s32 1, %s6
  %s9 = scalar_select 0, %s8, %s6
  // Predicated region
  $region2: #{_actor_forward_impl.1} parent=0 // pred_check
    _
  $region3: #{_actor_forward_impl.1} parent=0 // pred_check_branch
    %11 = sbr.rel (0) target = $region5
  $region4: #{_actor_forward_impl.1} parent=0 // pred_region
    _
  $region5: #{_actor_forward_impl.1} parent=0 // pred_fallthru
    _
  // Predicated region
  $region6: #{_actor_forward_impl.1} parent=0 // pred_check
    _
  $region7: #{_actor_forward_impl.1} parent=0 // pred_check_branch
    %13 = sbr.rel (0) target = $region9
  $region8: #{_actor_forward_impl.1} parent=0 // pred_region
    _
  $region9: #{_actor_forward_impl.1} parent=0 // pred_fallthru
    _
  // Predicated region
  $region10: #{_actor_forward_impl.1} parent=0 // pred_check
    _
  $region11: #{_actor_forward_impl.1} parent=0 // pred_check_branch
    %15 = sbr.rel (0) target = $region13
  $region12: #{_actor_forward_impl.1} parent=0 // pred_region
    _
  $region13: #{_actor_forward_impl.1} parent=0 // pred_fallthru
    _
  // Predicated region
  $region14: #{_actor_forward_impl.1} parent=0 // pred_check
    _
  $region15: #{_actor_forward_impl.1} parent=0 // pred_check_branch
    %17 = sbr.rel (0) target = $region17
  $region16: #{_actor_forward_impl.1} parent=0 // pred_region
    _
  $region17: #{_actor_forward_impl.1} parent=0 // pred_fallthru
    _
  // Predicated region
  $region18: #{_actor_forward_impl.1} parent=0 // pred_check
    _
  $region19: #{_actor_forward_impl.1} parent=0 // pred_check_branch
    %19 = sbr.rel (0) target = $region21
  $region20: #{_actor_forward_impl.1} parent=0 // pred_region
    _
  $region21: #{_actor_forward_impl.1} parent=0 // pred_fallthru
    _
  %v20 = vld [vmem:[%s4] sm:$0x1]
  %v21 = vld [vmem:[%s4 + $0x1] sm:$0x1]
  %v22 = vld [vmem:[%s4 + $0x2] sm:$0x1]
  %v23 = vld [vmem:[%s0] sm:$0xff]
  %v24 = vld [vmem:[%s0 + $0x8] sm:$0xff]
  %v25 = vld [vmem:[%s0 + $0x10] sm:$0xff]
  %v26 = vld [vmem:[%s0 + $0x18] sm:$0xff]
  %v27 = vld [vmem:[%s0 + $0x20] sm:$0xff]
  %v28 = vld [vmem:[%s0 + $0x28] sm:$0xff]
  %v29 = vld [vmem:[%s0 + $0x30] sm:$0xff]
  %v30 = vld [vmem:[%s0 + $0x38] sm:$0xff]
  %v31 = vld [vmem:[%s0 + $0x40] sm:$0xff]
  %v32 = vld [vmem:[%s0 + $0x48] sm:$0xff]
  %v33 = vld [vmem:[%s0 + $0x50] sm:$0xff]
  %v34 = vld [vmem:[%s0 + $0x58] sm:$0xff]
  %v35 = vld [vmem:[%s0 + $0x60] sm:$0xff]
  %v36 = vld [vmem:[%s0 + $0x68] sm:$0xff]
  %v37 = vld [vmem:[%s0 + $0x70] sm:$0xff]
  %v38 = vld [vmem:[%s0 + $0x78] sm:$0xff]
  %v39 = vld [vmem:[%s0 + $0x80] sm:$0xff]
  %v40 = vld [vmem:[%s0 + $0x88] sm:$0xff]
  %v41 = vld [vmem:[%s0 + $0x90] sm:$0xff]
  %v42 = vld [vmem:[%s0 + $0x98] sm:$0xff]
  %v43 = vld [vmem:[%s0 + $0xa0] sm:$0xff]
  %v44 = vld [vmem:[%s0 + $0xa8] sm:$0xff]
  %v45 = vld [vmem:[%s0 + $0xb0] sm:$0xff]
  %v46 = vld [vmem:[%s0 + $0xb8] sm:$0xff]
  %v47 = vld [vmem:[%s0 + $0xc0] sm:$0xff]
  %v48 = vld [vmem:[%s0 + $0xc8] sm:$0xff]
  %v49 = vld [vmem:[%s0 + $0xd0] sm:$0xff]
  %v50 = vld [vmem:[%s0 + $0xd8] sm:$0xff]
  %v51 = vld [vmem:[%s0 + $0xe0] sm:$0xff]
  %v52 = vld [vmem:[%s0 + $0xe8] sm:$0xff]
  %v53 = vld [vmem:[%s0 + $0xf0] sm:$0xff]
  %v54 = vld [vmem:[%s0 + $0xf8] sm:$0xff]
  %v55 = vld [vmem:[%s1] sm:$0xff]
  %v56 = vld [vmem:[%s1 + $0x8] sm:$0xff]
  %v57 = vlaneseq
  %v58 = vshrl.u32 %v57, 7
  %v59 = vsub.s32 0, %v58
  %v60 = vrot.slane %v20, %v59
  %vm61 = vcmask 130048
  %v63 = vsel %vm61, %v23, 0
  %v66 = vsel %vm61, %v24, 0
  %v69 = vsel %vm61, %v25, 0
  %v72 = vsel %vm61, %v26, 0
  %v75 = vsel %vm61, %v27, 0
  %v78 = vsel %vm61, %v28, 0
  %v81 = vsel %vm61, %v29, 0
  %v84 = vsel %vm61, %v30, 0
  %v87 = vsel %vm61, %v31, 0
  %v90 = vsel %vm61, %v32, 0
  %v93 = vsel %vm61, %v33, 0
  %v96 = vsel %vm61, %v34, 0
  %v99 = vsel %vm61, %v35, 0
  %v102 = vsel %vm61, %v36, 0
  %v105 = vsel %vm61, %v37, 0
  %v108 = vsel %vm61, %v38, 0
  %v111 = vsel %vm61, %v39, 0
  %v114 = vsel %vm61, %v40, 0
  %v117 = vsel %vm61, %v41, 0
  %v120 = vsel %vm61, %v42, 0
  %v123 = vsel %vm61, %v43, 0
  %v126 = vsel %vm61, %v44, 0
  %v129 = vsel %vm61, %v45, 0
  %v132 = vsel %vm61, %v46, 0
  %v135 = vsel %vm61, %v47, 0
  %v138 = vsel %vm61, %v48, 0
  %v141 = vsel %vm61, %v49, 0
  %v144 = vsel %vm61, %v50, 0
  %v147 = vsel %vm61, %v51, 0
  %v150 = vsel %vm61, %v52, 0
  %v153 = vsel %vm61, %v53, 0
  %v156 = vsel %vm61, %v54, 0
  %158 = vmatprep.subr.mxu0 0.0
  %v159 = vand.u32 %v55, 4294901760
  %160 = vmatpush1.msra.mxu0 %v159
  %161 = vmatprep.subr.mxu0 0.0
  %v162 = vand.u32 %v56, 4294901760
  %163 = vmatpush1.msra.mxu0 %v162
  %164 = vmatprep.subr.mxu0 0.0
  %165 = vmatpush1.msra.mxu0 0.0
  %166 = vmatprep.subr.mxu0 0.0
  %167 = vmatpush1.msra.mxu0 0.0
  %168 = vmatprep.subr.mxu0 0.0
  %169 = vmatpush1.msra.mxu0 0.0
  %170 = vmatprep.subr.mxu0 0.0
  %171 = vmatpush1.msra.mxu0 0.0
  %172 = vmatprep.subr.mxu0 0.0
  %173 = vmatpush1.msra.mxu0 0.0
  %174 = vmatprep.subr.mxu0 0.0
  %175 = vmatpush1.msra.mxu0 0.0
  %176 = vmatprep.subr.mxu0 0.0
  %177 = vmatpush1.msra.mxu0 0.0
  %178 = vmatprep.subr.mxu0 0.0
  %179 = vmatpush1.msra.mxu0 0.0
  %180 = vmatprep.subr.mxu0 0.0
  %181 = vmatpush1.msra.mxu0 0.0
  %182 = vmatprep.subr.mxu0 0.0
  %183 = vmatpush1.msra.mxu0 0.0
  %184 = vmatprep.subr.mxu0 0.0
  %185 = vmatpush1.msra.mxu0 0.0
  %186 = vmatprep.subr.mxu0 0.0
  %187 = vmatpush1.msra.mxu0 0.0
  %188 = vmatprep.subr.mxu0 0.0
  %189 = vmatpush1.msra.mxu0 0.0
  %190 = vmatprep.subr.mxu0 0.0
  %191 = vmatpush1.msra.mxu0 0.0
  %192 = vmatprep.subr.mxu0 0.0
  %193 = vmatpush1.msra.mxu0 0.0
  %194 = vmatprep.subr.mxu0 0.0
  %195 = vmatpush1.msra.mxu0 0.0
  %196 = vmatprep.subr.mxu0 0.0
  %197 = vmatpush1.msra.mxu0 0.0
  %198 = vmatprep.subr.mxu0 0.0
  %199 = vmatpush1.msra.mxu0 0.0
  %200 = vmatprep.subr.mxu0 0.0
  %201 = vmatpush1.msra.mxu0 0.0
  %202 = vmatprep.subr.mxu0 0.0
  %203 = vmatpush1.msra.mxu0 0.0
  %204 = vmatprep.subr.mxu0 0.0
  %205 = vmatpush1.msra.mxu0 0.0
  %206 = vmatprep.subr.mxu0 0.0
  %207 = vmatpush1.msra.mxu0 0.0
  %208 = vmatprep.subr.mxu0 0.0
  %209 = vmatpush1.msra.mxu0 0.0
  %210 = vmatprep.subr.mxu0 0.0
  %211 = vmatpush1.msra.mxu0 0.0
  %212 = vmatprep.subr.mxu0 0.0
  %213 = vmatpush1.msra.mxu0 0.0
  %214 = vmatprep.subr.mxu0 0.0
  %215 = vmatpush1.msra.mxu0 0.0
  %216 = vmatprep.subr.mxu0 0.0
  %217 = vmatpush1.msra.mxu0 0.0
  %218 = vmatprep.subr.mxu0 0.0
  %219 = vmatpush1.msra.mxu0 0.0
  %220 = vmatprep.subr.mxu0 0.0
  %221 = vmatpush1.msra.mxu0 0.0
  %222 = vmatprep.subr.mxu0 0.0
  %223 = vmatpush1.msra.mxu0 0.0
  %224 = vmatprep.mubr.f32.mxu0 0.0
  %v225 = vand.u32 %v63, 4294901760
  %v226 = vsub.f32 %v63, %v225
  %v227 = vand.u32 %v226, 4294901760
  %v228 = vsub.f32 %v226, %v227
  %v229 = vand.u32 %v228, 4294901760
  %230 = vmatmul.mubr.f32.gmra.mrb[0].mxu0 %v229
  %v231 = vpop.f32.mrb[0].mxu0
  %v232 = vadd.f32 %v60, %v231
  %v233 = vpop.f32.mrb[0].mxu0
  %234 = vmatprep.mubr.f32.mxu0 0.0
  %v235 = vand.u32 %v66, 4294901760
  %v236 = vsub.f32 %v66, %v235
  %v237 = vand.u32 %v236, 4294901760
  %v238 = vsub.f32 %v236, %v237
  %v239 = vand.u32 %v238, 4294901760
  %240 = vmatmul.mubr.f32.gmra.mrb[0].mxu0 %v239
  %v241 = vpop.f32.mrb[0].mxu0
  %v242 = vadd.f32 %v60, %v241
  %v243 = vpop.f32.mrb[0].mxu0
  %244 = vmatprep.mubr.f32.mxu0 0.0
  %v245 = vand.u32 %v69, 4294901760
  %v246 = vsub.f32 %v69, %v245
  %v247 = vand.u32 %v246, 4294901760
  %v248 = vsub.f32 %v246, %v247
  %v249 = vand.u32 %v248, 4294901760
  %250 = vmatmul.mubr.f32.gmra.mrb[0].mxu0 %v249
  %v251 = vpop.f32.mrb[0].mxu0
  %v252 = vadd.f32 %v60, %v251
  %v253 = vpop.f32.mrb[0].mxu0
  %254 = vmatprep.mubr.f32.mxu0 0.0
  %v255 = vand.u32 %v72, 4294901760
  %v256 = vsub.f32 %v72, %v255
  %v257 = vand.u32 %v256, 4294901760
  %v258 = vsub.f32 %v256, %v257
  %v259 = vand.u32 %v258, 4294901760
  %260 = vmatmul.mubr.f32.gmra.mrb[0].mxu0 %v259
  %v261 = vpop.f32.mrb[0].mxu0
  %v262 = vadd.f32 %v60, %v261
  %v263 = vpop.f32.mrb[0].mxu0
  %264 = vmatprep.mubr.f32.mxu0 0.0
  %v265 = vand.u32 %v75, 4294901760
  %v266 = vsub.f32 %v75, %v265
  %v267 = vand.u32 %v266, 4294901760
  %v268 = vsub.f32 %v266, %v267
  %v269 = vand.u32 %v268, 4294901760
  %270 = vmatmul.mubr.f32.gmra.mrb[0].mxu0 %v269
  %v271 = vpop.f32.mrb[0].mxu0
  %v272 = vadd.f32 %v60, %v271
  %v273 = vpop.f32.mrb[0].mxu0
  %274 = vmatprep.mubr.f32.mxu0 0.0
  %v275 = vand.u32 %v78, 4294901760
  %v276 = vsub.f32 %v78, %v275
  %v277 = vand.u32 %v276, 4294901760
  %v278 = vsub.f32 %v276, %v277
  %v279 = vand.u32 %v278, 4294901760
  %280 = vmatmul.mubr.f32.gmra.mrb[0].mxu0 %v279
  %v281 = vpop.f32.mrb[0].mxu0
  %v282 = vadd.f32 %v60, %v281
  %v283 = vpop.f32.mrb[0].mxu0
  %284 = vmatprep.mubr.f32.mxu0 0.0
  %v285 = vand.u32 %v81, 4294901760
  %v286 = vsub.f32 %v81, %v285
  %v287 = vand.u32 %v286, 4294901760
  %v288 = vsub.f32 %v286, %v287
  %v289 = vand.u32 %v288, 4294901760
  %290 = vmatmul.mubr.f32.gmra.mrb[0].mxu0 %v289
  %v291 = vpop.f32.mrb[0].mxu0
  %v292 = vadd.f32 %v60, %v291
  %v293 = vpop.f32.mrb[0].mxu0
  %294 = vmatprep.mubr.f32.mxu0 0.0
  %v295 = vand.u32 %v84, 4294901760
  %v296 = vsub.f32 %v84, %v295
  %v297 = vand.u32 %v296, 4294901760
  %v298 = vsub.f32 %v296, %v297
  %v299 = vand.u32 %v298, 4294901760
  %300 = vmatmul.mubr.f32.gmra.mrb[0].mxu0 %v299
  %v301 = vpop.f32.mrb[0].mxu0
  %v302 = vadd.f32 %v60, %v301
  %v303 = vpop.f32.mrb[0].mxu0
  %304 = vmatprep.mubr.f32.mxu0 0.0
  %v305 = vand.u32 %v87, 4294901760
  %v306 = vsub.f32 %v87, %v305
  %v307 = vand.u32 %v306, 4294901760
  %v308 = vsub.f32 %v306, %v307
  %v309 = vand.u32 %v308, 4294901760
  %310 = vmatmul.mubr.f32.gmra.mrb[0].mxu0 %v309
  %v311 = vpop.f32.mrb[0].mxu0
  %v312 = vadd.f32 %v60, %v311
  %v313 = vpop.f32.mrb[0].mxu0
  %314 = vmatprep.mubr.f32.mxu0 0.0
  %v315 = vand.u32 %v90, 4294901760
  %v316 = vsub.f32 %v90, %v315
  %v317 = vand.u32 %v316, 4294901760
  %v318 = vsub.f32 %v316, %v317
  %v319 = vand.u32 %v318, 4294901760
  %320 = vmatmul.mubr.f32.gmra.mrb[0].mxu0 %v319
  %v321 = vpop.f32.mrb[0].mxu0
  %v322 = vadd.f32 %v60, %v321
  %v323 = vpop.f32.mrb[0].mxu0
  %324 = vmatprep.mubr.f32.mxu0 0.0
  %v325 = vand.u32 %v93, 4294901760
  %v326 = vsub.f32 %v93, %v325
  %v327 = vand.u32 %v326, 4294901760
  %v328 = vsub.f32 %v326, %v327
  %v329 = vand.u32 %v328, 4294901760
  %330 = vmatmul.mubr.f32.gmra.mrb[0].mxu0 %v329
  %v331 = vpop.f32.mrb[0].mxu0
  %v332 = vadd.f32 %v60, %v331
  %v333 = vpop.f32.mrb[0].mxu0
  %334 = vmatprep.mubr.f32.mxu0 0.0
  %v335 = vand.u32 %v96, 4294901760
  %v336 = vsub.f32 %v96, %v335
  %v337 = vand.u32 %v336, 4294901760
  %v338 = vsub.f32 %v336, %v337
  %v339 = vand.u32 %v338, 4294901760
  %340 = vmatmul.mubr.f32.gmra.mrb[0].mxu0 %v339
  %v341 = vpop.f32.mrb[0].mxu0
  %v342 = vadd.f32 %v60, %v341
  %v343 = vpop.f32.mrb[0].mxu0
  %344 = vmatprep.mubr.f32.mxu0 0.0
  %v345 = vand.u32 %v99, 4294901760
  %v346 = vsub.f32 %v99, %v345
  %v347 = vand.u32 %v346, 4294901760
  %v348 = vsub.f32 %v346, %v347
  %v349 = vand.u32 %v348, 4294901760
  %350 = vmatmul.mubr.f32.gmra.mrb[0].mxu0 %v349
  %v351 = vpop.f32.mrb[0].mxu0
  %v352 = vadd.f32 %v60, %v351
  %v353 = vpop.f32.mrb[0].mxu0
  %354 = vmatprep.mubr.f32.mxu0 0.0
  %v355 = vand.u32 %v102, 4294901760
  %v356 = vsub.f32 %v102, %v355
  %v357 = vand.u32 %v356, 4294901760
  %v358 = vsub.f32 %v356, %v357
  %v359 = vand.u32 %v358, 4294901760
  %360 = vmatmul.mubr.f32.gmra.mrb[0].mxu0 %v359
  %v361 = vpop.f32.mrb[0].mxu0
  %v362 = vadd.f32 %v60, %v361
  %v363 = vpop.f32.mrb[0].mxu0
  %364 = vmatprep.mubr.f32.mxu0 0.0
  %v365 = vand.u32 %v105, 4294901760
  %v366 = vsub.f32 %v105, %v365
  %v367 = vand.u32 %v366, 4294901760
  %v368 = vsub.f32 %v366, %v367
  %v369 = vand.u32 %v368, 4294901760
  %370 = vmatmul.mubr.f32.gmra.mrb[0].mxu0 %v369
  %v371 = vpop.f32.mrb[0].mxu0
  %v372 = vadd.f32 %v60, %v371
  %v373 = vpop.f32.mrb[0].mxu0
  %374 = vmatprep.mubr.f32.mxu0 0.0
  %v375 = vand.u32 %v108, 4294901760
  %v376 = vsub.f32 %v108, %v375
  %v377 = vand.u32 %v376, 4294901760
  %v378 = vsub.f32 %v376, %v377
  %v379 = vand.u32 %v378, 4294901760
  %380 = vmatmul.mubr.f32.gmra.mrb[0].mxu0 %v379
  %v381 = vpop.f32.mrb[0].mxu0
  %v382 = vadd.f32 %v60, %v381
  %v383 = vpop.f32.mrb[0].mxu0
  %384 = vmatprep.mubr.f32.mxu0 0.0
  %v385 = vand.u32 %v111, 4294901760
  %v386 = vsub.f32 %v111, %v385
  %v387 = vand.u32 %v386, 4294901760
  %v388 = vsub.f32 %v386, %v387
  %v389 = vand.u32 %v388, 4294901760
  %390 = vmatmul.mubr.f32.gmra.mrb[0].mxu0 %v389
  %v391 = vpop.f32.mrb[0].mxu0
  %v392 = vadd.f32 %v60, %v391
  %v393 = vpop.f32.mrb[0].mxu0
  %394 = vmatprep.mubr.f32.mxu0 0.0
  %v395 = vand.u32 %v114, 4294901760
  %v396 = vsub.f32 %v114, %v395
  %v397 = vand.u32 %v396, 4294901760
  %v398 = vsub.f32 %v396, %v397
  %v399 = vand.u32 %v398, 4294901760
  %400 = vmatmul.mubr.f32.gmra.mrb[0].mxu0 %v399
  %v401 = vpop.f32.mrb[0].mxu0
  %v402 = vadd.f32 %v60, %v401
  %v403 = vpop.f32.mrb[0].mxu0
  %404 = vmatprep.mubr.f32.mxu0 0.0
  %v405 = vand.u32 %v117, 4294901760
  %v406 = vsub.f32 %v117, %v405
  %v407 = vand.u32 %v406, 4294901760
  %v408 = vsub.f32 %v406, %v407
  %v409 = vand.u32 %v408, 4294901760
  %410 = vmatmul.mubr.f32.gmra.mrb[0].mxu0 %v409
  %v411 = vpop.f32.mrb[0].mxu0
  %v412 = vadd.f32 %v60, %v411
  %v413 = vpop.f32.mrb[0].mxu0
  %414 = vmatprep.mubr.f32.mxu0 0.0
  %v415 = vand.u32 %v120, 4294901760
  %v416 = vsub.f32 %v120, %v415
  %v417 = vand.u32 %v416, 4294901760
  %v418 = vsub.f32 %v416, %v417
  %v419 = vand.u32 %v418, 4294901760
  %420 = vmatmul.mubr.f32.gmra.mrb[0].mxu0 %v419
  %v421 = vpop.f32.mrb[0].mxu0
  %v422 = vadd.f32 %v60, %v421
  %v423 = vpop.f32.mrb[0].mxu0
  %424 = vmatprep.mubr.f32.mxu0 0.0
  %v425 = vand.u32 %v123, 4294901760
  %v426 = vsub.f32 %v123, %v425
  %v427 = vand.u32 %v426, 4294901760
  %v428 = vsub.f32 %v426, %v427
  %v429 = vand.u32 %v428, 4294901760
  %430 = vmatmul.mubr.f32.gmra.mrb[0].mxu0 %v429
  %v431 = vpop.f32.mrb[0].mxu0
  %v432 = vadd.f32 %v60, %v431
  %v433 = vpop.f32.mrb[0].mxu0
  %434 = vmatprep.mubr.f32.mxu0 0.0
  %v435 = vand.u32 %v126, 4294901760
  %v436 = vsub.f32 %v126, %v435
  %v437 = vand.u32 %v436, 4294901760
  %v438 = vsub.f32 %v436, %v437
  %v439 = vand.u32 %v438, 4294901760
  %440 = vmatmul.mubr.f32.gmra.mrb[0].mxu0 %v439
  %v441 = vpop.f32.mrb[0].mxu0
  %v442 = vadd.f32 %v60, %v441
  %v443 = vpop.f32.mrb[0].mxu0
  %444 = vmatprep.mubr.f32.mxu0 0.0
  %v445 = vand.u32 %v129, 4294901760
  %v446 = vsub.f32 %v129, %v445
  %v447 = vand.u32 %v446, 4294901760
  %v448 = vsub.f32 %v446, %v447
  %v449 = vand.u32 %v448, 4294901760
  %450 = vmatmul.mubr.f32.gmra.mrb[0].mxu0 %v449
  %v451 = vpop.f32.mrb[0].mxu0
  %v452 = vadd.f32 %v60, %v451
  %v453 = vpop.f32.mrb[0].mxu0
  %454 = vmatprep.mubr.f32.mxu0 0.0
  %v455 = vand.u32 %v132, 4294901760
  %v456 = vsub.f32 %v132, %v455
  %v457 = vand.u32 %v456, 4294901760
  %v458 = vsub.f32 %v456, %v457
  %v459 = vand.u32 %v458, 4294901760
  %460 = vmatmul.mubr.f32.gmra.mrb[0].mxu0 %v459
  %v461 = vpop.f32.mrb[0].mxu0
  %v462 = vadd.f32 %v60, %v461
  %v463 = vpop.f32.mrb[0].mxu0
  %464 = vmatprep.mubr.f32.mxu0 0.0
  %v465 = vand.u32 %v135, 4294901760
  %v466 = vsub.f32 %v135, %v465
  %v467 = vand.u32 %v466, 4294901760
  %v468 = vsub.f32 %v466, %v467
  %v469 = vand.u32 %v468, 4294901760
  %470 = vmatmul.mubr.f32.gmra.mrb[0].mxu0 %v469
  %v471 = vpop.f32.mrb[0].mxu0
  %v472 = vadd.f32 %v60, %v471
  %v473 = vpop.f32.mrb[0].mxu0
  %474 = vmatprep.mubr.f32.mxu0 0.0
  %v475 = vand.u32 %v138, 4294901760
  %v476 = vsub.f32 %v138, %v475
  %v477 = vand.u32 %v476, 4294901760
  %v478 = vsub.f32 %v476, %v477
  %v479 = vand.u32 %v478, 4294901760
  %480 = vmatmul.mubr.f32.gmra.mrb[0].mxu0 %v479
  %v481 = vpop.f32.mrb[0].mxu0
  %v482 = vadd.f32 %v60, %v481
  %v483 = vpop.f32.mrb[0].mxu0
  %484 = vmatprep.mubr.f32.mxu0 0.0
  %v485 = vand.u32 %v141, 4294901760
  %v486 = vsub.f32 %v141, %v485
  %v487 = vand.u32 %v486, 4294901760
  %v488 = vsub.f32 %v486, %v487
  %v489 = vand.u32 %v488, 4294901760
  %490 = vmatmul.mubr.f32.gmra.mrb[0].mxu0 %v489
  %v491 = vpop.f32.mrb[0].mxu0
  %v492 = vadd.f32 %v60, %v491
  %v493 = vpop.f32.mrb[0].mxu0
  %494 = vmatprep.mubr.f32.mxu0 0.0
  %v495 = vand.u32 %v144, 4294901760
  %v496 = vsub.f32 %v144, %v495
  %v497 = vand.u32 %v496, 4294901760
  %v498 = vsub.f32 %v496, %v497
  %v499 = vand.u32 %v498, 4294901760
  %500 = vmatmul.mubr.f32.gmra.mrb[0].mxu0 %v499
  %v501 = vpop.f32.mrb[0].mxu0
  %v502 = vadd.f32 %v60, %v501
  %v503 = vpop.f32.mrb[0].mxu0
  %504 = vmatprep.mubr.f32.mxu0 0.0
  %v505 = vand.u32 %v147, 4294901760
  %v506 = vsub.f32 %v147, %v505
  %v507 = vand.u32 %v506, 4294901760
  %v508 = vsub.f32 %v506, %v507
  %v509 = vand.u32 %v508, 4294901760
  %510 = vmatmul.mubr.f32.gmra.mrb[0].mxu0 %v509
  %v511 = vpop.f32.mrb[0].mxu0
  %v512 = vadd.f32 %v60, %v511
  %v513 = vpop.f32.mrb[0].mxu0
  %514 = vmatprep.mubr.f32.mxu0 0.0
  %v515 = vand.u32 %v150, 4294901760
  %v516 = vsub.f32 %v150, %v515
  %v517 = vand.u32 %v516, 4294901760
  %v518 = vsub.f32 %v516, %v517
  %v519 = vand.u32 %v518, 4294901760
  %520 = vmatmul.mubr.f32.gmra.mrb[0].mxu0 %v519
  %v521 = vpop.f32.mrb[0].mxu0
  %v522 = vadd.f32 %v60, %v521
  %v523 = vpop.f32.mrb[0].mxu0
  %524 = vmatprep.mubr.f32.mxu0 0.0
  %v525 = vand.u32 %v153, 4294901760
  %v526 = vsub.f32 %v153, %v525
  %v527 = vand.u32 %v526, 4294901760
  %v528 = vsub.f32 %v526, %v527
  %v529 = vand.u32 %v528, 4294901760
  %530 = vmatmul.mubr.f32.gmra.mrb[0].mxu0 %v529
  %v531 = vpop.f32.mrb[0].mxu0
  %v532 = vadd.f32 %v60, %v531
  %v533 = vpop.f32.mrb[0].mxu0
  %534 = vmatprep.mubr.f32.mxu0 0.0
  %v535 = vand.u32 %v156, 4294901760
  %v536 = vsub.f32 %v156, %v535
  %v537 = vand.u32 %v536, 4294901760
  %v538 = vsub.f32 %v536, %v537
  %v539 = vand.u32 %v538, 4294901760
  %540 = vmatmul.mubr.f32.gmra.mrb[0].mxu0 %v539
  %v541 = vpop.f32.mrb[0].mxu0
  %v542 = vadd.f32 %v60, %v541
  %v543 = vpop.f32.mrb[0].mxu0
  %544 = vdwg.mxu0
  %545 = vmatprep.subr.mxu0 0.0
  %v546 = vand.u32 %v55, 4294901760
  %v547 = vsub.f32 %v55, %v546
  %v548 = vand.u32 %v547, 4294901760
  %v549 = vsub.f32 %v547, %v548
  %v550 = vand.u32 %v549, 4294901760
  %551 = vmatpush1.msra.mxu0 %v550
  %552 = vmatprep.subr.mxu0 0.0
  %v553 = vand.u32 %v56, 4294901760
  %v554 = vsub.f32 %v56, %v553
  %v555 = vand.u32 %v554, 4294901760
  %v556 = vsub.f32 %v554, %v555
  %v557 = vand.u32 %v556, 4294901760
  %558 = vmatpush1.msra.mxu0 %v557
  %559 = vmatprep.subr.mxu0 0.0
  %560 = vmatpush1.msra.mxu0 0.0
  %561 = vmatprep.subr.mxu0 0.0
  %562 = vmatpush1.msra.mxu0 0.0
  %563 = vmatprep.subr.mxu0 0.0
  %564 = vmatpush1.msra.mxu0 0.0
  %565 = vmatprep.subr.mxu0 0.0
  %566 = vmatpush1.msra.mxu0 0.0
  %567 = vmatprep.subr.mxu0 0.0
  %568 = vmatpush1.msra.mxu0 0.0
  %569 = vmatprep.subr.mxu0 0.0
  %570 = vmatpush1.msra.mxu0 0.0
  %571 = vmatprep.subr.mxu0 0.0
  %572 = vmatpush1.msra.mxu0 0.0
  %573 = vmatprep.subr.mxu0 0.0
  %574 = vmatpush1.msra.mxu0 0.0
  %575 = vmatprep.subr.mxu0 0.0
  %576 = vmatpush1.msra.mxu0 0.0
  %577 = vmatprep.subr.mxu0 0.0
  %578 = vmatpush1.msra.mxu0 0.0
  %579 = vmatprep.subr.mxu0 0.0
  %580 = vmatpush1.msra.mxu0 0.0
  %581 = vmatprep.subr.mxu0 0.0
  %582 = vmatpush1.msra.mxu0 0.0
  %583 = vmatprep.subr.mxu0 0.0
  %584 = vmatpush1.msra.mxu0 0.0
  %585 = vmatprep.subr.mxu0 0.0
  %586 = vmatpush1.msra.mxu0 0.0
  %587 = vmatprep.subr.mxu0 0.0
  %588 = vmatpush1.msra.mxu0 0.0
  %589 = vmatprep.subr.mxu0 0.0
  %590 = vmatpush1.msra.mxu0 0.0
  %591 = vmatprep.subr.mxu0 0.0
  %592 = vmatpush1.msra.mxu0 0.0
  %593 = vmatprep.subr.mxu0 0.0
  %594 = vmatpush1.msra.mxu0 0.0
  %595 = vmatprep.subr.mxu0 0.0
  %596 = vmatpush1.msra.mxu0 0.0
  %597 = vmatprep.subr.mxu0 0.0
  %598 = vmatpush1.msra.mxu0 0.0
  %599 = vmatprep.subr.mxu0 0.0
  %600 = vmatpush1.msra.mxu0 0.0
  %601 = vmatprep.subr.mxu0 0.0
  %602 = vmatpush1.msra.mxu0 0.0
  %603 = vmatprep.subr.mxu0 0.0
  %604 = vmatpush1.msra.mxu0 0.0
  %605 = vmatprep.subr.mxu0 0.0
  %606 = vmatpush1.msra.mxu0 0.0
  %607 = vmatprep.subr.mxu0 0.0
  %608 = vmatpush1.msra.mxu0 0.0
  %609 = vmatprep.subr.mxu0 0.0
  %610 = vmatpush1.msra.mxu0 0.0
  %611 = vmatprep.subr.mxu0 0.0
  %612 = vmatpush1.msra.mxu0 0.0
  %613 = vmatprep.subr.mxu0 0.0
  %614 = vmatpush1.msra.mxu0 0.0
  %615 = vmatprep.subr.mxu0 0.0
  %616 = vmatpush1.msra.mxu0 0.0
  %617 = vmatprep.subr.mxu0 0.0
  %618 = vmatpush1.msra.mxu0 0.0
  %619 = vmatprep.mubr.f32.mxu0 0.0
  %v620 = vand.u32 %v63, 4294901760
  %621 = vmatmul.mubr.f32.gmra.mrb[0].mxu0 %v620
  %v622 = vpop.f32.mrb[0].mxu0
  %v623 = vadd.f32 %v232, %v622
  %v624 = vpop.f32.mrb[0].mxu0
  %625 = vmatprep.mubr.f32.mxu0 0.0
  %v626 = vand.u32 %v66, 4294901760
  %627 = vmatmul.mubr.f32.gmra.mrb[0].mxu0 %v626
  %v628 = vpop.f32.mrb[0].mxu0
  %v629 = vadd.f32 %v242, %v628
  %v630 = vpop.f32.mrb[0].mxu0
  %631 = vmatprep.mubr.f32.mxu0 0.0
  %v632 = vand.u32 %v69, 4294901760
  %633 = vmatmul.mubr.f32.gmra.mrb[0].mxu0 %v632
  %v634 = vpop.f32.mrb[0].mxu0
  %v635 = vadd.f32 %v252, %v634
  %v636 = vpop.f32.mrb[0].mxu0
  %637 = vmatprep.mubr.f32.mxu0 0.0
  %v638 = vand.u32 %v72, 4294901760
  %639 = vmatmul.mubr.f32.gmra.mrb[0].mxu0 %v638
  %v640 = vpop.f32.mrb[0].mxu0
  %v641 = vadd.f32 %v262, %v640
  %v642 = vpop.f32.mrb[0].mxu0
  %643 = vmatprep.mubr.f32.mxu0 0.0
  %v644 = vand.u32 %v75, 4294901760
  %645 = vmatmul.mubr.f32.gmra.mrb[0].mxu0 %v644
  %v646 = vpop.f32.mrb[0].mxu0
  %v647 = vadd.f32 %v272, %v646
  %v648 = vpop.f32.mrb[0].mxu0
  %649 = vmatprep.mubr.f32.mxu0 0.0
  %v650 = vand.u32 %v78, 4294901760
  %651 = vmatmul.mubr.f32.gmra.mrb[0].mxu0 %v650
  %v652 = vpop.f32.mrb[0].mxu0
  %v653 = vadd.f32 %v282, %v652
  %v654 = vpop.f32.mrb[0].mxu0
  %655 = vmatprep.mubr.f32.mxu0 0.0
  %v656 = vand.u32 %v81, 4294901760
  %657 = vmatmul.mubr.f32.gmra.mrb[0].mxu0 %v656
  %v658 = vpop.f32.mrb[0].mxu0
  %v659 = vadd.f32 %v292, %v658
  %v660 = vpop.f32.mrb[0].mxu0
  %661 = vmatprep.mubr.f32.mxu0 0.0
  %v662 = vand.u32 %v84, 4294901760
  %663 = vmatmul.mubr.f32.gmra.mrb[0].mxu0 %v662
  %v664 = vpop.f32.mrb[0].mxu0
  %v665 = vadd.f32 %v302, %v664
  %v666 = vpop.f32.mrb[0].mxu0
  %667 = vmatprep.mubr.f32.mxu0 0.0
  %v668 = vand.u32 %v87, 4294901760
  %669 = vmatmul.mubr.f32.gmra.mrb[0].mxu0 %v668
  %v670 = vpop.f32.mrb[0].mxu0
  %v671 = vadd.f32 %v312, %v670
  %v672 = vpop.f32.mrb[0].mxu0
  %673 = vmatprep.mubr.f32.mxu0 0.0
  %v674 = vand.u32 %v90, 4294901760
  %675 = vmatmul.mubr.f32.gmra.mrb[0].mxu0 %v674
  %v676 = vpop.f32.mrb[0].mxu0
  %v677 = vadd.f32 %v322, %v676
  %v678 = vpop.f32.mrb[0].mxu0
  %679 = vmatprep.mubr.f32.mxu0 0.0
  %v680 = vand.u32 %v93, 4294901760
  %681 = vmatmul.mubr.f32.gmra.mrb[0].mxu0 %v680
  %v682 = vpop.f32.mrb[0].mxu0
  %v683 = vadd.f32 %v332, %v682
  %v684 = vpop.f32.mrb[0].mxu0
  %685 = vmatprep.mubr.f32.mxu0 0.0
  %v686 = vand.u32 %v96, 4294901760
  %687 = vmatmul.mubr.f32.gmra.mrb[0].mxu0 %v686
  %v688 = vpop.f32.mrb[0].mxu0
  %v689 = vadd.f32 %v342, %v688
  %v690 = vpop.f32.mrb[0].mxu0
  %691 = vmatprep.mubr.f32.mxu0 0.0
  %v692 = vand.u32 %v99, 4294901760
  %693 = vmatmul.mubr.f32.gmra.mrb[0].mxu0 %v692
  %v694 = vpop.f32.mrb[0].mxu0
  %v695 = vadd.f32 %v352, %v694
  %v696 = vpop.f32.mrb[0].mxu0
  %697 = vmatprep.mubr.f32.mxu0 0.0
  %v698 = vand.u32 %v102, 4294901760
  %699 = vmatmul.mubr.f32.gmra.mrb[0].mxu0 %v698
  %v700 = vpop.f32.mrb[0].mxu0
  %v701 = vadd.f32 %v362, %v700
  %v702 = vpop.f32.mrb[0].mxu0
  %703 = vmatprep.mubr.f32.mxu0 0.0
  %v704 = vand.u32 %v105, 4294901760
  %705 = vmatmul.mubr.f32.gmra.mrb[0].mxu0 %v704
  %v706 = vpop.f32.mrb[0].mxu0
  %v707 = vadd.f32 %v372, %v706
  %v708 = vpop.f32.mrb[0].mxu0
  %709 = vmatprep.mubr.f32.mxu0 0.0
  %v710 = vand.u32 %v108, 4294901760
  %711 = vmatmul.mubr.f32.gmra.mrb[0].mxu0 %v710
  %v712 = vpop.f32.mrb[0].mxu0
  %v713 = vadd.f32 %v382, %v712
  %v714 = vpop.f32.mrb[0].mxu0
  %715 = vmatprep.mubr.f32.mxu0 0.0
  %v716 = vand.u32 %v111, 4294901760
  %717 = vmatmul.mubr.f32.gmra.mrb[0].mxu0 %v716
  %v718 = vpop.f32.mrb[0].mxu0
  %v719 = vadd.f32 %v392, %v718
  %v720 = vpop.f32.mrb[0].mxu0
  %721 = vmatprep.mubr.f32.mxu0 0.0
  %v722 = vand.u32 %v114, 4294901760
  %723 = vmatmul.mubr.f32.gmra.mrb[0].mxu0 %v722
  %v724 = vpop.f32.mrb[0].mxu0
  %v725 = vadd.f32 %v402, %v724
  %v726 = vpop.f32.mrb[0].mxu0
  %727 = vmatprep.mubr.f32.mxu0 0.0
  %v728 = vand.u32 %v117, 4294901760
  %729 = vmatmul.mubr.f32.gmra.mrb[0].mxu0 %v728
  %v730 = vpop.f32.mrb[0].mxu0
  %v731 = vadd.f32 %v412, %v730
  %v732 = vpop.f32.mrb[0].mxu0
  %733 = vmatprep.mubr.f32.mxu0 0.0
  %v734 = vand.u32 %v120, 4294901760
  %735 = vmatmul.mubr.f32.gmra.mrb[0].mxu0 %v734
  %v736 = vpop.f32.mrb[0].mxu0
  %v737 = vadd.f32 %v422, %v736
  %v738 = vpop.f32.mrb[0].mxu0
  %739 = vmatprep.mubr.f32.mxu0 0.0
  %v740 = vand.u32 %v123, 4294901760
  %741 = vmatmul.mubr.f32.gmra.mrb[0].mxu0 %v740
  %v742 = vpop.f32.mrb[0].mxu0
  %v743 = vadd.f32 %v432, %v742
  %v744 = vpop.f32.mrb[0].mxu0
  %745 = vmatprep.mubr.f32.mxu0 0.0
  %v746 = vand.u32 %v126, 4294901760
  %747 = vmatmul.mubr.f32.gmra.mrb[0].mxu0 %v746
  %v748 = vpop.f32.mrb[0].mxu0
  %v749 = vadd.f32 %v442, %v748
  %v750 = vpop.f32.mrb[0].mxu0
  %751 = vmatprep.mubr.f32.mxu0 0.0
  %v752 = vand.u32 %v129, 4294901760
  %753 = vmatmul.mubr.f32.gmra.mrb[0].mxu0 %v752
  %v754 = vpop.f32.mrb[0].mxu0
  %v755 = vadd.f32 %v452, %v754
  %v756 = vpop.f32.mrb[0].mxu0
  %757 = vmatprep.mubr.f32.mxu0 0.0
  %v758 = vand.u32 %v132, 4294901760
  %759 = vmatmul.mubr.f32.gmra.mrb[0].mxu0 %v758
  %v760 = vpop.f32.mrb[0].mxu0
  %v761 = vadd.f32 %v462, %v760
  %v762 = vpop.f32.mrb[0].mxu0
  %763 = vmatprep.mubr.f32.mxu0 0.0
  %v764 = vand.u32 %v135, 4294901760
  %765 = vmatmul.mubr.f32.gmra.mrb[0].mxu0 %v764
  %v766 = vpop.f32.mrb[0].mxu0
  %v767 = vadd.f32 %v472, %v766
  %v768 = vpop.f32.mrb[0].mxu0
  %769 = vmatprep.mubr.f32.mxu0 0.0
  %v770 = vand.u32 %v138, 4294901760
  %771 = vmatmul.mubr.f32.gmra.mrb[0].mxu0 %v770
  %v772 = vpop.f32.mrb[0].mxu0
  %v773 = vadd.f32 %v482, %v772
  %v774 = vpop.f32.mrb[0].mxu0
  %775 = vmatprep.mubr.f32.mxu0 0.0
  %v776 = vand.u32 %v141, 4294901760
  %777 = vmatmul.mubr.f32.gmra.mrb[0].mxu0 %v776
  %v778 = vpop.f32.mrb[0].mxu0
  %v779 = vadd.f32 %v492, %v778
  %v780 = vpop.f32.mrb[0].mxu0
  %781 = vmatprep.mubr.f32.mxu0 0.0
  %v782 = vand.u32 %v144, 4294901760
  %783 = vmatmul.mubr.f32.gmra.mrb[0].mxu0 %v782
  %v784 = vpop.f32.mrb[0].mxu0
  %v785 = vadd.f32 %v502, %v784
  %v786 = vpop.f32.mrb[0].mxu0
  %787 = vmatprep.mubr.f32.mxu0 0.0
  %v788 = vand.u32 %v147, 4294901760
  %789 = vmatmul.mubr.f32.gmra.mrb[0].mxu0 %v788
  %v790 = vpop.f32.mrb[0].mxu0
  %v791 = vadd.f32 %v512, %v790
  %v792 = vpop.f32.mrb[0].mxu0
  %793 = vmatprep.mubr.f32.mxu0 0.0
  %v794 = vand.u32 %v150, 4294901760
  %795 = vmatmul.mubr.f32.gmra.mrb[0].mxu0 %v794
  %v796 = vpop.f32.mrb[0].mxu0
  %v797 = vadd.f32 %v522, %v796
  %v798 = vpop.f32.mrb[0].mxu0
  %799 = vmatprep.mubr.f32.mxu0 0.0
  %v800 = vand.u32 %v153, 4294901760
  %801 = vmatmul.mubr.f32.gmra.mrb[0].mxu0 %v800
  %v802 = vpop.f32.mrb[0].mxu0
  %v803 = vadd.f32 %v532, %v802
  %v804 = vpop.f32.mrb[0].mxu0
  %805 = vmatprep.mubr.f32.mxu0 0.0
  %v806 = vand.u32 %v156, 4294901760
  %807 = vmatmul.mubr.f32.gmra.mrb[0].mxu0 %v806
  %v808 = vpop.f32.mrb[0].mxu0
  %v809 = vadd.f32 %v542, %v808
  %v810 = vpop.f32.mrb[0].mxu0
  %811 = vdwg.mxu0
  %812 = vmatprep.subr.mxu0 0.0
  %v813 = vand.u32 %v55, 4294901760
  %v814 = vsub.f32 %v55, %v813
  %815 = vmatpush1.msra.mxu0 %v814
  %816 = vmatprep.subr.mxu0 0.0
  %v817 = vand.u32 %v56, 4294901760
  %v818 = vsub.f32 %v56, %v817
  %819 = vmatpush1.msra.mxu0 %v818
  %820 = vmatprep.subr.mxu0 0.0
  %821 = vmatpush1.msra.mxu0 0.0
  %822 = vmatprep.subr.mxu0 0.0
  %823 = vmatpush1.msra.mxu0 0.0
  %824 = vmatprep.subr.mxu0 0.0
  %825 = vmatpush1.msra.mxu0 0.0
  %826 = vmatprep.subr.mxu0 0.0
  %827 = vmatpush1.msra.mxu0 0.0
  %828 = vmatprep.subr.mxu0 0.0
  %829 = vmatpush1.msra.mxu0 0.0
  %830 = vmatprep.subr.mxu0 0.0
  %831 = vmatpush1.msra.mxu0 0.0
  %832 = vmatprep.subr.mxu0 0.0
  %833 = vmatpush1.msra.mxu0 0.0
  %834 = vmatprep.subr.mxu0 0.0
  %835 = vmatpush1.msra.mxu0 0.0
  %836 = vmatprep.subr.mxu0 0.0
  %837 = vmatpush1.msra.mxu0 0.0
  %838 = vmatprep.subr.mxu0 0.0
  %839 = vmatpush1.msra.mxu0 0.0
  %840 = vmatprep.subr.mxu0 0.0
  %841 = vmatpush1.msra.mxu0 0.0
  %842 = vmatprep.subr.mxu0 0.0
  %843 = vmatpush1.msra.mxu0 0.0
  %844 = vmatprep.subr.mxu0 0.0
  %845 = vmatpush1.msra.mxu0 0.0
  %846 = vmatprep.subr.mxu0 0.0
  %847 = vmatpush1.msra.mxu0 0.0
  %848 = vmatprep.subr.mxu0 0.0
  %849 = vmatpush1.msra.mxu0 0.0
  %850 = vmatprep.subr.mxu0 0.0
  %851 = vmatpush1.msra.mxu0 0.0
  %852 = vmatprep.subr.mxu0 0.0
  %853 = vmatpush1.msra.mxu0 0.0
  %854 = vmatprep.subr.mxu0 0.0
  %855 = vmatpush1.msra.mxu0 0.0
  %856 = vmatprep.subr.mxu0 0.0
  %857 = vmatpush1.msra.mxu0 0.0
  %858 = vmatprep.subr.mxu0 0.0
  %859 = vmatpush1.msra.mxu0 0.0
  %860 = vmatprep.subr.mxu0 0.0
  %861 = vmatpush1.msra.mxu0 0.0
  %862 = vmatprep.subr.mxu0 0.0
  %863 = vmatpush1.msra.mxu0 0.0
  %864 = vmatprep.subr.mxu0 0.0
  %865 = vmatpush1.msra.mxu0 0.0
  %866 = vmatprep.subr.mxu0 0.0
  %867 = vmatpush1.msra.mxu0 0.0
  %868 = vmatprep.subr.mxu0 0.0
  %869 = vmatpush1.msra.mxu0 0.0
  %870 = vmatprep.subr.mxu0 0.0
  %871 = vmatpush1.msra.mxu0 0.0
  %872 = vmatprep.subr.mxu0 0.0
  %873 = vmatpush1.msra.mxu0 0.0
  %874 = vmatprep.subr.mxu0 0.0
  %875 = vmatpush1.msra.mxu0 0.0
  %876 = vmatprep.subr.mxu0 0.0
  %877 = vmatpush1.msra.mxu0 0.0
  %878 = vmatprep.subr.mxu0 0.0
  %879 = vmatpush1.msra.mxu0 0.0
  %880 = vmatprep.mubr.f32.mxu0 0.0
  %v881 = vand.u32 %v63, 4294901760
  %v882 = vsub.f32 %v63, %v881
  %883 = vmatmul.mubr.f32.gmra.mrb[0].mxu0 %v882
  %v884 = vpop.f32.mrb[0].mxu0
  %v885 = vadd.f32 %v623, %v884
  %v886 = vpop.f32.mrb[0].mxu0
  %887 = vmatprep.mubr.f32.mxu0 0.0
  %v888 = vand.u32 %v66, 4294901760
  %v889 = vsub.f32 %v66, %v888
  %890 = vmatmul.mubr.f32.gmra.mrb[0].mxu0 %v889
  %v891 = vpop.f32.mrb[0].mxu0
  %v892 = vadd.f32 %v629, %v891
  %v893 = vpop.f32.mrb[0].mxu0
  %894 = vmatprep.mubr.f32.mxu0 0.0
  %v895 = vand.u32 %v69, 4294901760
  %v896 = vsub.f32 %v69, %v895
  %897 = vmatmul.mubr.f32.gmra.mrb[0].mxu0 %v896
  %v898 = vpop.f32.mrb[0].mxu0
  %v899 = vadd.f32 %v635, %v898
  %v900 = vpop.f32.mrb[0].mxu0
  %901 = vmatprep.mubr.f32.mxu0 0.0
  %v902 = vand.u32 %v72, 4294901760
  %v903 = vsub.f32 %v72, %v902
  %904 = vmatmul.mubr.f32.gmra.mrb[0].mxu0 %v903
  %v905 = vpop.f32.mrb[0].mxu0
  %v906 = vadd.f32 %v641, %v905
  %v907 = vpop.f32.mrb[0].mxu0
  %908 = vmatprep.mubr.f32.mxu0 0.0
  %v909 = vand.u32 %v75, 4294901760
  %v910 = vsub.f32 %v75, %v909
  %911 = vmatmul.mubr.f32.gmra.mrb[0].mxu0 %v910
  %v912 = vpop.f32.mrb[0].mxu0
  %v913 = vadd.f32 %v647, %v912
  %v914 = vpop.f32.mrb[0].mxu0
  %915 = vmatprep.mubr.f32.mxu0 0.0
  %v916 = vand.u32 %v78, 4294901760
  %v917 = vsub.f32 %v78, %v916
  %918 = vmatmul.mubr.f32.gmra.mrb[0].mxu0 %v917
  %v919 = vpop.f32.mrb[0].mxu0
  %v920 = vadd.f32 %v653, %v919
  %v921 = vpop.f32.mrb[0].mxu0
  %922 = vmatprep.mubr.f32.mxu0 0.0
  %v923 = vand.u32 %v81, 4294901760
  %v924 = vsub.f32 %v81, %v923
  %925 = vmatmul.mubr.f32.gmra.mrb[0].mxu0 %v924
  %v926 = vpop.f32.mrb[0].mxu0
  %v927 = vadd.f32 %v659, %v926
  %v928 = vpop.f32.mrb[0].mxu0
  %929 = vmatprep.mubr.f32.mxu0 0.0
  %v930 = vand.u32 %v84, 4294901760
  %v931 = vsub.f32 %v84, %v930
  %932 = vmatmul.mubr.f32.gmra.mrb[0].mxu0 %v931
  %v933 = vpop.f32.mrb[0].mxu0
  %v934 = vadd.f32 %v665, %v933
  %v935 = vpop.f32.mrb[0].mxu0
  %936 = vmatprep.mubr.f32.mxu0 0.0
  %v937 = vand.u32 %v87, 4294901760
  %v938 = vsub.f32 %v87, %v937
  %939 = vmatmul.mubr.f32.gmra.mrb[0].mxu0 %v938
  %v940 = vpop.f32.mrb[0].mxu0
  %v941 = vadd.f32 %v671, %v940
  %v942 = vpop.f32.mrb[0].mxu0
  %943 = vmatprep.mubr.f32.mxu0 0.0
  %v944 = vand.u32 %v90, 4294901760
  %v945 = vsub.f32 %v90, %v944
  %946 = vmatmul.mubr.f32.gmra.mrb[0].mxu0 %v945
  %v947 = vpop.f32.mrb[0].mxu0
  %v948 = vadd.f32 %v677, %v947
  %v949 = vpop.f32.mrb[0].mxu0
  %950 = vmatprep.mubr.f32.mxu0 0.0
  %v951 = vand.u32 %v93, 4294901760
  %v952 = vsub.f32 %v93, %v951
  %953 = vmatmul.mubr.f32.gmra.mrb[0].mxu0 %v952
  %v954 = vpop.f32.mrb[0].mxu0
  %v955 = vadd.f32 %v683, %v954
  %v956 = vpop.f32.mrb[0].mxu0
  %957 = vmatprep.mubr.f32.mxu0 0.0
  %v958 = vand.u32 %v96, 4294901760
  %v959 = vsub.f32 %v96, %v958
  %960 = vmatmul.mubr.f32.gmra.mrb[0].mxu0 %v959
  %v961 = vpop.f32.mrb[0].mxu0
  %v962 = vadd.f32 %v689, %v961
  %v963 = vpop.f32.mrb[0].mxu0
  %964 = vmatprep.mubr.f32.mxu0 0.0
  %v965 = vand.u32 %v99, 4294901760
  %v966 = vsub.f32 %v99, %v965
  %967 = vmatmul.mubr.f32.gmra.mrb[0].mxu0 %v966
  %v968 = vpop.f32.mrb[0].mxu0
  %v969 = vadd.f32 %v695, %v968
  %v970 = vpop.f32.mrb[0].mxu0
  %971 = vmatprep.mubr.f32.mxu0 0.0
  %v972 = vand.u32 %v102, 4294901760
  %v973 = vsub.f32 %v102, %v972
  %974 = vmatmul.mubr.f32.gmra.mrb[0].mxu0 %v973
  %v975 = vpop.f32.mrb[0].mxu0
  %v976 = vadd.f32 %v701, %v975
  %v977 = vpop.f32.mrb[0].mxu0
  %978 = vmatprep.mubr.f32.mxu0 0.0
  %v979 = vand.u32 %v105, 4294901760
  %v980 = vsub.f32 %v105, %v979
  %981 = vmatmul.mubr.f32.gmra.mrb[0].mxu0 %v980
  %v982 = vpop.f32.mrb[0].mxu0
  %v983 = vadd.f32 %v707, %v982
  %v984 = vpop.f32.mrb[0].mxu0
  %985 = vmatprep.mubr.f32.mxu0 0.0
  %v986 = vand.u32 %v108, 4294901760
  %v987 = vsub.f32 %v108, %v986
  %988 = vmatmul.mubr.f32.gmra.mrb[0].mxu0 %v987
  %v989 = vpop.f32.mrb[0].mxu0
  %v990 = vadd.f32 %v713, %v989
  %v991 = vpop.f32.mrb[0].mxu0
  %992 = vmatprep.mubr.f32.mxu0 0.0
  %v993 = vand.u32 %v111, 4294901760
  %v994 = vsub.f32 %v111, %v993
  %995 = vmatmul.mubr.f32.gmra.mrb[0].mxu0 %v994
  %v996 = vpop.f32.mrb[0].mxu0
  %v997 = vadd.f32 %v719, %v996
  %v998 = vpop.f32.mrb[0].mxu0
  %999 = vmatprep.mubr.f32.mxu0 0.0
  %v1000 = vand.u32 %v114, 4294901760
  %v1001 = vsub.f32 %v114, %v1000
  %1002 = vmatmul.mubr.f32.gmra.mrb[0].mxu0 %v1001
  %v1003 = vpop.f32.mrb[0].mxu0
  %v1004 = vadd.f32 %v725, %v1003
  %v1005 = vpop.f32.mrb[0].mxu0
  %1006 = vmatprep.mubr.f32.mxu0 0.0
  %v1007 = vand.u32 %v117, 4294901760
  %v1008 = vsub.f32 %v117, %v1007
  %1009 = vmatmul.mubr.f32.gmra.mrb[0].mxu0 %v1008
  %v1010 = vpop.f32.mrb[0].mxu0
  %v1011 = vadd.f32 %v731, %v1010
  %v1012 = vpop.f32.mrb[0].mxu0
  %1013 = vmatprep.mubr.f32.mxu0 0.0
  %v1014 = vand.u32 %v120, 4294901760
  %v1015 = vsub.f32 %v120, %v1014
  %1016 = vmatmul.mubr.f32.gmra.mrb[0].mxu0 %v1015
  %v1017 = vpop.f32.mrb[0].mxu0
  %v1018 = vadd.f32 %v737, %v1017
  %v1019 = vpop.f32.mrb[0].mxu0
  %1020 = vmatprep.mubr.f32.mxu0 0.0
  %v1021 = vand.u32 %v123, 4294901760
  %v1022 = vsub.f32 %v123, %v1021
  %1023 = vmatmul.mubr.f32.gmra.mrb[0].mxu0 %v1022
  %v1024 = vpop.f32.mrb[0].mxu0
  %v1025 = vadd.f32 %v743, %v1024
  %v1026 = vpop.f32.mrb[0].mxu0
  %1027 = vmatprep.mubr.f32.mxu0 0.0
  %v1028 = vand.u32 %v126, 4294901760
  %v1029 = vsub.f32 %v126, %v1028
  %1030 = vmatmul.mubr.f32.gmra.mrb[0].mxu0 %v1029
  %v1031 = vpop.f32.mrb[0].mxu0
  %v1032 = vadd.f32 %v749, %v1031
  %v1033 = vpop.f32.mrb[0].mxu0
  %1034 = vmatprep.mubr.f32.mxu0 0.0
  %v1035 = vand.u32 %v129, 4294901760
  %v1036 = vsub.f32 %v129, %v1035
  %1037 = vmatmul.mubr.f32.gmra.mrb[0].mxu0 %v1036
  %v1038 = vpop.f32.mrb[0].mxu0
  %v1039 = vadd.f32 %v755, %v1038
  %v1040 = vpop.f32.mrb[0].mxu0
  %1041 = vmatprep.mubr.f32.mxu0 0.0
  %v1042 = vand.u32 %v132, 4294901760
  %v1043 = vsub.f32 %v132, %v1042
  %1044 = vmatmul.mubr.f32.gmra.mrb[0].mxu0 %v1043
  %v1045 = vpop.f32.mrb[0].mxu0
  %v1046 = vadd.f32 %v761, %v1045
  %v1047 = vpop.f32.mrb[0].mxu0
  %1048 = vmatprep.mubr.f32.mxu0 0.0
  %v1049 = vand.u32 %v135, 4294901760
  %v1050 = vsub.f32 %v135, %v1049
  %1051 = vmatmul.mubr.f32.gmra.mrb[0].mxu0 %v1050
  %v1052 = vpop.f32.mrb[0].mxu0
  %v1053 = vadd.f32 %v767, %v1052
  %v1054 = vpop.f32.mrb[0].mxu0
  %1055 = vmatprep.mubr.f32.mxu0 0.0
  %v1056 = vand.u32 %v138, 4294901760
  %v1057 = vsub.f32 %v138, %v1056
  %1058 = vmatmul.mubr.f32.gmra.mrb[0].mxu0 %v1057
  %v1059 = vpop.f32.mrb[0].mxu0
  %v1060 = vadd.f32 %v773, %v1059
  %v1061 = vpop.f32.mrb[0].mxu0
  %1062 = vmatprep.mubr.f32.mxu0 0.0
  %v1063 = vand.u32 %v141, 4294901760
  %v1064 = vsub.f32 %v141, %v1063
  %1065 = vmatmul.mubr.f32.gmra.mrb[0].mxu0 %v1064
  %v1066 = vpop.f32.mrb[0].mxu0
  %v1067 = vadd.f32 %v779, %v1066
  %v1068 = vpop.f32.mrb[0].mxu0
  %1069 = vmatprep.mubr.f32.mxu0 0.0
  %v1070 = vand.u32 %v144, 4294901760
  %v1071 = vsub.f32 %v144, %v1070
  %1072 = vmatmul.mubr.f32.gmra.mrb[0].mxu0 %v1071
  %v1073 = vpop.f32.mrb[0].mxu0
  %v1074 = vadd.f32 %v785, %v1073
  %v1075 = vpop.f32.mrb[0].mxu0
  %1076 = vmatprep.mubr.f32.mxu0 0.0
  %v1077 = vand.u32 %v147, 4294901760
  %v1078 = vsub.f32 %v147, %v1077
  %1079 = vmatmul.mubr.f32.gmra.mrb[0].mxu0 %v1078
  %v1080 = vpop.f32.mrb[0].mxu0
  %v1081 = vadd.f32 %v791, %v1080
  %v1082 = vpop.f32.mrb[0].mxu0
  %1083 = vmatprep.mubr.f32.mxu0 0.0
  %v1084 = vand.u32 %v150, 4294901760
  %v1085 = vsub.f32 %v150, %v1084
  %1086 = vmatmul.mubr.f32.gmra.mrb[0].mxu0 %v1085
  %v1087 = vpop.f32.mrb[0].mxu0
  %v1088 = vadd.f32 %v797, %v1087
  %v1089 = vpop.f32.mrb[0].mxu0
  %1090 = vmatprep.mubr.f32.mxu0 0.0
  %v1091 = vand.u32 %v153, 4294901760
  %v1092 = vsub.f32 %v153, %v1091
  %1093 = vmatmul.mubr.f32.gmra.mrb[0].mxu0 %v1092
  %v1094 = vpop.f32.mrb[0].mxu0
  %v1095 = vadd.f32 %v803, %v1094
  %v1096 = vpop.f32.mrb[0].mxu0
  %1097 = vmatprep.mubr.f32.mxu0 0.0
  %v1098 = vand.u32 %v156, 4294901760
  %v1099 = vsub.f32 %v156, %v1098
  %1100 = vmatmul.mubr.f32.gmra.mrb[0].mxu0 %v1099
  %v1101 = vpop.f32.mrb[0].mxu0
  %v1102 = vadd.f32 %v809, %v1101
  %v1103 = vpop.f32.mrb[0].mxu0
  %1104 = vdwg.mxu0
  %1105 = vmatprep.subr.mxu0 0.0
  %v1106 = vand.u32 %v55, 4294901760
  %1107 = vmatpush1.msra.mxu0 %v1106
  %1108 = vmatprep.subr.mxu0 0.0
  %v1109 = vand.u32 %v56, 4294901760
  %1110 = vmatpush1.msra.mxu0 %v1109
  %1111 = vmatprep.subr.mxu0 0.0
  %1112 = vmatpush1.msra.mxu0 0.0
  %1113 = vmatprep.subr.mxu0 0.0
  %1114 = vmatpush1.msra.mxu0 0.0
  %1115 = vmatprep.subr.mxu0 0.0
  %1116 = vmatpush1.msra.mxu0 0.0
  %1117 = vmatprep.subr.mxu0 0.0
  %1118 = vmatpush1.msra.mxu0 0.0
  %1119 = vmatprep.subr.mxu0 0.0
  %1120 = vmatpush1.msra.mxu0 0.0
  %1121 = vmatprep.subr.mxu0 0.0
  %1122 = vmatpush1.msra.mxu0 0.0
  %1123 = vmatprep.subr.mxu0 0.0
  %1124 = vmatpush1.msra.mxu0 0.0
  %1125 = vmatprep.subr.mxu0 0.0
  %1126 = vmatpush1.msra.mxu0 0.0
  %1127 = vmatprep.subr.mxu0 0.0
  %1128 = vmatpush1.msra.mxu0 0.0
  %1129 = vmatprep.subr.mxu0 0.0
  %1130 = vmatpush1.msra.mxu0 0.0
  %1131 = vmatprep.subr.mxu0 0.0
  %1132 = vmatpush1.msra.mxu0 0.0
  %1133 = vmatprep.subr.mxu0 0.0
  %1134 = vmatpush1.msra.mxu0 0.0
  %1135 = vmatprep.subr.mxu0 0.0
  %1136 = vmatpush1.msra.mxu0 0.0
  %1137 = vmatprep.subr.mxu0 0.0
  %1138 = vmatpush1.msra.mxu0 0.0
  %1139 = vmatprep.subr.mxu0 0.0
  %1140 = vmatpush1.msra.mxu0 0.0
  %1141 = vmatprep.subr.mxu0 0.0
  %1142 = vmatpush1.msra.mxu0 0.0
  %1143 = vmatprep.subr.mxu0 0.0
  %1144 = vmatpush1.msra.mxu0 0.0
  %1145 = vmatprep.subr.mxu0 0.0
  %1146 = vmatpush1.msra.mxu0 0.0
  %1147 = vmatprep.subr.mxu0 0.0
  %1148 = vmatpush1.msra.mxu0 0.0
  %1149 = vmatprep.subr.mxu0 0.0
  %1150 = vmatpush1.msra.mxu0 0.0
  %1151 = vmatprep.subr.mxu0 0.0
  %1152 = vmatpush1.msra.mxu0 0.0
  %1153 = vmatprep.subr.mxu0 0.0
  %1154 = vmatpush1.msra.mxu0 0.0
  %1155 = vmatprep.subr.mxu0 0.0
  %1156 = vmatpush1.msra.mxu0 0.0
  %1157 = vmatprep.subr.mxu0 0.0
  %1158 = vmatpush1.msra.mxu0 0.0
  %1159 = vmatprep.subr.mxu0 0.0
  %1160 = vmatpush1.msra.mxu0 0.0
  %1161 = vmatprep.subr.mxu0 0.0
  %1162 = vmatpush1.msra.mxu0 0.0
  %1163 = vmatprep.subr.mxu0 0.0
  %1164 = vmatpush1.msra.mxu0 0.0
  %1165 = vmatprep.subr.mxu0 0.0
  %1166 = vmatpush1.msra.mxu0 0.0
  %1167 = vmatprep.subr.mxu0 0.0
  %1168 = vmatpush1.msra.mxu0 0.0
  %1169 = vmatprep.subr.mxu0 0.0
  %1170 = vmatpush1.msra.mxu0 0.0
  %1171 = vmatprep.mubr.f32.mxu0 0.0
  %v1172 = vand.u32 %v63, 4294901760
  %v1173 = vsub.f32 %v63, %v1172
  %v1174 = vand.u32 %v1173, 4294901760
  %1175 = vmatmul.mubr.f32.gmra.mrb[0].mxu0 %v1174
  %v1176 = vpop.f32.mrb[0].mxu0
  %v1177 = vadd.f32 %v885, %v1176
  %v1178 = vpop.f32.mrb[0].mxu0
  %1179 = vmatprep.mubr.f32.mxu0 0.0
  %v1180 = vand.u32 %v66, 4294901760
  %v1181 = vsub.f32 %v66, %v1180
  %v1182 = vand.u32 %v1181, 4294901760
  %1183 = vmatmul.mubr.f32.gmra.mrb[0].mxu0 %v1182
  %v1184 = vpop.f32.mrb[0].mxu0
  %v1185 = vadd.f32 %v892, %v1184
  %v1186 = vpop.f32.mrb[0].mxu0
  %1187 = vmatprep.mubr.f32.mxu0 0.0
  %v1188 = vand.u32 %v69, 4294901760
  %v1189 = vsub.f32 %v69, %v1188
  %v1190 = vand.u32 %v1189, 4294901760
  %1191 = vmatmul.mubr.f32.gmra.mrb[0].mxu0 %v1190
  %v1192 = vpop.f32.mrb[0].mxu0
  %v1193 = vadd.f32 %v899, %v1192
  %v1194 = vpop.f32.mrb[0].mxu0
  %1195 = vmatprep.mubr.f32.mxu0 0.0
  %v1196 = vand.u32 %v72, 4294901760
  %v1197 = vsub.f32 %v72, %v1196
  %v1198 = vand.u32 %v1197, 4294901760
  %1199 = vmatmul.mubr.f32.gmra.mrb[0].mxu0 %v1198
  %v1200 = vpop.f32.mrb[0].mxu0
  %v1201 = vadd.f32 %v906, %v1200
  %v1202 = vpop.f32.mrb[0].mxu0
  %1203 = vmatprep.mubr.f32.mxu0 0.0
  %v1204 = vand.u32 %v75, 4294901760
  %v1205 = vsub.f32 %v75, %v1204
  %v1206 = vand.u32 %v1205, 4294901760
  %1207 = vmatmul.mubr.f32.gmra.mrb[0].mxu0 %v1206
  %v1208 = vpop.f32.mrb[0].mxu0
  %v1209 = vadd.f32 %v913, %v1208
  %v1210 = vpop.f32.mrb[0].mxu0
  %1211 = vmatprep.mubr.f32.mxu0 0.0
  %v1212 = vand.u32 %v78, 4294901760
  %v1213 = vsub.f32 %v78, %v1212
  %v1214 = vand.u32 %v1213, 4294901760
  %1215 = vmatmul.mubr.f32.gmra.mrb[0].mxu0 %v1214
  %v1216 = vpop.f32.mrb[0].mxu0
  %v1217 = vadd.f32 %v920, %v1216
  %v1218 = vpop.f32.mrb[0].mxu0
  %1219 = vmatprep.mubr.f32.mxu0 0.0
  %v1220 = vand.u32 %v81, 4294901760
  %v1221 = vsub.f32 %v81, %v1220
  %v1222 = vand.u32 %v1221, 4294901760
  %1223 = vmatmul.mubr.f32.gmra.mrb[0].mxu0 %v1222
  %v1224 = vpop.f32.mrb[0].mxu0
  %v1225 = vadd.f32 %v927, %v1224
  %v1226 = vpop.f32.mrb[0].mxu0
  %1227 = vmatprep.mubr.f32.mxu0 0.0
  %v1228 = vand.u32 %v84, 4294901760
  %v1229 = vsub.f32 %v84, %v1228
  %v1230 = vand.u32 %v1229, 4294901760
  %1231 = vmatmul.mubr.f32.gmra.mrb[0].mxu0 %v1230
  %v1232 = vpop.f32.mrb[0].mxu0
  %v1233 = vadd.f32 %v934, %v1232
  %v1234 = vpop.f32.mrb[0].mxu0
  %1235 = vmatprep.mubr.f32.mxu0 0.0
  %v1236 = vand.u32 %v87, 4294901760
  %v1237 = vsub.f32 %v87, %v1236
  %v1238 = vand.u32 %v1237, 4294901760
  %1239 = vmatmul.mubr.f32.gmra.mrb[0].mxu0 %v1238
  %v1240 = vpop.f32.mrb[0].mxu0
  %v1241 = vadd.f32 %v941, %v1240
  %v1242 = vpop.f32.mrb[0].mxu0
  %1243 = vmatprep.mubr.f32.mxu0 0.0
  %v1244 = vand.u32 %v90, 4294901760
  %v1245 = vsub.f32 %v90, %v1244
  %v1246 = vand.u32 %v1245, 4294901760
  %1247 = vmatmul.mubr.f32.gmra.mrb[0].mxu0 %v1246
  %v1248 = vpop.f32.mrb[0].mxu0
  %v1249 = vadd.f32 %v948, %v1248
  %v1250 = vpop.f32.mrb[0].mxu0
  %1251 = vmatprep.mubr.f32.mxu0 0.0
  %v1252 = vand.u32 %v93, 4294901760
  %v1253 = vsub.f32 %v93, %v1252
  %v1254 = vand.u32 %v1253, 4294901760
  %1255 = vmatmul.mubr.f32.gmra.mrb[0].mxu0 %v1254
  %v1256 = vpop.f32.mrb[0].mxu0
  %v1257 = vadd.f32 %v955, %v1256
  %v1258 = vpop.f32.mrb[0].mxu0
  %1259 = vmatprep.mubr.f32.mxu0 0.0
  %v1260 = vand.u32 %v96, 4294901760
  %v1261 = vsub.f32 %v96, %v1260
  %v1262 = vand.u32 %v1261, 4294901760
  %1263 = vmatmul.mubr.f32.gmra.mrb[0].mxu0 %v1262
  %v1264 = vpop.f32.mrb[0].mxu0
  %v1265 = vadd.f32 %v962, %v1264
  %v1266 = vpop.f32.mrb[0].mxu0
  %1267 = vmatprep.mubr.f32.mxu0 0.0
  %v1268 = vand.u32 %v99, 4294901760
  %v1269 = vsub.f32 %v99, %v1268
  %v1270 = vand.u32 %v1269, 4294901760
  %1271 = vmatmul.mubr.f32.gmra.mrb[0].mxu0 %v1270
  %v1272 = vpop.f32.mrb[0].mxu0
  %v1273 = vadd.f32 %v969, %v1272
  %v1274 = vpop.f32.mrb[0].mxu0
  %1275 = vmatprep.mubr.f32.mxu0 0.0
  %v1276 = vand.u32 %v102, 4294901760
  %v1277 = vsub.f32 %v102, %v1276
  %v1278 = vand.u32 %v1277, 4294901760
  %1279 = vmatmul.mubr.f32.gmra.mrb[0].mxu0 %v1278
  %v1280 = vpop.f32.mrb[0].mxu0
  %v1281 = vadd.f32 %v976, %v1280
  %v1282 = vpop.f32.mrb[0].mxu0
  %1283 = vmatprep.mubr.f32.mxu0 0.0
  %v1284 = vand.u32 %v105, 4294901760
  %v1285 = vsub.f32 %v105, %v1284
  %v1286 = vand.u32 %v1285, 4294901760
  %1287 = vmatmul.mubr.f32.gmra.mrb[0].mxu0 %v1286
  %v1288 = vpop.f32.mrb[0].mxu0
  %v1289 = vadd.f32 %v983, %v1288
  %v1290 = vpop.f32.mrb[0].mxu0
  %1291 = vmatprep.mubr.f32.mxu0 0.0
  %v1292 = vand.u32 %v108, 4294901760
  %v1293 = vsub.f32 %v108, %v1292
  %v1294 = vand.u32 %v1293, 4294901760
  %1295 = vmatmul.mubr.f32.gmra.mrb[0].mxu0 %v1294
  %v1296 = vpop.f32.mrb[0].mxu0
  %v1297 = vadd.f32 %v990, %v1296
  %v1298 = vpop.f32.mrb[0].mxu0
  %1299 = vmatprep.mubr.f32.mxu0 0.0
  %v1300 = vand.u32 %v111, 4294901760
  %v1301 = vsub.f32 %v111, %v1300
  %v1302 = vand.u32 %v1301, 4294901760
  %1303 = vmatmul.mubr.f32.gmra.mrb[0].mxu0 %v1302
  %v1304 = vpop.f32.mrb[0].mxu0
  %v1305 = vadd.f32 %v997, %v1304
  %v1306 = vpop.f32.mrb[0].mxu0
  %1307 = vmatprep.mubr.f32.mxu0 0.0
  %v1308 = vand.u32 %v114, 4294901760
  %v1309 = vsub.f32 %v114, %v1308
  %v1310 = vand.u32 %v1309, 4294901760
  %1311 = vmatmul.mubr.f32.gmra.mrb[0].mxu0 %v1310
  %v1312 = vpop.f32.mrb[0].mxu0
  %v1313 = vadd.f32 %v1004, %v1312
  %v1314 = vpop.f32.mrb[0].mxu0
  %1315 = vmatprep.mubr.f32.mxu0 0.0
  %v1316 = vand.u32 %v117, 4294901760
  %v1317 = vsub.f32 %v117, %v1316
  %v1318 = vand.u32 %v1317, 4294901760
  %1319 = vmatmul.mubr.f32.gmra.mrb[0].mxu0 %v1318
  %v1320 = vpop.f32.mrb[0].mxu0
  %v1321 = vadd.f32 %v1011, %v1320
  %v1322 = vpop.f32.mrb[0].mxu0
  %1323 = vmatprep.mubr.f32.mxu0 0.0
  %v1324 = vand.u32 %v120, 4294901760
  %v1325 = vsub.f32 %v120, %v1324
  %v1326 = vand.u32 %v1325, 4294901760
  %1327 = vmatmul.mubr.f32.gmra.mrb[0].mxu0 %v1326
  %v1328 = vpop.f32.mrb[0].mxu0
  %v1329 = vadd.f32 %v1018, %v1328
  %v1330 = vpop.f32.mrb[0].mxu0
  %1331 = vmatprep.mubr.f32.mxu0 0.0
  %v1332 = vand.u32 %v123, 4294901760
  %v1333 = vsub.f32 %v123, %v1332
  %v1334 = vand.u32 %v1333, 4294901760
  %1335 = vmatmul.mubr.f32.gmra.mrb[0].mxu0 %v1334
  %v1336 = vpop.f32.mrb[0].mxu0
  %v1337 = vadd.f32 %v1025, %v1336
  %v1338 = vpop.f32.mrb[0].mxu0
  %1339 = vmatprep.mubr.f32.mxu0 0.0
  %v1340 = vand.u32 %v126, 4294901760
  %v1341 = vsub.f32 %v126, %v1340
  %v1342 = vand.u32 %v1341, 4294901760
  %1343 = vmatmul.mubr.f32.gmra.mrb[0].mxu0 %v1342
  %v1344 = vpop.f32.mrb[0].mxu0
  %v1345 = vadd.f32 %v1032, %v1344
  %v1346 = vpop.f32.mrb[0].mxu0
  %1347 = vmatprep.mubr.f32.mxu0 0.0
  %v1348 = vand.u32 %v129, 4294901760
  %v1349 = vsub.f32 %v129, %v1348
  %v1350 = vand.u32 %v1349, 4294901760
  %1351 = vmatmul.mubr.f32.gmra.mrb[0].mxu0 %v1350
  %v1352 = vpop.f32.mrb[0].mxu0
  %v1353 = vadd.f32 %v1039, %v1352
  %v1354 = vpop.f32.mrb[0].mxu0
  %1355 = vmatprep.mubr.f32.mxu0 0.0
  %v1356 = vand.u32 %v132, 4294901760
  %v1357 = vsub.f32 %v132, %v1356
  %v1358 = vand.u32 %v1357, 4294901760
  %1359 = vmatmul.mubr.f32.gmra.mrb[0].mxu0 %v1358
  %v1360 = vpop.f32.mrb[0].mxu0
  %v1361 = vadd.f32 %v1046, %v1360
  %v1362 = vpop.f32.mrb[0].mxu0
  %1363 = vmatprep.mubr.f32.mxu0 0.0
  %v1364 = vand.u32 %v135, 4294901760
  %v1365 = vsub.f32 %v135, %v1364
  %v1366 = vand.u32 %v1365, 4294901760
  %1367 = vmatmul.mubr.f32.gmra.mrb[0].mxu0 %v1366
  %v1368 = vpop.f32.mrb[0].mxu0
  %v1369 = vadd.f32 %v1053, %v1368
  %v1370 = vpop.f32.mrb[0].mxu0
  %1371 = vmatprep.mubr.f32.mxu0 0.0
  %v1372 = vand.u32 %v138, 4294901760
  %v1373 = vsub.f32 %v138, %v1372
  %v1374 = vand.u32 %v1373, 4294901760
  %1375 = vmatmul.mubr.f32.gmra.mrb[0].mxu0 %v1374
  %v1376 = vpop.f32.mrb[0].mxu0
  %v1377 = vadd.f32 %v1060, %v1376
  %v1378 = vpop.f32.mrb[0].mxu0
  %1379 = vmatprep.mubr.f32.mxu0 0.0
  %v1380 = vand.u32 %v141, 4294901760
  %v1381 = vsub.f32 %v141, %v1380
  %v1382 = vand.u32 %v1381, 4294901760
  %1383 = vmatmul.mubr.f32.gmra.mrb[0].mxu0 %v1382
  %v1384 = vpop.f32.mrb[0].mxu0
  %v1385 = vadd.f32 %v1067, %v1384
  %v1386 = vpop.f32.mrb[0].mxu0
  %1387 = vmatprep.mubr.f32.mxu0 0.0
  %v1388 = vand.u32 %v144, 4294901760
  %v1389 = vsub.f32 %v144, %v1388
  %v1390 = vand.u32 %v1389, 4294901760
  %1391 = vmatmul.mubr.f32.gmra.mrb[0].mxu0 %v1390
  %v1392 = vpop.f32.mrb[0].mxu0
  %v1393 = vadd.f32 %v1074, %v1392
  %v1394 = vpop.f32.mrb[0].mxu0
  %1395 = vmatprep.mubr.f32.mxu0 0.0
  %v1396 = vand.u32 %v147, 4294901760
  %v1397 = vsub.f32 %v147, %v1396
  %v1398 = vand.u32 %v1397, 4294901760
  %1399 = vmatmul.mubr.f32.gmra.mrb[0].mxu0 %v1398
  %v1400 = vpop.f32.mrb[0].mxu0
  %v1401 = vadd.f32 %v1081, %v1400
  %v1402 = vpop.f32.mrb[0].mxu0
  %1403 = vmatprep.mubr.f32.mxu0 0.0
  %v1404 = vand.u32 %v150, 4294901760
  %v1405 = vsub.f32 %v150, %v1404
  %v1406 = vand.u32 %v1405, 4294901760
  %1407 = vmatmul.mubr.f32.gmra.mrb[0].mxu0 %v1406
  %v1408 = vpop.f32.mrb[0].mxu0
  %v1409 = vadd.f32 %v1088, %v1408
  %v1410 = vpop.f32.mrb[0].mxu0
  %1411 = vmatprep.mubr.f32.mxu0 0.0
  %v1412 = vand.u32 %v153, 4294901760
  %v1413 = vsub.f32 %v153, %v1412
  %v1414 = vand.u32 %v1413, 4294901760
  %1415 = vmatmul.mubr.f32.gmra.mrb[0].mxu0 %v1414
  %v1416 = vpop.f32.mrb[0].mxu0
  %v1417 = vadd.f32 %v1095, %v1416
  %v1418 = vpop.f32.mrb[0].mxu0
  %1419 = vmatprep.mubr.f32.mxu0 0.0
  %v1420 = vand.u32 %v156, 4294901760
  %v1421 = vsub.f32 %v156, %v1420
  %v1422 = vand.u32 %v1421, 4294901760
  %1423 = vmatmul.mubr.f32.gmra.mrb[0].mxu0 %v1422
  %v1424 = vpop.f32.mrb[0].mxu0
  %v1425 = vadd.f32 %v1102, %v1424
  %v1426 = vpop.f32.mrb[0].mxu0
  %1427 = vdwg.mxu0
  %1428 = vmatprep.subr.mxu0 0.0
  %v1429 = vand.u32 %v55, 4294901760
  %v1430 = vsub.f32 %v55, %v1429
  %v1431 = vand.u32 %v1430, 4294901760
  %1432 = vmatpush1.msra.mxu0 %v1431
  %1433 = vmatprep.subr.mxu0 0.0
  %v1434 = vand.u32 %v56, 4294901760
  %v1435 = vsub.f32 %v56, %v1434
  %v1436 = vand.u32 %v1435, 4294901760
  %1437 = vmatpush1.msra.mxu0 %v1436
  %1438 = vmatprep.subr.mxu0 0.0
  %1439 = vmatpush1.msra.mxu0 0.0
  %1440 = vmatprep.subr.mxu0 0.0
  %1441 = vmatpush1.msra.mxu0 0.0
  %1442 = vmatprep.subr.mxu0 0.0
  %1443 = vmatpush1.msra.mxu0 0.0
  %1444 = vmatprep.subr.mxu0 0.0
  %1445 = vmatpush1.msra.mxu0 0.0
  %1446 = vmatprep.subr.mxu0 0.0
  %1447 = vmatpush1.msra.mxu0 0.0
  %1448 = vmatprep.subr.mxu0 0.0
  %1449 = vmatpush1.msra.mxu0 0.0
  %1450 = vmatprep.subr.mxu0 0.0
  %1451 = vmatpush1.msra.mxu0 0.0
  %1452 = vmatprep.subr.mxu0 0.0
  %1453 = vmatpush1.msra.mxu0 0.0
  %1454 = vmatprep.subr.mxu0 0.0
  %1455 = vmatpush1.msra.mxu0 0.0
  %1456 = vmatprep.subr.mxu0 0.0
  %1457 = vmatpush1.msra.mxu0 0.0
  %1458 = vmatprep.subr.mxu0 0.0
  %1459 = vmatpush1.msra.mxu0 0.0
  %1460 = vmatprep.subr.mxu0 0.0
  %1461 = vmatpush1.msra.mxu0 0.0
  %1462 = vmatprep.subr.mxu0 0.0
  %1463 = vmatpush1.msra.mxu0 0.0
  %1464 = vmatprep.subr.mxu0 0.0
  %1465 = vmatpush1.msra.mxu0 0.0
  %1466 = vmatprep.subr.mxu0 0.0
  %1467 = vmatpush1.msra.mxu0 0.0
  %1468 = vmatprep.subr.mxu0 0.0
  %1469 = vmatpush1.msra.mxu0 0.0
  %1470 = vmatprep.subr.mxu0 0.0
  %1471 = vmatpush1.msra.mxu0 0.0
  %1472 = vmatprep.subr.mxu0 0.0
  %1473 = vmatpush1.msra.mxu0 0.0
  %1474 = vmatprep.subr.mxu0 0.0
  %1475 = vmatpush1.msra.mxu0 0.0
  %1476 = vmatprep.subr.mxu0 0.0
  %1477 = vmatpush1.msra.mxu0 0.0
  %1478 = vmatprep.subr.mxu0 0.0
  %1479 = vmatpush1.msra.mxu0 0.0
  %1480 = vmatprep.subr.mxu0 0.0
  %1481 = vmatpush1.msra.mxu0 0.0
  %1482 = vmatprep.subr.mxu0 0.0
  %1483 = vmatpush1.msra.mxu0 0.0
  %1484 = vmatprep.subr.mxu0 0.0
  %1485 = vmatpush1.msra.mxu0 0.0
  %1486 = vmatprep.subr.mxu0 0.0
  %1487 = vmatpush1.msra.mxu0 0.0
  %1488 = vmatprep.subr.mxu0 0.0
  %1489 = vmatpush1.msra.mxu0 0.0
  %1490 = vmatprep.subr.mxu0 0.0
  %1491 = vmatpush1.msra.mxu0 0.0
  %1492 = vmatprep.subr.mxu0 0.0
  %1493 = vmatpush1.msra.mxu0 0.0
  %1494 = vmatprep.subr.mxu0 0.0
  %1495 = vmatpush1.msra.mxu0 0.0
  %1496 = vmatprep.subr.mxu0 0.0
  %1497 = vmatpush1.msra.mxu0 0.0
  %1498 = vmatprep.mubr.f32.mxu0 0.0
  %v1499 = vand.u32 %v63, 4294901760
  %1500 = vmatmul.mubr.f32.gmra.mrb[0].mxu0 %v1499
  %v1501 = vpop.f32.mrb[0].mxu0
  %v1502 = vadd.f32 %v1177, %v1501
  %v1503 = vpop.f32.mrb[0].mxu0
  %1504 = vmatprep.mubr.f32.mxu0 0.0
  %v1505 = vand.u32 %v66, 4294901760
  %1506 = vmatmul.mubr.f32.gmra.mrb[0].mxu0 %v1505
  %v1507 = vpop.f32.mrb[0].mxu0
  %v1508 = vadd.f32 %v1185, %v1507
  %v1509 = vpop.f32.mrb[0].mxu0
  %1510 = vmatprep.mubr.f32.mxu0 0.0
  %v1511 = vand.u32 %v69, 4294901760
  %1512 = vmatmul.mubr.f32.gmra.mrb[0].mxu0 %v1511
  %v1513 = vpop.f32.mrb[0].mxu0
  %v1514 = vadd.f32 %v1193, %v1513
  %v1515 = vpop.f32.mrb[0].mxu0
  %1516 = vmatprep.mubr.f32.mxu0 0.0
  %v1517 = vand.u32 %v72, 4294901760
  %1518 = vmatmul.mubr.f32.gmra.mrb[0].mxu0 %v1517
  %v1519 = vpop.f32.mrb[0].mxu0
  %v1520 = vadd.f32 %v1201, %v1519
  %v1521 = vpop.f32.mrb[0].mxu0
  %1522 = vmatprep.mubr.f32.mxu0 0.0
  %v1523 = vand.u32 %v75, 4294901760
  %1524 = vmatmul.mubr.f32.gmra.mrb[0].mxu0 %v1523
  %v1525 = vpop.f32.mrb[0].mxu0
  %v1526 = vadd.f32 %v1209, %v1525
  %v1527 = vpop.f32.mrb[0].mxu0
  %1528 = vmatprep.mubr.f32.mxu0 0.0
  %v1529 = vand.u32 %v78, 4294901760
  %1530 = vmatmul.mubr.f32.gmra.mrb[0].mxu0 %v1529
  %v1531 = vpop.f32.mrb[0].mxu0
  %v1532 = vadd.f32 %v1217, %v1531
  %v1533 = vpop.f32.mrb[0].mxu0
  %1534 = vmatprep.mubr.f32.mxu0 0.0
  %v1535 = vand.u32 %v81, 4294901760
  %1536 = vmatmul.mubr.f32.gmra.mrb[0].mxu0 %v1535
  %v1537 = vpop.f32.mrb[0].mxu0
  %v1538 = vadd.f32 %v1225, %v1537
  %v1539 = vpop.f32.mrb[0].mxu0
  %1540 = vmatprep.mubr.f32.mxu0 0.0
  %v1541 = vand.u32 %v84, 4294901760
  %1542 = vmatmul.mubr.f32.gmra.mrb[0].mxu0 %v1541
  %v1543 = vpop.f32.mrb[0].mxu0
  %v1544 = vadd.f32 %v1233, %v1543
  %v1545 = vpop.f32.mrb[0].mxu0
  %1546 = vmatprep.mubr.f32.mxu0 0.0
  %v1547 = vand.u32 %v87, 4294901760
  %1548 = vmatmul.mubr.f32.gmra.mrb[0].mxu0 %v1547
  %v1549 = vpop.f32.mrb[0].mxu0
  %v1550 = vadd.f32 %v1241, %v1549
  %v1551 = vpop.f32.mrb[0].mxu0
  %1552 = vmatprep.mubr.f32.mxu0 0.0
  %v1553 = vand.u32 %v90, 4294901760
  %1554 = vmatmul.mubr.f32.gmra.mrb[0].mxu0 %v1553
  %v1555 = vpop.f32.mrb[0].mxu0
  %v1556 = vadd.f32 %v1249, %v1555
  %v1557 = vpop.f32.mrb[0].mxu0
  %1558 = vmatprep.mubr.f32.mxu0 0.0
  %v1559 = vand.u32 %v93, 4294901760
  %1560 = vmatmul.mubr.f32.gmra.mrb[0].mxu0 %v1559
  %v1561 = vpop.f32.mrb[0].mxu0
  %v1562 = vadd.f32 %v1257, %v1561
  %v1563 = vpop.f32.mrb[0].mxu0
  %1564 = vmatprep.mubr.f32.mxu0 0.0
  %v1565 = vand.u32 %v96, 4294901760
  %1566 = vmatmul.mubr.f32.gmra.mrb[0].mxu0 %v1565
  %v1567 = vpop.f32.mrb[0].mxu0
  %v1568 = vadd.f32 %v1265, %v1567
  %v1569 = vpop.f32.mrb[0].mxu0
  %1570 = vmatprep.mubr.f32.mxu0 0.0
  %v1571 = vand.u32 %v99, 4294901760
  %1572 = vmatmul.mubr.f32.gmra.mrb[0].mxu0 %v1571
  %v1573 = vpop.f32.mrb[0].mxu0
  %v1574 = vadd.f32 %v1273, %v1573
  %v1575 = vpop.f32.mrb[0].mxu0
  %1576 = vmatprep.mubr.f32.mxu0 0.0
  %v1577 = vand.u32 %v102, 4294901760
  %1578 = vmatmul.mubr.f32.gmra.mrb[0].mxu0 %v1577
  %v1579 = vpop.f32.mrb[0].mxu0
  %v1580 = vadd.f32 %v1281, %v1579
  %v1581 = vpop.f32.mrb[0].mxu0
  %1582 = vmatprep.mubr.f32.mxu0 0.0
  %v1583 = vand.u32 %v105, 4294901760
  %1584 = vmatmul.mubr.f32.gmra.mrb[0].mxu0 %v1583
  %v1585 = vpop.f32.mrb[0].mxu0
  %v1586 = vadd.f32 %v1289, %v1585
  %v1587 = vpop.f32.mrb[0].mxu0
  %1588 = vmatprep.mubr.f32.mxu0 0.0
  %v1589 = vand.u32 %v108, 4294901760
  %1590 = vmatmul.mubr.f32.gmra.mrb[0].mxu0 %v1589
  %v1591 = vpop.f32.mrb[0].mxu0
  %v1592 = vadd.f32 %v1297, %v1591
  %v1593 = vpop.f32.mrb[0].mxu0
  %1594 = vmatprep.mubr.f32.mxu0 0.0
  %v1595 = vand.u32 %v111, 4294901760
  %1596 = vmatmul.mubr.f32.gmra.mrb[0].mxu0 %v1595
  %v1597 = vpop.f32.mrb[0].mxu0
  %v1598 = vadd.f32 %v1305, %v1597
  %v1599 = vpop.f32.mrb[0].mxu0
  %1600 = vmatprep.mubr.f32.mxu0 0.0
  %v1601 = vand.u32 %v114, 4294901760
  %1602 = vmatmul.mubr.f32.gmra.mrb[0].mxu0 %v1601
  %v1603 = vpop.f32.mrb[0].mxu0
  %v1604 = vadd.f32 %v1313, %v1603
  %v1605 = vpop.f32.mrb[0].mxu0
  %1606 = vmatprep.mubr.f32.mxu0 0.0
  %v1607 = vand.u32 %v117, 4294901760
  %1608 = vmatmul.mubr.f32.gmra.mrb[0].mxu0 %v1607
  %v1609 = vpop.f32.mrb[0].mxu0
  %v1610 = vadd.f32 %v1321, %v1609
  %v1611 = vpop.f32.mrb[0].mxu0
  %1612 = vmatprep.mubr.f32.mxu0 0.0
  %v1613 = vand.u32 %v120, 4294901760
  %1614 = vmatmul.mubr.f32.gmra.mrb[0].mxu0 %v1613
  %v1615 = vpop.f32.mrb[0].mxu0
  %v1616 = vadd.f32 %v1329, %v1615
  %v1617 = vpop.f32.mrb[0].mxu0
  %1618 = vmatprep.mubr.f32.mxu0 0.0
  %v1619 = vand.u32 %v123, 4294901760
  %1620 = vmatmul.mubr.f32.gmra.mrb[0].mxu0 %v1619
  %v1621 = vpop.f32.mrb[0].mxu0
  %v1622 = vadd.f32 %v1337, %v1621
  %v1623 = vpop.f32.mrb[0].mxu0
  %1624 = vmatprep.mubr.f32.mxu0 0.0
  %v1625 = vand.u32 %v126, 4294901760
  %1626 = vmatmul.mubr.f32.gmra.mrb[0].mxu0 %v1625
  %v1627 = vpop.f32.mrb[0].mxu0
  %v1628 = vadd.f32 %v1345, %v1627
  %v1629 = vpop.f32.mrb[0].mxu0
  %1630 = vmatprep.mubr.f32.mxu0 0.0
  %v1631 = vand.u32 %v129, 4294901760
  %1632 = vmatmul.mubr.f32.gmra.mrb[0].mxu0 %v1631
  %v1633 = vpop.f32.mrb[0].mxu0
  %v1634 = vadd.f32 %v1353, %v1633
  %v1635 = vpop.f32.mrb[0].mxu0
  %1636 = vmatprep.mubr.f32.mxu0 0.0
  %v1637 = vand.u32 %v132, 4294901760
  %1638 = vmatmul.mubr.f32.gmra.mrb[0].mxu0 %v1637
  %v1639 = vpop.f32.mrb[0].mxu0
  %v1640 = vadd.f32 %v1361, %v1639
  %v1641 = vpop.f32.mrb[0].mxu0
  %1642 = vmatprep.mubr.f32.mxu0 0.0
  %v1643 = vand.u32 %v135, 4294901760
  %1644 = vmatmul.mubr.f32.gmra.mrb[0].mxu0 %v1643
  %v1645 = vpop.f32.mrb[0].mxu0
  %v1646 = vadd.f32 %v1369, %v1645
  %v1647 = vpop.f32.mrb[0].mxu0
  %1648 = vmatprep.mubr.f32.mxu0 0.0
  %v1649 = vand.u32 %v138, 4294901760
  %1650 = vmatmul.mubr.f32.gmra.mrb[0].mxu0 %v1649
  %v1651 = vpop.f32.mrb[0].mxu0
  %v1652 = vadd.f32 %v1377, %v1651
  %v1653 = vpop.f32.mrb[0].mxu0
  %1654 = vmatprep.mubr.f32.mxu0 0.0
  %v1655 = vand.u32 %v141, 4294901760
  %1656 = vmatmul.mubr.f32.gmra.mrb[0].mxu0 %v1655
  %v1657 = vpop.f32.mrb[0].mxu0
  %v1658 = vadd.f32 %v1385, %v1657
  %v1659 = vpop.f32.mrb[0].mxu0
  %1660 = vmatprep.mubr.f32.mxu0 0.0
  %v1661 = vand.u32 %v144, 4294901760
  %1662 = vmatmul.mubr.f32.gmra.mrb[0].mxu0 %v1661
  %v1663 = vpop.f32.mrb[0].mxu0
  %v1664 = vadd.f32 %v1393, %v1663
  %v1665 = vpop.f32.mrb[0].mxu0
  %1666 = vmatprep.mubr.f32.mxu0 0.0
  %v1667 = vand.u32 %v147, 4294901760
  %1668 = vmatmul.mubr.f32.gmra.mrb[0].mxu0 %v1667
  %v1669 = vpop.f32.mrb[0].mxu0
  %v1670 = vadd.f32 %v1401, %v1669
  %v1671 = vpop.f32.mrb[0].mxu0
  %1672 = vmatprep.mubr.f32.mxu0 0.0
  %v1673 = vand.u32 %v150, 4294901760
  %1674 = vmatmul.mubr.f32.gmra.mrb[0].mxu0 %v1673
  %v1675 = vpop.f32.mrb[0].mxu0
  %v1676 = vadd.f32 %v1409, %v1675
  %v1677 = vpop.f32.mrb[0].mxu0
  %1678 = vmatprep.mubr.f32.mxu0 0.0
  %v1679 = vand.u32 %v153, 4294901760
  %1680 = vmatmul.mubr.f32.gmra.mrb[0].mxu0 %v1679
  %v1681 = vpop.f32.mrb[0].mxu0
  %v1682 = vadd.f32 %v1417, %v1681
  %v1683 = vpop.f32.mrb[0].mxu0
  %1684 = vmatprep.mubr.f32.mxu0 0.0
  %v1685 = vand.u32 %v156, 4294901760
  %1686 = vmatmul.mubr.f32.gmra.mrb[0].mxu0 %v1685
  %v1687 = vpop.f32.mrb[0].mxu0
  %v1688 = vadd.f32 %v1425, %v1687
  %v1689 = vpop.f32.mrb[0].mxu0
  %1690 = vdwg.mxu0
  %1691 = vmatprep.subr.mxu0 0.0
  %v1692 = vand.u32 %v55, 4294901760
  %1693 = vmatpush1.msra.mxu0 %v1692
  %1694 = vmatprep.subr.mxu0 0.0
  %v1695 = vand.u32 %v56, 4294901760
  %1696 = vmatpush1.msra.mxu0 %v1695
  %1697 = vmatprep.subr.mxu0 0.0
  %1698 = vmatpush1.msra.mxu0 0.0
  %1699 = vmatprep.subr.mxu0 0.0
  %1700 = vmatpush1.msra.mxu0 0.0
  %1701 = vmatprep.subr.mxu0 0.0
  %1702 = vmatpush1.msra.mxu0 0.0
  %1703 = vmatprep.subr.mxu0 0.0
  %1704 = vmatpush1.msra.mxu0 0.0
  %1705 = vmatprep.subr.mxu0 0.0
  %1706 = vmatpush1.msra.mxu0 0.0
  %1707 = vmatprep.subr.mxu0 0.0
  %1708 = vmatpush1.msra.mxu0 0.0
  %1709 = vmatprep.subr.mxu0 0.0
  %1710 = vmatpush1.msra.mxu0 0.0
  %1711 = vmatprep.subr.mxu0 0.0
  %1712 = vmatpush1.msra.mxu0 0.0
  %1713 = vmatprep.subr.mxu0 0.0
  %1714 = vmatpush1.msra.mxu0 0.0
  %1715 = vmatprep.subr.mxu0 0.0
  %1716 = vmatpush1.msra.mxu0 0.0
  %1717 = vmatprep.subr.mxu0 0.0
  %1718 = vmatpush1.msra.mxu0 0.0
  %1719 = vmatprep.subr.mxu0 0.0
  %1720 = vmatpush1.msra.mxu0 0.0
  %1721 = vmatprep.subr.mxu0 0.0
  %1722 = vmatpush1.msra.mxu0 0.0
  %1723 = vmatprep.subr.mxu0 0.0
  %1724 = vmatpush1.msra.mxu0 0.0
  %1725 = vmatprep.subr.mxu0 0.0
  %1726 = vmatpush1.msra.mxu0 0.0
  %1727 = vmatprep.subr.mxu0 0.0
  %1728 = vmatpush1.msra.mxu0 0.0
  %1729 = vmatprep.subr.mxu0 0.0
  %1730 = vmatpush1.msra.mxu0 0.0
  %1731 = vmatprep.subr.mxu0 0.0
  %1732 = vmatpush1.msra.mxu0 0.0
  %1733 = vmatprep.subr.mxu0 0.0
  %1734 = vmatpush1.msra.mxu0 0.0
  %1735 = vmatprep.subr.mxu0 0.0
  %1736 = vmatpush1.msra.mxu0 0.0
  %1737 = vmatprep.subr.mxu0 0.0
  %1738 = vmatpush1.msra.mxu0 0.0
  %1739 = vmatprep.subr.mxu0 0.0
  %1740 = vmatpush1.msra.mxu0 0.0
  %1741 = vmatprep.subr.mxu0 0.0
  %1742 = vmatpush1.msra.mxu0 0.0
  %1743 = vmatprep.subr.mxu0 0.0
  %1744 = vmatpush1.msra.mxu0 0.0
  %1745 = vmatprep.subr.mxu0 0.0
  %1746 = vmatpush1.msra.mxu0 0.0
  %1747 = vmatprep.subr.mxu0 0.0
  %1748 = vmatpush1.msra.mxu0 0.0
  %1749 = vmatprep.subr.mxu0 0.0
  %1750 = vmatpush1.msra.mxu0 0.0
  %1751 = vmatprep.subr.mxu0 0.0
  %1752 = vmatpush1.msra.mxu0 0.0
  %1753 = vmatprep.subr.mxu0 0.0
  %1754 = vmatpush1.msra.mxu0 0.0
  %1755 = vmatprep.subr.mxu0 0.0
  %1756 = vmatpush1.msra.mxu0 0.0
  %1757 = vmatprep.mubr.f32.mxu0 0.0
  %v1758 = vand.u32 %v63, 4294901760
  %1759 = vmatmul.mubr.f32.gmra.mrb[0].mxu0 %v1758
  %v1760 = vpop.f32.mrb[0].mxu0
  %v1761 = vadd.f32 %v1502, %v1760
  %v1762 = vpop.f32.mrb[0].mxu0
  %1763 = vmatprep.mubr.f32.mxu0 0.0
  %v1764 = vand.u32 %v66, 4294901760
  %1765 = vmatmul.mubr.f32.gmra.mrb[0].mxu0 %v1764
  %v1766 = vpop.f32.mrb[0].mxu0
  %v1767 = vadd.f32 %v1508, %v1766
  %v1768 = vpop.f32.mrb[0].mxu0
  %1769 = vmatprep.mubr.f32.mxu0 0.0
  %v1770 = vand.u32 %v69, 4294901760
  %1771 = vmatmul.mubr.f32.gmra.mrb[0].mxu0 %v1770
  %v1772 = vpop.f32.mrb[0].mxu0
  %v1773 = vadd.f32 %v1514, %v1772
  %v1774 = vpop.f32.mrb[0].mxu0
  %1775 = vmatprep.mubr.f32.mxu0 0.0
  %v1776 = vand.u32 %v72, 4294901760
  %1777 = vmatmul.mubr.f32.gmra.mrb[0].mxu0 %v1776
  %v1778 = vpop.f32.mrb[0].mxu0
  %v1779 = vadd.f32 %v1520, %v1778
  %v1780 = vpop.f32.mrb[0].mxu0
  %1781 = vmatprep.mubr.f32.mxu0 0.0
  %v1782 = vand.u32 %v75, 4294901760
  %1783 = vmatmul.mubr.f32.gmra.mrb[0].mxu0 %v1782
  %v1784 = vpop.f32.mrb[0].mxu0
  %v1785 = vadd.f32 %v1526, %v1784
  %v1786 = vpop.f32.mrb[0].mxu0
  %1787 = vmatprep.mubr.f32.mxu0 0.0
  %v1788 = vand.u32 %v78, 4294901760
  %1789 = vmatmul.mubr.f32.gmra.mrb[0].mxu0 %v1788
  %v1790 = vpop.f32.mrb[0].mxu0
  %v1791 = vadd.f32 %v1532, %v1790
  %v1792 = vpop.f32.mrb[0].mxu0
  %1793 = vmatprep.mubr.f32.mxu0 0.0
  %v1794 = vand.u32 %v81, 4294901760
  %1795 = vmatmul.mubr.f32.gmra.mrb[0].mxu0 %v1794
  %v1796 = vpop.f32.mrb[0].mxu0
  %v1797 = vadd.f32 %v1538, %v1796
  %v1798 = vpop.f32.mrb[0].mxu0
  %1799 = vmatprep.mubr.f32.mxu0 0.0
  %v1800 = vand.u32 %v84, 4294901760
  %1801 = vmatmul.mubr.f32.gmra.mrb[0].mxu0 %v1800
  %v1802 = vpop.f32.mrb[0].mxu0
  %v1803 = vadd.f32 %v1544, %v1802
  %v1804 = vpop.f32.mrb[0].mxu0
  %1805 = vmatprep.mubr.f32.mxu0 0.0
  %v1806 = vand.u32 %v87, 4294901760
  %1807 = vmatmul.mubr.f32.gmra.mrb[0].mxu0 %v1806
  %v1808 = vpop.f32.mrb[0].mxu0
  %v1809 = vadd.f32 %v1550, %v1808
  %v1810 = vpop.f32.mrb[0].mxu0
  %1811 = vmatprep.mubr.f32.mxu0 0.0
  %v1812 = vand.u32 %v90, 4294901760
  %1813 = vmatmul.mubr.f32.gmra.mrb[0].mxu0 %v1812
  %v1814 = vpop.f32.mrb[0].mxu0
  %v1815 = vadd.f32 %v1556, %v1814
  %v1816 = vpop.f32.mrb[0].mxu0
  %1817 = vmatprep.mubr.f32.mxu0 0.0
  %v1818 = vand.u32 %v93, 4294901760
  %1819 = vmatmul.mubr.f32.gmra.mrb[0].mxu0 %v1818
  %v1820 = vpop.f32.mrb[0].mxu0
  %v1821 = vadd.f32 %v1562, %v1820
  %v1822 = vpop.f32.mrb[0].mxu0
  %1823 = vmatprep.mubr.f32.mxu0 0.0
  %v1824 = vand.u32 %v96, 4294901760
  %1825 = vmatmul.mubr.f32.gmra.mrb[0].mxu0 %v1824
  %v1826 = vpop.f32.mrb[0].mxu0
  %v1827 = vadd.f32 %v1568, %v1826
  %v1828 = vpop.f32.mrb[0].mxu0
  %1829 = vmatprep.mubr.f32.mxu0 0.0
  %v1830 = vand.u32 %v99, 4294901760
  %1831 = vmatmul.mubr.f32.gmra.mrb[0].mxu0 %v1830
  %v1832 = vpop.f32.mrb[0].mxu0
  %v1833 = vadd.f32 %v1574, %v1832
  %v1834 = vpop.f32.mrb[0].mxu0
  %1835 = vmatprep.mubr.f32.mxu0 0.0
  %v1836 = vand.u32 %v102, 4294901760
  %1837 = vmatmul.mubr.f32.gmra.mrb[0].mxu0 %v1836
  %v1838 = vpop.f32.mrb[0].mxu0
  %v1839 = vadd.f32 %v1580, %v1838
  %v1840 = vpop.f32.mrb[0].mxu0
  %1841 = vmatprep.mubr.f32.mxu0 0.0
  %v1842 = vand.u32 %v105, 4294901760
  %1843 = vmatmul.mubr.f32.gmra.mrb[0].mxu0 %v1842
  %v1844 = vpop.f32.mrb[0].mxu0
  %v1845 = vadd.f32 %v1586, %v1844
  %v1846 = vpop.f32.mrb[0].mxu0
  %1847 = vmatprep.mubr.f32.mxu0 0.0
  %v1848 = vand.u32 %v108, 4294901760
  %1849 = vmatmul.mubr.f32.gmra.mrb[0].mxu0 %v1848
  %v1850 = vpop.f32.mrb[0].mxu0
  %v1851 = vadd.f32 %v1592, %v1850
  %v1852 = vpop.f32.mrb[0].mxu0
  %1853 = vmatprep.mubr.f32.mxu0 0.0
  %v1854 = vand.u32 %v111, 4294901760
  %1855 = vmatmul.mubr.f32.gmra.mrb[0].mxu0 %v1854
  %v1856 = vpop.f32.mrb[0].mxu0
  %v1857 = vadd.f32 %v1598, %v1856
  %v1858 = vpop.f32.mrb[0].mxu0
  %1859 = vmatprep.mubr.f32.mxu0 0.0
  %v1860 = vand.u32 %v114, 4294901760
  %1861 = vmatmul.mubr.f32.gmra.mrb[0].mxu0 %v1860
  %v1862 = vpop.f32.mrb[0].mxu0
  %v1863 = vadd.f32 %v1604, %v1862
  %v1864 = vpop.f32.mrb[0].mxu0
  %1865 = vmatprep.mubr.f32.mxu0 0.0
  %v1866 = vand.u32 %v117, 4294901760
  %1867 = vmatmul.mubr.f32.gmra.mrb[0].mxu0 %v1866
  %v1868 = vpop.f32.mrb[0].mxu0
  %v1869 = vadd.f32 %v1610, %v1868
  %v1870 = vpop.f32.mrb[0].mxu0
  %1871 = vmatprep.mubr.f32.mxu0 0.0
  %v1872 = vand.u32 %v120, 4294901760
  %1873 = vmatmul.mubr.f32.gmra.mrb[0].mxu0 %v1872
  %v1874 = vpop.f32.mrb[0].mxu0
  %v1875 = vadd.f32 %v1616, %v1874
  %v1876 = vpop.f32.mrb[0].mxu0
  %1877 = vmatprep.mubr.f32.mxu0 0.0
  %v1878 = vand.u32 %v123, 4294901760
  %1879 = vmatmul.mubr.f32.gmra.mrb[0].mxu0 %v1878
  %v1880 = vpop.f32.mrb[0].mxu0
  %v1881 = vadd.f32 %v1622, %v1880
  %v1882 = vpop.f32.mrb[0].mxu0
  %1883 = vmatprep.mubr.f32.mxu0 0.0
  %v1884 = vand.u32 %v126, 4294901760
  %1885 = vmatmul.mubr.f32.gmra.mrb[0].mxu0 %v1884
  %v1886 = vpop.f32.mrb[0].mxu0
  %v1887 = vadd.f32 %v1628, %v1886
  %v1888 = vpop.f32.mrb[0].mxu0
  %1889 = vmatprep.mubr.f32.mxu0 0.0
  %v1890 = vand.u32 %v129, 4294901760
  %1891 = vmatmul.mubr.f32.gmra.mrb[0].mxu0 %v1890
  %v1892 = vpop.f32.mrb[0].mxu0
  %v1893 = vadd.f32 %v1634, %v1892
  %v1894 = vpop.f32.mrb[0].mxu0
  %1895 = vmatprep.mubr.f32.mxu0 0.0
  %v1896 = vand.u32 %v132, 4294901760
  %1897 = vmatmul.mubr.f32.gmra.mrb[0].mxu0 %v1896
  %v1898 = vpop.f32.mrb[0].mxu0
  %v1899 = vadd.f32 %v1640, %v1898
  %v1900 = vpop.f32.mrb[0].mxu0
  %1901 = vmatprep.mubr.f32.mxu0 0.0
  %v1902 = vand.u32 %v135, 4294901760
  %1903 = vmatmul.mubr.f32.gmra.mrb[0].mxu0 %v1902
  %v1904 = vpop.f32.mrb[0].mxu0
  %v1905 = vadd.f32 %v1646, %v1904
  %v1906 = vpop.f32.mrb[0].mxu0
  %1907 = vmatprep.mubr.f32.mxu0 0.0
  %v1908 = vand.u32 %v138, 4294901760
  %1909 = vmatmul.mubr.f32.gmra.mrb[0].mxu0 %v1908
  %v1910 = vpop.f32.mrb[0].mxu0
  %v1911 = vadd.f32 %v1652, %v1910
  %v1912 = vpop.f32.mrb[0].mxu0
  %1913 = vmatprep.mubr.f32.mxu0 0.0
  %v1914 = vand.u32 %v141, 4294901760
  %1915 = vmatmul.mubr.f32.gmra.mrb[0].mxu0 %v1914
  %v1916 = vpop.f32.mrb[0].mxu0
  %v1917 = vadd.f32 %v1658, %v1916
  %v1918 = vpop.f32.mrb[0].mxu0
  %1919 = vmatprep.mubr.f32.mxu0 0.0
  %v1920 = vand.u32 %v144, 4294901760
  %1921 = vmatmul.mubr.f32.gmra.mrb[0].mxu0 %v1920
  %v1922 = vpop.f32.mrb[0].mxu0
  %v1923 = vadd.f32 %v1664, %v1922
  %v1924 = vpop.f32.mrb[0].mxu0
  %1925 = vmatprep.mubr.f32.mxu0 0.0
  %v1926 = vand.u32 %v147, 4294901760
  %1927 = vmatmul.mubr.f32.gmra.mrb[0].mxu0 %v1926
  %v1928 = vpop.f32.mrb[0].mxu0
  %v1929 = vadd.f32 %v1670, %v1928
  %v1930 = vpop.f32.mrb[0].mxu0
  %1931 = vmatprep.mubr.f32.mxu0 0.0
  %v1932 = vand.u32 %v150, 4294901760
  %1933 = vmatmul.mubr.f32.gmra.mrb[0].mxu0 %v1932
  %v1934 = vpop.f32.mrb[0].mxu0
  %v1935 = vadd.f32 %v1676, %v1934
  %v1936 = vpop.f32.mrb[0].mxu0
  %1937 = vmatprep.mubr.f32.mxu0 0.0
  %v1938 = vand.u32 %v153, 4294901760
  %1939 = vmatmul.mubr.f32.gmra.mrb[0].mxu0 %v1938
  %v1940 = vpop.f32.mrb[0].mxu0
  %v1941 = vadd.f32 %v1682, %v1940
  %v1942 = vpop.f32.mrb[0].mxu0
  %1943 = vmatprep.mubr.f32.mxu0 0.0
  %v1944 = vand.u32 %v156, 4294901760
  %1945 = vmatmul.mubr.f32.gmra.mrb[0].mxu0 %v1944
  %v1946 = vpop.f32.mrb[0].mxu0
  %v1947 = vadd.f32 %v1688, %v1946
  %v1948 = vpop.f32.mrb[0].mxu0
  %1949 = vdwg.mxu0
  %v1950 = vmax.f32 %v1761, 0.0
  %v1951 = vmax.f32 %v1767, 0.0
  %v1952 = vmax.f32 %v1773, 0.0
  %v1953 = vmax.f32 %v1779, 0.0
  %v1954 = vmax.f32 %v1785, 0.0
  %v1955 = vmax.f32 %v1791, 0.0
  %v1956 = vmax.f32 %v1797, 0.0
  %v1957 = vmax.f32 %v1803, 0.0
  %v1958 = vmax.f32 %v1809, 0.0
  %v1959 = vmax.f32 %v1815, 0.0
  %v1960 = vmax.f32 %v1821, 0.0
  %v1961 = vmax.f32 %v1827, 0.0
  %v1962 = vmax.f32 %v1833, 0.0
  %v1963 = vmax.f32 %v1839, 0.0
  %v1964 = vmax.f32 %v1845, 0.0
  %v1965 = vmax.f32 %v1851, 0.0
  %v1966 = vmax.f32 %v1857, 0.0
  %v1967 = vmax.f32 %v1863, 0.0
  %v1968 = vmax.f32 %v1869, 0.0
  %v1969 = vmax.f32 %v1875, 0.0
  %v1970 = vmax.f32 %v1881, 0.0
  %v1971 = vmax.f32 %v1887, 0.0
  %v1972 = vmax.f32 %v1893, 0.0
  %v1973 = vmax.f32 %v1899, 0.0
  %v1974 = vmax.f32 %v1905, 0.0
  %v1975 = vmax.f32 %v1911, 0.0
  %v1976 = vmax.f32 %v1917, 0.0
  %v1977 = vmax.f32 %v1923, 0.0
  %v1978 = vmax.f32 %v1929, 0.0
  %v1979 = vmax.f32 %v1935, 0.0
  %v1980 = vmax.f32 %v1941, 0.0
  %v1981 = vmax.f32 %v1947, 0.0
  %v1982 = vld [vmem:[%s2] sm:$0xff]
  %v1983 = vld [vmem:[%s2 + $0x8] sm:$0xff]
  %v1984 = vld [vmem:[%s2 + $0x10] sm:$0xff]
  %v1985 = vld [vmem:[%s2 + $0x18] sm:$0xff]
  %v1986 = vlaneseq
  %v1987 = vshrl.u32 %v1986, 7
  %v1988 = vsub.s32 0, %v1987
  %v1989 = vrot.slane %v21, %v1988
  %vm1990 = vcmask 261120
  %v1992 = vsel %vm1990, %v1950, 0
  %v1995 = vsel %vm1990, %v1951, 0
  %v1998 = vsel %vm1990, %v1952, 0
  %v2001 = vsel %vm1990, %v1953, 0
  %v2004 = vsel %vm1990, %v1954, 0
  %v2007 = vsel %vm1990, %v1955, 0
  %v2010 = vsel %vm1990, %v1956, 0
  %v2013 = vsel %vm1990, %v1957, 0
  %v2016 = vsel %vm1990, %v1958, 0
  %v2019 = vsel %vm1990, %v1959, 0
  %v2022 = vsel %vm1990, %v1960, 0
  %v2025 = vsel %vm1990, %v1961, 0
  %v2028 = vsel %vm1990, %v1962, 0
  %v2031 = vsel %vm1990, %v1963, 0
  %v2034 = vsel %vm1990, %v1964, 0
  %v2037 = vsel %vm1990, %v1965, 0
  %v2040 = vsel %vm1990, %v1966, 0
  %v2043 = vsel %vm1990, %v1967, 0
  %v2046 = vsel %vm1990, %v1968, 0
  %v2049 = vsel %vm1990, %v1969, 0
  %v2052 = vsel %vm1990, %v1970, 0
  %v2055 = vsel %vm1990, %v1971, 0
  %v2058 = vsel %vm1990, %v1972, 0
  %v2061 = vsel %vm1990, %v1973, 0
  %v2064 = vsel %vm1990, %v1974, 0
  %v2067 = vsel %vm1990, %v1975, 0
  %v2070 = vsel %vm1990, %v1976, 0
  %v2073 = vsel %vm1990, %v1977, 0
  %v2076 = vsel %vm1990, %v1978, 0
  %v2079 = vsel %vm1990, %v1979, 0
  %v2082 = vsel %vm1990, %v1980, 0
  %v2085 = vsel %vm1990, %v1981, 0
  %2087 = vmatprep.subr.mxu0 0.0
  %v2088 = vand.u32 %v1982, 4294901760
  %2089 = vmatpush1.msra.mxu0 %v2088
  %2090 = vmatprep.subr.mxu0 0.0
  %v2091 = vand.u32 %v1983, 4294901760
  %2092 = vmatpush1.msra.mxu0 %v2091
  %2093 = vmatprep.subr.mxu0 0.0
  %v2094 = vand.u32 %v1984, 4294901760
  %2095 = vmatpush1.msra.mxu0 %v2094
  %2096 = vmatprep.subr.mxu0 0.0
  %v2097 = vand.u32 %v1985, 4294901760
  %2098 = vmatpush1.msra.mxu0 %v2097
  %2099 = vmatprep.subr.mxu0 0.0
  %2100 = vmatpush1.msra.mxu0 0.0
  %2101 = vmatprep.subr.mxu0 0.0
  %2102 = vmatpush1.msra.mxu0 0.0
  %2103 = vmatprep.subr.mxu0 0.0
  %2104 = vmatpush1.msra.mxu0 0.0
  %2105 = vmatprep.subr.mxu0 0.0
  %2106 = vmatpush1.msra.mxu0 0.0
  %2107 = vmatprep.subr.mxu0 0.0
  %2108 = vmatpush1.msra.mxu0 0.0
  %2109 = vmatprep.subr.mxu0 0.0
  %2110 = vmatpush1.msra.mxu0 0.0
  %2111 = vmatprep.subr.mxu0 0.0
  %2112 = vmatpush1.msra.mxu0 0.0
  %2113 = vmatprep.subr.mxu0 0.0
  %2114 = vmatpush1.msra.mxu0 0.0
  %2115 = vmatprep.subr.mxu0 0.0
  %2116 = vmatpush1.msra.mxu0 0.0
  %2117 = vmatprep.subr.mxu0 0.0
  %2118 = vmatpush1.msra.mxu0 0.0
  %2119 = vmatprep.subr.mxu0 0.0
  %2120 = vmatpush1.msra.mxu0 0.0
  %2121 = vmatprep.subr.mxu0 0.0
  %2122 = vmatpush1.msra.mxu0 0.0
  %2123 = vmatprep.subr.mxu0 0.0
  %2124 = vmatpush1.msra.mxu0 0.0
  %2125 = vmatprep.subr.mxu0 0.0
  %2126 = vmatpush1.msra.mxu0 0.0
  %2127 = vmatprep.subr.mxu0 0.0
  %2128 = vmatpush1.msra.mxu0 0.0
  %2129 = vmatprep.subr.mxu0 0.0
  %2130 = vmatpush1.msra.mxu0 0.0
  %2131 = vmatprep.subr.mxu0 0.0
  %2132 = vmatpush1.msra.mxu0 0.0
  %2133 = vmatprep.subr.mxu0 0.0
  %2134 = vmatpush1.msra.mxu0 0.0
  %2135 = vmatprep.subr.mxu0 0.0
  %2136 = vmatpush1.msra.mxu0 0.0
  %2137 = vmatprep.subr.mxu0 0.0
  %2138 = vmatpush1.msra.mxu0 0.0
  %2139 = vmatprep.subr.mxu0 0.0
  %2140 = vmatpush1.msra.mxu0 0.0
  %2141 = vmatprep.subr.mxu0 0.0
  %2142 = vmatpush1.msra.mxu0 0.0
  %2143 = vmatprep.subr.mxu0 0.0
  %2144 = vmatpush1.msra.mxu0 0.0
  %2145 = vmatprep.subr.mxu0 0.0
  %2146 = vmatpush1.msra.mxu0 0.0
  %2147 = vmatprep.subr.mxu0 0.0
  %2148 = vmatpush1.msra.mxu0 0.0
  %2149 = vmatprep.subr.mxu0 0.0
  %2150 = vmatpush1.msra.mxu0 0.0
  %2151 = vmatprep.subr.mxu0 0.0
  %2152 = vmatpush1.msra.mxu0 0.0
  %2153 = vmatprep.subr.mxu0 0.0
  %2154 = vmatpush1.msra.mxu0 0.0
  %2155 = vmatprep.mubr.f32.mxu0 0.0
  %v2156 = vand.u32 %v1992, 4294901760
  %v2157 = vsub.f32 %v1992, %v2156
  %v2158 = vand.u32 %v2157, 4294901760
  %v2159 = vsub.f32 %v2157, %v2158
  %v2160 = vand.u32 %v2159, 4294901760
  %2161 = vmatmul.mubr.f32.gmra.mrb[0].mxu0 %v2160
  %v2162 = vpop.f32.mrb[0].mxu0
  %v2163 = vadd.f32 %v1989, %v2162
  %v2164 = vpop.f32.mrb[0].mxu0
  %2165 = vmatprep.mubr.f32.mxu0 0.0
  %v2166 = vand.u32 %v1995, 4294901760
  %v2167 = vsub.f32 %v1995, %v2166
  %v2168 = vand.u32 %v2167, 4294901760
  %v2169 = vsub.f32 %v2167, %v2168
  %v2170 = vand.u32 %v2169, 4294901760
  %2171 = vmatmul.mubr.f32.gmra.mrb[0].mxu0 %v2170
  %v2172 = vpop.f32.mrb[0].mxu0
  %v2173 = vadd.f32 %v1989, %v2172
  %v2174 = vpop.f32.mrb[0].mxu0
  %2175 = vmatprep.mubr.f32.mxu0 0.0
  %v2176 = vand.u32 %v1998, 4294901760
  %v2177 = vsub.f32 %v1998, %v2176
  %v2178 = vand.u32 %v2177, 4294901760
  %v2179 = vsub.f32 %v2177, %v2178
  %v2180 = vand.u32 %v2179, 4294901760
  %2181 = vmatmul.mubr.f32.gmra.mrb[0].mxu0 %v2180
  %v2182 = vpop.f32.mrb[0].mxu0
  %v2183 = vadd.f32 %v1989, %v2182
  %v2184 = vpop.f32.mrb[0].mxu0
  %2185 = vmatprep.mubr.f32.mxu0 0.0
  %v2186 = vand.u32 %v2001, 4294901760
  %v2187 = vsub.f32 %v2001, %v2186
  %v2188 = vand.u32 %v2187, 4294901760
  %v2189 = vsub.f32 %v2187, %v2188
  %v2190 = vand.u32 %v2189, 4294901760
  %2191 = vmatmul.mubr.f32.gmra.mrb[0].mxu0 %v2190
  %v2192 = vpop.f32.mrb[0].mxu0
  %v2193 = vadd.f32 %v1989, %v2192
  %v2194 = vpop.f32.mrb[0].mxu0
  %2195 = vmatprep.mubr.f32.mxu0 0.0
  %v2196 = vand.u32 %v2004, 4294901760
  %v2197 = vsub.f32 %v2004, %v2196
  %v2198 = vand.u32 %v2197, 4294901760
  %v2199 = vsub.f32 %v2197, %v2198
  %v2200 = vand.u32 %v2199, 4294901760
  %2201 = vmatmul.mubr.f32.gmra.mrb[0].mxu0 %v2200
  %v2202 = vpop.f32.mrb[0].mxu0
  %v2203 = vadd.f32 %v1989, %v2202
  %v2204 = vpop.f32.mrb[0].mxu0
  %2205 = vmatprep.mubr.f32.mxu0 0.0
  %v2206 = vand.u32 %v2007, 4294901760
  %v2207 = vsub.f32 %v2007, %v2206
  %v2208 = vand.u32 %v2207, 4294901760
  %v2209 = vsub.f32 %v2207, %v2208
  %v2210 = vand.u32 %v2209, 4294901760
  %2211 = vmatmul.mubr.f32.gmra.mrb[0].mxu0 %v2210
  %v2212 = vpop.f32.mrb[0].mxu0
  %v2213 = vadd.f32 %v1989, %v2212
  %v2214 = vpop.f32.mrb[0].mxu0
  %2215 = vmatprep.mubr.f32.mxu0 0.0
  %v2216 = vand.u32 %v2010, 4294901760
  %v2217 = vsub.f32 %v2010, %v2216
  %v2218 = vand.u32 %v2217, 4294901760
  %v2219 = vsub.f32 %v2217, %v2218
  %v2220 = vand.u32 %v2219, 4294901760
  %2221 = vmatmul.mubr.f32.gmra.mrb[0].mxu0 %v2220
  %v2222 = vpop.f32.mrb[0].mxu0
  %v2223 = vadd.f32 %v1989, %v2222
  %v2224 = vpop.f32.mrb[0].mxu0
  %2225 = vmatprep.mubr.f32.mxu0 0.0
  %v2226 = vand.u32 %v2013, 4294901760
  %v2227 = vsub.f32 %v2013, %v2226
  %v2228 = vand.u32 %v2227, 4294901760
  %v2229 = vsub.f32 %v2227, %v2228
  %v2230 = vand.u32 %v2229, 4294901760
  %2231 = vmatmul.mubr.f32.gmra.mrb[0].mxu0 %v2230
  %v2232 = vpop.f32.mrb[0].mxu0
  %v2233 = vadd.f32 %v1989, %v2232
  %v2234 = vpop.f32.mrb[0].mxu0
  %2235 = vmatprep.mubr.f32.mxu0 0.0
  %v2236 = vand.u32 %v2016, 4294901760
  %v2237 = vsub.f32 %v2016, %v2236
  %v2238 = vand.u32 %v2237, 4294901760
  %v2239 = vsub.f32 %v2237, %v2238
  %v2240 = vand.u32 %v2239, 4294901760
  %2241 = vmatmul.mubr.f32.gmra.mrb[0].mxu0 %v2240
  %v2242 = vpop.f32.mrb[0].mxu0
  %v2243 = vadd.f32 %v1989, %v2242
  %v2244 = vpop.f32.mrb[0].mxu0
  %2245 = vmatprep.mubr.f32.mxu0 0.0
  %v2246 = vand.u32 %v2019, 4294901760
  %v2247 = vsub.f32 %v2019, %v2246
  %v2248 = vand.u32 %v2247, 4294901760
  %v2249 = vsub.f32 %v2247, %v2248
  %v2250 = vand.u32 %v2249, 4294901760
  %2251 = vmatmul.mubr.f32.gmra.mrb[0].mxu0 %v2250
  %v2252 = vpop.f32.mrb[0].mxu0
  %v2253 = vadd.f32 %v1989, %v2252
  %v2254 = vpop.f32.mrb[0].mxu0
  %2255 = vmatprep.mubr.f32.mxu0 0.0
  %v2256 = vand.u32 %v2022, 4294901760
  %v2257 = vsub.f32 %v2022, %v2256
  %v2258 = vand.u32 %v2257, 4294901760
  %v2259 = vsub.f32 %v2257, %v2258
  %v2260 = vand.u32 %v2259, 4294901760
  %2261 = vmatmul.mubr.f32.gmra.mrb[0].mxu0 %v2260
  %v2262 = vpop.f32.mrb[0].mxu0
  %v2263 = vadd.f32 %v1989, %v2262
  %v2264 = vpop.f32.mrb[0].mxu0
  %2265 = vmatprep.mubr.f32.mxu0 0.0
  %v2266 = vand.u32 %v2025, 4294901760
  %v2267 = vsub.f32 %v2025, %v2266
  %v2268 = vand.u32 %v2267, 4294901760
  %v2269 = vsub.f32 %v2267, %v2268
  %v2270 = vand.u32 %v2269, 4294901760
  %2271 = vmatmul.mubr.f32.gmra.mrb[0].mxu0 %v2270
  %v2272 = vpop.f32.mrb[0].mxu0
  %v2273 = vadd.f32 %v1989, %v2272
  %v2274 = vpop.f32.mrb[0].mxu0
  %2275 = vmatprep.mubr.f32.mxu0 0.0
  %v2276 = vand.u32 %v2028, 4294901760
  %v2277 = vsub.f32 %v2028, %v2276
  %v2278 = vand.u32 %v2277, 4294901760
  %v2279 = vsub.f32 %v2277, %v2278
  %v2280 = vand.u32 %v2279, 4294901760
  %2281 = vmatmul.mubr.f32.gmra.mrb[0].mxu0 %v2280
  %v2282 = vpop.f32.mrb[0].mxu0
  %v2283 = vadd.f32 %v1989, %v2282
  %v2284 = vpop.f32.mrb[0].mxu0
  %2285 = vmatprep.mubr.f32.mxu0 0.0
  %v2286 = vand.u32 %v2031, 4294901760
  %v2287 = vsub.f32 %v2031, %v2286
  %v2288 = vand.u32 %v2287, 4294901760
  %v2289 = vsub.f32 %v2287, %v2288
  %v2290 = vand.u32 %v2289, 4294901760
  %2291 = vmatmul.mubr.f32.gmra.mrb[0].mxu0 %v2290
  %v2292 = vpop.f32.mrb[0].mxu0
  %v2293 = vadd.f32 %v1989, %v2292
  %v2294 = vpop.f32.mrb[0].mxu0
  %2295 = vmatprep.mubr.f32.mxu0 0.0
  %v2296 = vand.u32 %v2034, 4294901760
  %v2297 = vsub.f32 %v2034, %v2296
  %v2298 = vand.u32 %v2297, 4294901760
  %v2299 = vsub.f32 %v2297, %v2298
  %v2300 = vand.u32 %v2299, 4294901760
  %2301 = vmatmul.mubr.f32.gmra.mrb[0].mxu0 %v2300
  %v2302 = vpop.f32.mrb[0].mxu0
  %v2303 = vadd.f32 %v1989, %v2302
  %v2304 = vpop.f32.mrb[0].mxu0
  %2305 = vmatprep.mubr.f32.mxu0 0.0
  %v2306 = vand.u32 %v2037, 4294901760
  %v2307 = vsub.f32 %v2037, %v2306
  %v2308 = vand.u32 %v2307, 4294901760
  %v2309 = vsub.f32 %v2307, %v2308
  %v2310 = vand.u32 %v2309, 4294901760
  %2311 = vmatmul.mubr.f32.gmra.mrb[0].mxu0 %v2310
  %v2312 = vpop.f32.mrb[0].mxu0
  %v2313 = vadd.f32 %v1989, %v2312
  %v2314 = vpop.f32.mrb[0].mxu0
  %2315 = vmatprep.mubr.f32.mxu0 0.0
  %v2316 = vand.u32 %v2040, 4294901760
  %v2317 = vsub.f32 %v2040, %v2316
  %v2318 = vand.u32 %v2317, 4294901760
  %v2319 = vsub.f32 %v2317, %v2318
  %v2320 = vand.u32 %v2319, 4294901760
  %2321 = vmatmul.mubr.f32.gmra.mrb[0].mxu0 %v2320
  %v2322 = vpop.f32.mrb[0].mxu0
  %v2323 = vadd.f32 %v1989, %v2322
  %v2324 = vpop.f32.mrb[0].mxu0
  %2325 = vmatprep.mubr.f32.mxu0 0.0
  %v2326 = vand.u32 %v2043, 4294901760
  %v2327 = vsub.f32 %v2043, %v2326
  %v2328 = vand.u32 %v2327, 4294901760
  %v2329 = vsub.f32 %v2327, %v2328
  %v2330 = vand.u32 %v2329, 4294901760
  %2331 = vmatmul.mubr.f32.gmra.mrb[0].mxu0 %v2330
  %v2332 = vpop.f32.mrb[0].mxu0
  %v2333 = vadd.f32 %v1989, %v2332
  %v2334 = vpop.f32.mrb[0].mxu0
  %2335 = vmatprep.mubr.f32.mxu0 0.0
  %v2336 = vand.u32 %v2046, 4294901760
  %v2337 = vsub.f32 %v2046, %v2336
  %v2338 = vand.u32 %v2337, 4294901760
  %v2339 = vsub.f32 %v2337, %v2338
  %v2340 = vand.u32 %v2339, 4294901760
  %2341 = vmatmul.mubr.f32.gmra.mrb[0].mxu0 %v2340
  %v2342 = vpop.f32.mrb[0].mxu0
  %v2343 = vadd.f32 %v1989, %v2342
  %v2344 = vpop.f32.mrb[0].mxu0
  %2345 = vmatprep.mubr.f32.mxu0 0.0
  %v2346 = vand.u32 %v2049, 4294901760
  %v2347 = vsub.f32 %v2049, %v2346
  %v2348 = vand.u32 %v2347, 4294901760
  %v2349 = vsub.f32 %v2347, %v2348
  %v2350 = vand.u32 %v2349, 4294901760
  %2351 = vmatmul.mubr.f32.gmra.mrb[0].mxu0 %v2350
  %v2352 = vpop.f32.mrb[0].mxu0
  %v2353 = vadd.f32 %v1989, %v2352
  %v2354 = vpop.f32.mrb[0].mxu0
  %2355 = vmatprep.mubr.f32.mxu0 0.0
  %v2356 = vand.u32 %v2052, 4294901760
  %v2357 = vsub.f32 %v2052, %v2356
  %v2358 = vand.u32 %v2357, 4294901760
  %v2359 = vsub.f32 %v2357, %v2358
  %v2360 = vand.u32 %v2359, 4294901760
  %2361 = vmatmul.mubr.f32.gmra.mrb[0].mxu0 %v2360
  %v2362 = vpop.f32.mrb[0].mxu0
  %v2363 = vadd.f32 %v1989, %v2362
  %v2364 = vpop.f32.mrb[0].mxu0
  %2365 = vmatprep.mubr.f32.mxu0 0.0
  %v2366 = vand.u32 %v2055, 4294901760
  %v2367 = vsub.f32 %v2055, %v2366
  %v2368 = vand.u32 %v2367, 4294901760
  %v2369 = vsub.f32 %v2367, %v2368
  %v2370 = vand.u32 %v2369, 4294901760
  %2371 = vmatmul.mubr.f32.gmra.mrb[0].mxu0 %v2370
  %v2372 = vpop.f32.mrb[0].mxu0
  %v2373 = vadd.f32 %v1989, %v2372
  %v2374 = vpop.f32.mrb[0].mxu0
  %2375 = vmatprep.mubr.f32.mxu0 0.0
  %v2376 = vand.u32 %v2058, 4294901760
  %v2377 = vsub.f32 %v2058, %v2376
  %v2378 = vand.u32 %v2377, 4294901760
  %v2379 = vsub.f32 %v2377, %v2378
  %v2380 = vand.u32 %v2379, 4294901760
  %2381 = vmatmul.mubr.f32.gmra.mrb[0].mxu0 %v2380
  %v2382 = vpop.f32.mrb[0].mxu0
  %v2383 = vadd.f32 %v1989, %v2382
  %v2384 = vpop.f32.mrb[0].mxu0
  %2385 = vmatprep.mubr.f32.mxu0 0.0
  %v2386 = vand.u32 %v2061, 4294901760
  %v2387 = vsub.f32 %v2061, %v2386
  %v2388 = vand.u32 %v2387, 4294901760
  %v2389 = vsub.f32 %v2387, %v2388
  %v2390 = vand.u32 %v2389, 4294901760
  %2391 = vmatmul.mubr.f32.gmra.mrb[0].mxu0 %v2390
  %v2392 = vpop.f32.mrb[0].mxu0
  %v2393 = vadd.f32 %v1989, %v2392
  %v2394 = vpop.f32.mrb[0].mxu0
  %2395 = vmatprep.mubr.f32.mxu0 0.0
  %v2396 = vand.u32 %v2064, 4294901760
  %v2397 = vsub.f32 %v2064, %v2396
  %v2398 = vand.u32 %v2397, 4294901760
  %v2399 = vsub.f32 %v2397, %v2398
  %v2400 = vand.u32 %v2399, 4294901760
  %2401 = vmatmul.mubr.f32.gmra.mrb[0].mxu0 %v2400
  %v2402 = vpop.f32.mrb[0].mxu0
  %v2403 = vadd.f32 %v1989, %v2402
  %v2404 = vpop.f32.mrb[0].mxu0
  %2405 = vmatprep.mubr.f32.mxu0 0.0
  %v2406 = vand.u32 %v2067, 4294901760
  %v2407 = vsub.f32 %v2067, %v2406
  %v2408 = vand.u32 %v2407, 4294901760
  %v2409 = vsub.f32 %v2407, %v2408
  %v2410 = vand.u32 %v2409, 4294901760
  %2411 = vmatmul.mubr.f32.gmra.mrb[0].mxu0 %v2410
  %v2412 = vpop.f32.mrb[0].mxu0
  %v2413 = vadd.f32 %v1989, %v2412
  %v2414 = vpop.f32.mrb[0].mxu0
  %2415 = vmatprep.mubr.f32.mxu0 0.0
  %v2416 = vand.u32 %v2070, 4294901760
  %v2417 = vsub.f32 %v2070, %v2416
  %v2418 = vand.u32 %v2417, 4294901760
  %v2419 = vsub.f32 %v2417, %v2418
  %v2420 = vand.u32 %v2419, 4294901760
  %2421 = vmatmul.mubr.f32.gmra.mrb[0].mxu0 %v2420
  %v2422 = vpop.f32.mrb[0].mxu0
  %v2423 = vadd.f32 %v1989, %v2422
  %v2424 = vpop.f32.mrb[0].mxu0
  %2425 = vmatprep.mubr.f32.mxu0 0.0
  %v2426 = vand.u32 %v2073, 4294901760
  %v2427 = vsub.f32 %v2073, %v2426
  %v2428 = vand.u32 %v2427, 4294901760
  %v2429 = vsub.f32 %v2427, %v2428
  %v2430 = vand.u32 %v2429, 4294901760
  %2431 = vmatmul.mubr.f32.gmra.mrb[0].mxu0 %v2430
  %v2432 = vpop.f32.mrb[0].mxu0
  %v2433 = vadd.f32 %v1989, %v2432
  %v2434 = vpop.f32.mrb[0].mxu0
  %2435 = vmatprep.mubr.f32.mxu0 0.0
  %v2436 = vand.u32 %v2076, 4294901760
  %v2437 = vsub.f32 %v2076, %v2436
  %v2438 = vand.u32 %v2437, 4294901760
  %v2439 = vsub.f32 %v2437, %v2438
  %v2440 = vand.u32 %v2439, 4294901760
  %2441 = vmatmul.mubr.f32.gmra.mrb[0].mxu0 %v2440
  %v2442 = vpop.f32.mrb[0].mxu0
  %v2443 = vadd.f32 %v1989, %v2442
  %v2444 = vpop.f32.mrb[0].mxu0
  %2445 = vmatprep.mubr.f32.mxu0 0.0
  %v2446 = vand.u32 %v2079, 4294901760
  %v2447 = vsub.f32 %v2079, %v2446
  %v2448 = vand.u32 %v2447, 4294901760
  %v2449 = vsub.f32 %v2447, %v2448
  %v2450 = vand.u32 %v2449, 4294901760
  %2451 = vmatmul.mubr.f32.gmra.mrb[0].mxu0 %v2450
  %v2452 = vpop.f32.mrb[0].mxu0
  %v2453 = vadd.f32 %v1989, %v2452
  %v2454 = vpop.f32.mrb[0].mxu0
  %2455 = vmatprep.mubr.f32.mxu0 0.0
  %v2456 = vand.u32 %v2082, 4294901760
  %v2457 = vsub.f32 %v2082, %v2456
  %v2458 = vand.u32 %v2457, 4294901760
  %v2459 = vsub.f32 %v2457, %v2458
  %v2460 = vand.u32 %v2459, 4294901760
  %2461 = vmatmul.mubr.f32.gmra.mrb[0].mxu0 %v2460
  %v2462 = vpop.f32.mrb[0].mxu0
  %v2463 = vadd.f32 %v1989, %v2462
  %v2464 = vpop.f32.mrb[0].mxu0
  %2465 = vmatprep.mubr.f32.mxu0 0.0
  %v2466 = vand.u32 %v2085, 4294901760
  %v2467 = vsub.f32 %v2085, %v2466
  %v2468 = vand.u32 %v2467, 4294901760
  %v2469 = vsub.f32 %v2467, %v2468
  %v2470 = vand.u32 %v2469, 4294901760
  %2471 = vmatmul.mubr.f32.gmra.mrb[0].mxu0 %v2470
  %v2472 = vpop.f32.mrb[0].mxu0
  %v2473 = vadd.f32 %v1989, %v2472
  %v2474 = vpop.f32.mrb[0].mxu0
  %2475 = vdwg.mxu0
  %2476 = vmatprep.subr.mxu0 0.0
  %v2477 = vand.u32 %v1982, 4294901760
  %v2478 = vsub.f32 %v1982, %v2477
  %v2479 = vand.u32 %v2478, 4294901760
  %v2480 = vsub.f32 %v2478, %v2479
  %v2481 = vand.u32 %v2480, 4294901760
  %2482 = vmatpush1.msra.mxu0 %v2481
  %2483 = vmatprep.subr.mxu0 0.0
  %v2484 = vand.u32 %v1983, 4294901760
  %v2485 = vsub.f32 %v1983, %v2484
  %v2486 = vand.u32 %v2485, 4294901760
  %v2487 = vsub.f32 %v2485, %v2486
  %v2488 = vand.u32 %v2487, 4294901760
  %2489 = vmatpush1.msra.mxu0 %v2488
  %2490 = vmatprep.subr.mxu0 0.0
  %v2491 = vand.u32 %v1984, 4294901760
  %v2492 = vsub.f32 %v1984, %v2491
  %v2493 = vand.u32 %v2492, 4294901760
  %v2494 = vsub.f32 %v2492, %v2493
  %v2495 = vand.u32 %v2494, 4294901760
  %2496 = vmatpush1.msra.mxu0 %v2495
  %2497 = vmatprep.subr.mxu0 0.0
  %v2498 = vand.u32 %v1985, 4294901760
  %v2499 = vsub.f32 %v1985, %v2498
  %v2500 = vand.u32 %v2499, 4294901760
  %v2501 = vsub.f32 %v2499, %v2500
  %v2502 = vand.u32 %v2501, 4294901760
  %2503 = vmatpush1.msra.mxu0 %v2502
  %2504 = vmatprep.subr.mxu0 0.0
  %2505 = vmatpush1.msra.mxu0 0.0
  %2506 = vmatprep.subr.mxu0 0.0
  %2507 = vmatpush1.msra.mxu0 0.0
  %2508 = vmatprep.subr.mxu0 0.0
  %2509 = vmatpush1.msra.mxu0 0.0
  %2510 = vmatprep.subr.mxu0 0.0
  %2511 = vmatpush1.msra.mxu0 0.0
  %2512 = vmatprep.subr.mxu0 0.0
  %2513 = vmatpush1.msra.mxu0 0.0
  %2514 = vmatprep.subr.mxu0 0.0
  %2515 = vmatpush1.msra.mxu0 0.0
  %2516 = vmatprep.subr.mxu0 0.0
  %2517 = vmatpush1.msra.mxu0 0.0
  %2518 = vmatprep.subr.mxu0 0.0
  %2519 = vmatpush1.msra.mxu0 0.0
  %2520 = vmatprep.subr.mxu0 0.0
  %2521 = vmatpush1.msra.mxu0 0.0
  %2522 = vmatprep.subr.mxu0 0.0
  %2523 = vmatpush1.msra.mxu0 0.0
  %2524 = vmatprep.subr.mxu0 0.0
  %2525 = vmatpush1.msra.mxu0 0.0
  %2526 = vmatprep.subr.mxu0 0.0
  %2527 = vmatpush1.msra.mxu0 0.0
  %2528 = vmatprep.subr.mxu0 0.0
  %2529 = vmatpush1.msra.mxu0 0.0
  %2530 = vmatprep.subr.mxu0 0.0
  %2531 = vmatpush1.msra.mxu0 0.0
  %2532 = vmatprep.subr.mxu0 0.0
  %2533 = vmatpush1.msra.mxu0 0.0
  %2534 = vmatprep.subr.mxu0 0.0
  %2535 = vmatpush1.msra.mxu0 0.0
  %2536 = vmatprep.subr.mxu0 0.0
  %2537 = vmatpush1.msra.mxu0 0.0
  %2538 = vmatprep.subr.mxu0 0.0
  %2539 = vmatpush1.msra.mxu0 0.0
  %2540 = vmatprep.subr.mxu0 0.0
  %2541 = vmatpush1.msra.mxu0 0.0
  %2542 = vmatprep.subr.mxu0 0.0
  %2543 = vmatpush1.msra.mxu0 0.0
  %2544 = vmatprep.subr.mxu0 0.0
  %2545 = vmatpush1.msra.mxu0 0.0
  %2546 = vmatprep.subr.mxu0 0.0
  %2547 = vmatpush1.msra.mxu0 0.0
  %2548 = vmatprep.subr.mxu0 0.0
  %2549 = vmatpush1.msra.mxu0 0.0
  %2550 = vmatprep.subr.mxu0 0.0
  %2551 = vmatpush1.msra.mxu0 0.0
  %2552 = vmatprep.subr.mxu0 0.0
  %2553 = vmatpush1.msra.mxu0 0.0
  %2554 = vmatprep.subr.mxu0 0.0
  %2555 = vmatpush1.msra.mxu0 0.0
  %2556 = vmatprep.subr.mxu0 0.0
  %2557 = vmatpush1.msra.mxu0 0.0
  %2558 = vmatprep.subr.mxu0 0.0
  %2559 = vmatpush1.msra.mxu0 0.0
  %2560 = vmatprep.mubr.f32.mxu0 0.0
  %v2561 = vand.u32 %v1992, 4294901760
  %2562 = vmatmul.mubr.f32.gmra.mrb[0].mxu0 %v2561
  %v2563 = vpop.f32.mrb[0].mxu0
  %v2564 = vadd.f32 %v2163, %v2563
  %v2565 = vpop.f32.mrb[0].mxu0
  %2566 = vmatprep.mubr.f32.mxu0 0.0
  %v2567 = vand.u32 %v1995, 4294901760
  %2568 = vmatmul.mubr.f32.gmra.mrb[0].mxu0 %v2567
  %v2569 = vpop.f32.mrb[0].mxu0
  %v2570 = vadd.f32 %v2173, %v2569
  %v2571 = vpop.f32.mrb[0].mxu0
  %2572 = vmatprep.mubr.f32.mxu0 0.0
  %v2573 = vand.u32 %v1998, 4294901760
  %2574 = vmatmul.mubr.f32.gmra.mrb[0].mxu0 %v2573
  %v2575 = vpop.f32.mrb[0].mxu0
  %v2576 = vadd.f32 %v2183, %v2575
  %v2577 = vpop.f32.mrb[0].mxu0
  %2578 = vmatprep.mubr.f32.mxu0 0.0
  %v2579 = vand.u32 %v2001, 4294901760
  %2580 = vmatmul.mubr.f32.gmra.mrb[0].mxu0 %v2579
  %v2581 = vpop.f32.mrb[0].mxu0
  %v2582 = vadd.f32 %v2193, %v2581
  %v2583 = vpop.f32.mrb[0].mxu0
  %2584 = vmatprep.mubr.f32.mxu0 0.0
  %v2585 = vand.u32 %v2004, 4294901760
  %2586 = vmatmul.mubr.f32.gmra.mrb[0].mxu0 %v2585
  %v2587 = vpop.f32.mrb[0].mxu0
  %v2588 = vadd.f32 %v2203, %v2587
  %v2589 = vpop.f32.mrb[0].mxu0
  %2590 = vmatprep.mubr.f32.mxu0 0.0
  %v2591 = vand.u32 %v2007, 4294901760
  %2592 = vmatmul.mubr.f32.gmra.mrb[0].mxu0 %v2591
  %v2593 = vpop.f32.mrb[0].mxu0
  %v2594 = vadd.f32 %v2213, %v2593
  %v2595 = vpop.f32.mrb[0].mxu0
  %2596 = vmatprep.mubr.f32.mxu0 0.0
  %v2597 = vand.u32 %v2010, 4294901760
  %2598 = vmatmul.mubr.f32.gmra.mrb[0].mxu0 %v2597
  %v2599 = vpop.f32.mrb[0].mxu0
  %v2600 = vadd.f32 %v2223, %v2599
  %v2601 = vpop.f32.mrb[0].mxu0
  %2602 = vmatprep.mubr.f32.mxu0 0.0
  %v2603 = vand.u32 %v2013, 4294901760
  %2604 = vmatmul.mubr.f32.gmra.mrb[0].mxu0 %v2603
  %v2605 = vpop.f32.mrb[0].mxu0
  %v2606 = vadd.f32 %v2233, %v2605
  %v2607 = vpop.f32.mrb[0].mxu0
  %2608 = vmatprep.mubr.f32.mxu0 0.0
  %v2609 = vand.u32 %v2016, 4294901760
  %2610 = vmatmul.mubr.f32.gmra.mrb[0].mxu0 %v2609
  %v2611 = vpop.f32.mrb[0].mxu0
  %v2612 = vadd.f32 %v2243, %v2611
  %v2613 = vpop.f32.mrb[0].mxu0
  %2614 = vmatprep.mubr.f32.mxu0 0.0
  %v2615 = vand.u32 %v2019, 4294901760
  %2616 = vmatmul.mubr.f32.gmra.mrb[0].mxu0 %v2615
  %v2617 = vpop.f32.mrb[0].mxu0
  %v2618 = vadd.f32 %v2253, %v2617
  %v2619 = vpop.f32.mrb[0].mxu0
  %2620 = vmatprep.mubr.f32.mxu0 0.0
  %v2621 = vand.u32 %v2022, 4294901760
  %2622 = vmatmul.mubr.f32.gmra.mrb[0].mxu0 %v2621
  %v2623 = vpop.f32.mrb[0].mxu0
  %v2624 = vadd.f32 %v2263, %v2623
  %v2625 = vpop.f32.mrb[0].mxu0
  %2626 = vmatprep.mubr.f32.mxu0 0.0
  %v2627 = vand.u32 %v2025, 4294901760
  %2628 = vmatmul.mubr.f32.gmra.mrb[0].mxu0 %v2627
  %v2629 = vpop.f32.mrb[0].mxu0
  %v2630 = vadd.f32 %v2273, %v2629
  %v2631 = vpop.f32.mrb[0].mxu0
  %2632 = vmatprep.mubr.f32.mxu0 0.0
  %v2633 = vand.u32 %v2028, 4294901760
  %2634 = vmatmul.mubr.f32.gmra.mrb[0].mxu0 %v2633
  %v2635 = vpop.f32.mrb[0].mxu0
  %v2636 = vadd.f32 %v2283, %v2635
  %v2637 = vpop.f32.mrb[0].mxu0
  %2638 = vmatprep.mubr.f32.mxu0 0.0
  %v2639 = vand.u32 %v2031, 4294901760
  %2640 = vmatmul.mubr.f32.gmra.mrb[0].mxu0 %v2639
  %v2641 = vpop.f32.mrb[0].mxu0
  %v2642 = vadd.f32 %v2293, %v2641
  %v2643 = vpop.f32.mrb[0].mxu0
  %2644 = vmatprep.mubr.f32.mxu0 0.0
  %v2645 = vand.u32 %v2034, 4294901760
  %2646 = vmatmul.mubr.f32.gmra.mrb[0].mxu0 %v2645
  %v2647 = vpop.f32.mrb[0].mxu0
  %v2648 = vadd.f32 %v2303, %v2647
  %v2649 = vpop.f32.mrb[0].mxu0
  %2650 = vmatprep.mubr.f32.mxu0 0.0
  %v2651 = vand.u32 %v2037, 4294901760
  %2652 = vmatmul.mubr.f32.gmra.mrb[0].mxu0 %v2651
  %v2653 = vpop.f32.mrb[0].mxu0
  %v2654 = vadd.f32 %v2313, %v2653
  %v2655 = vpop.f32.mrb[0].mxu0
  %2656 = vmatprep.mubr.f32.mxu0 0.0
  %v2657 = vand.u32 %v2040, 4294901760
  %2658 = vmatmul.mubr.f32.gmra.mrb[0].mxu0 %v2657
  %v2659 = vpop.f32.mrb[0].mxu0
  %v2660 = vadd.f32 %v2323, %v2659
  %v2661 = vpop.f32.mrb[0].mxu0
  %2662 = vmatprep.mubr.f32.mxu0 0.0
  %v2663 = vand.u32 %v2043, 4294901760
  %2664 = vmatmul.mubr.f32.gmra.mrb[0].mxu0 %v2663
  %v2665 = vpop.f32.mrb[0].mxu0
  %v2666 = vadd.f32 %v2333, %v2665
  %v2667 = vpop.f32.mrb[0].mxu0
  %2668 = vmatprep.mubr.f32.mxu0 0.0
  %v2669 = vand.u32 %v2046, 4294901760
  %2670 = vmatmul.mubr.f32.gmra.mrb[0].mxu0 %v2669
  %v2671 = vpop.f32.mrb[0].mxu0
  %v2672 = vadd.f32 %v2343, %v2671
  %v2673 = vpop.f32.mrb[0].mxu0
  %2674 = vmatprep.mubr.f32.mxu0 0.0
  %v2675 = vand.u32 %v2049, 4294901760
  %2676 = vmatmul.mubr.f32.gmra.mrb[0].mxu0 %v2675
  %v2677 = vpop.f32.mrb[0].mxu0
  %v2678 = vadd.f32 %v2353, %v2677
  %v2679 = vpop.f32.mrb[0].mxu0
  %2680 = vmatprep.mubr.f32.mxu0 0.0
  %v2681 = vand.u32 %v2052, 4294901760
  %2682 = vmatmul.mubr.f32.gmra.mrb[0].mxu0 %v2681
  %v2683 = vpop.f32.mrb[0].mxu0
  %v2684 = vadd.f32 %v2363, %v2683
  %v2685 = vpop.f32.mrb[0].mxu0
  %2686 = vmatprep.mubr.f32.mxu0 0.0
  %v2687 = vand.u32 %v2055, 4294901760
  %2688 = vmatmul.mubr.f32.gmra.mrb[0].mxu0 %v2687
  %v2689 = vpop.f32.mrb[0].mxu0
  %v2690 = vadd.f32 %v2373, %v2689
  %v2691 = vpop.f32.mrb[0].mxu0
  %2692 = vmatprep.mubr.f32.mxu0 0.0
  %v2693 = vand.u32 %v2058, 4294901760
  %2694 = vmatmul.mubr.f32.gmra.mrb[0].mxu0 %v2693
  %v2695 = vpop.f32.mrb[0].mxu0
  %v2696 = vadd.f32 %v2383, %v2695
  %v2697 = vpop.f32.mrb[0].mxu0
  %2698 = vmatprep.mubr.f32.mxu0 0.0
  %v2699 = vand.u32 %v2061, 4294901760
  %2700 = vmatmul.mubr.f32.gmra.mrb[0].mxu0 %v2699
  %v2701 = vpop.f32.mrb[0].mxu0
  %v2702 = vadd.f32 %v2393, %v2701
  %v2703 = vpop.f32.mrb[0].mxu0
  %2704 = vmatprep.mubr.f32.mxu0 0.0
  %v2705 = vand.u32 %v2064, 4294901760
  %2706 = vmatmul.mubr.f32.gmra.mrb[0].mxu0 %v2705
  %v2707 = vpop.f32.mrb[0].mxu0
  %v2708 = vadd.f32 %v2403, %v2707
  %v2709 = vpop.f32.mrb[0].mxu0
  %2710 = vmatprep.mubr.f32.mxu0 0.0
  %v2711 = vand.u32 %v2067, 4294901760
  %2712 = vmatmul.mubr.f32.gmra.mrb[0].mxu0 %v2711
  %v2713 = vpop.f32.mrb[0].mxu0
  %v2714 = vadd.f32 %v2413, %v2713
  %v2715 = vpop.f32.mrb[0].mxu0
  %2716 = vmatprep.mubr.f32.mxu0 0.0
  %v2717 = vand.u32 %v2070, 4294901760
  %2718 = vmatmul.mubr.f32.gmra.mrb[0].mxu0 %v2717
  %v2719 = vpop.f32.mrb[0].mxu0
  %v2720 = vadd.f32 %v2423, %v2719
  %v2721 = vpop.f32.mrb[0].mxu0
  %2722 = vmatprep.mubr.f32.mxu0 0.0
  %v2723 = vand.u32 %v2073, 4294901760
  %2724 = vmatmul.mubr.f32.gmra.mrb[0].mxu0 %v2723
  %v2725 = vpop.f32.mrb[0].mxu0
  %v2726 = vadd.f32 %v2433, %v2725
  %v2727 = vpop.f32.mrb[0].mxu0
  %2728 = vmatprep.mubr.f32.mxu0 0.0
  %v2729 = vand.u32 %v2076, 4294901760
  %2730 = vmatmul.mubr.f32.gmra.mrb[0].mxu0 %v2729
  %v2731 = vpop.f32.mrb[0].mxu0
  %v2732 = vadd.f32 %v2443, %v2731
  %v2733 = vpop.f32.mrb[0].mxu0
  %2734 = vmatprep.mubr.f32.mxu0 0.0
  %v2735 = vand.u32 %v2079, 4294901760
  %2736 = vmatmul.mubr.f32.gmra.mrb[0].mxu0 %v2735
  %v2737 = vpop.f32.mrb[0].mxu0
  %v2738 = vadd.f32 %v2453, %v2737
  %v2739 = vpop.f32.mrb[0].mxu0
  %2740 = vmatprep.mubr.f32.mxu0 0.0
  %v2741 = vand.u32 %v2082, 4294901760
  %2742 = vmatmul.mubr.f32.gmra.mrb[0].mxu0 %v2741
  %v2743 = vpop.f32.mrb[0].mxu0
  %v2744 = vadd.f32 %v2463, %v2743
  %v2745 = vpop.f32.mrb[0].mxu0
  %2746 = vmatprep.mubr.f32.mxu0 0.0
  %v2747 = vand.u32 %v2085, 4294901760
  %2748 = vmatmul.mubr.f32.gmra.mrb[0].mxu0 %v2747
  %v2749 = vpop.f32.mrb[0].mxu0
  %v2750 = vadd.f32 %v2473, %v2749
  %v2751 = vpop.f32.mrb[0].mxu0
  %2752 = vdwg.mxu0
  %2753 = vmatprep.subr.mxu0 0.0
  %v2754 = vand.u32 %v1982, 4294901760
  %v2755 = vsub.f32 %v1982, %v2754
  %2756 = vmatpush1.msra.mxu0 %v2755
  %2757 = vmatprep.subr.mxu0 0.0
  %v2758 = vand.u32 %v1983, 4294901760
  %v2759 = vsub.f32 %v1983, %v2758
  %2760 = vmatpush1.msra.mxu0 %v2759
  %2761 = vmatprep.subr.mxu0 0.0
  %v2762 = vand.u32 %v1984, 4294901760
  %v2763 = vsub.f32 %v1984, %v2762
  %2764 = vmatpush1.msra.mxu0 %v2763
  %2765 = vmatprep.subr.mxu0 0.0
  %v2766 = vand.u32 %v1985, 4294901760
  %v2767 = vsub.f32 %v1985, %v2766
  %2768 = vmatpush1.msra.mxu0 %v2767
  %2769 = vmatprep.subr.mxu0 0.0
  %2770 = vmatpush1.msra.mxu0 0.0
  %2771 = vmatprep.subr.mxu0 0.0
  %2772 = vmatpush1.msra.mxu0 0.0
  %2773 = vmatprep.subr.mxu0 0.0
  %2774 = vmatpush1.msra.mxu0 0.0
  %2775 = vmatprep.subr.mxu0 0.0
  %2776 = vmatpush1.msra.mxu0 0.0
  %2777 = vmatprep.subr.mxu0 0.0
  %2778 = vmatpush1.msra.mxu0 0.0
  %2779 = vmatprep.subr.mxu0 0.0
  %2780 = vmatpush1.msra.mxu0 0.0
  %2781 = vmatprep.subr.mxu0 0.0
  %2782 = vmatpush1.msra.mxu0 0.0
  %2783 = vmatprep.subr.mxu0 0.0
  %2784 = vmatpush1.msra.mxu0 0.0
  %2785 = vmatprep.subr.mxu0 0.0
  %2786 = vmatpush1.msra.mxu0 0.0
  %2787 = vmatprep.subr.mxu0 0.0
  %2788 = vmatpush1.msra.mxu0 0.0
  %2789 = vmatprep.subr.mxu0 0.0
  %2790 = vmatpush1.msra.mxu0 0.0
  %2791 = vmatprep.subr.mxu0 0.0
  %2792 = vmatpush1.msra.mxu0 0.0
  %2793 = vmatprep.subr.mxu0 0.0
  %2794 = vmatpush1.msra.mxu0 0.0
  %2795 = vmatprep.subr.mxu0 0.0
  %2796 = vmatpush1.msra.mxu0 0.0
  %2797 = vmatprep.subr.mxu0 0.0
  %2798 = vmatpush1.msra.mxu0 0.0
  %2799 = vmatprep.subr.mxu0 0.0
  %2800 = vmatpush1.msra.mxu0 0.0
  %2801 = vmatprep.subr.mxu0 0.0
  %2802 = vmatpush1.msra.mxu0 0.0
  %2803 = vmatprep.subr.mxu0 0.0
  %2804 = vmatpush1.msra.mxu0 0.0
  %2805 = vmatprep.subr.mxu0 0.0
  %2806 = vmatpush1.msra.mxu0 0.0
  %2807 = vmatprep.subr.mxu0 0.0
  %2808 = vmatpush1.msra.mxu0 0.0
  %2809 = vmatprep.subr.mxu0 0.0
  %2810 = vmatpush1.msra.mxu0 0.0
  %2811 = vmatprep.subr.mxu0 0.0
  %2812 = vmatpush1.msra.mxu0 0.0
  %2813 = vmatprep.subr.mxu0 0.0
  %2814 = vmatpush1.msra.mxu0 0.0
  %2815 = vmatprep.subr.mxu0 0.0
  %2816 = vmatpush1.msra.mxu0 0.0
  %2817 = vmatprep.subr.mxu0 0.0
  %2818 = vmatpush1.msra.mxu0 0.0
  %2819 = vmatprep.subr.mxu0 0.0
  %2820 = vmatpush1.msra.mxu0 0.0
  %2821 = vmatprep.subr.mxu0 0.0
  %2822 = vmatpush1.msra.mxu0 0.0
  %2823 = vmatprep.subr.mxu0 0.0
  %2824 = vmatpush1.msra.mxu0 0.0
  %2825 = vmatprep.mubr.f32.mxu0 0.0
  %v2826 = vand.u32 %v1992, 4294901760
  %v2827 = vsub.f32 %v1992, %v2826
  %2828 = vmatmul.mubr.f32.gmra.mrb[0].mxu0 %v2827
  %v2829 = vpop.f32.mrb[0].mxu0
  %v2830 = vadd.f32 %v2564, %v2829
  %v2831 = vpop.f32.mrb[0].mxu0
  %2832 = vmatprep.mubr.f32.mxu0 0.0
  %v2833 = vand.u32 %v1995, 4294901760
  %v2834 = vsub.f32 %v1995, %v2833
  %2835 = vmatmul.mubr.f32.gmra.mrb[0].mxu0 %v2834
  %v2836 = vpop.f32.mrb[0].mxu0
  %v2837 = vadd.f32 %v2570, %v2836
  %v2838 = vpop.f32.mrb[0].mxu0
  %2839 = vmatprep.mubr.f32.mxu0 0.0
  %v2840 = vand.u32 %v1998, 4294901760
  %v2841 = vsub.f32 %v1998, %v2840
  %2842 = vmatmul.mubr.f32.gmra.mrb[0].mxu0 %v2841
  %v2843 = vpop.f32.mrb[0].mxu0
  %v2844 = vadd.f32 %v2576, %v2843
  %v2845 = vpop.f32.mrb[0].mxu0
  %2846 = vmatprep.mubr.f32.mxu0 0.0
  %v2847 = vand.u32 %v2001, 4294901760
  %v2848 = vsub.f32 %v2001, %v2847
  %2849 = vmatmul.mubr.f32.gmra.mrb[0].mxu0 %v2848
  %v2850 = vpop.f32.mrb[0].mxu0
  %v2851 = vadd.f32 %v2582, %v2850
  %v2852 = vpop.f32.mrb[0].mxu0
  %2853 = vmatprep.mubr.f32.mxu0 0.0
  %v2854 = vand.u32 %v2004, 4294901760
  %v2855 = vsub.f32 %v2004, %v2854
  %2856 = vmatmul.mubr.f32.gmra.mrb[0].mxu0 %v2855
  %v2857 = vpop.f32.mrb[0].mxu0
  %v2858 = vadd.f32 %v2588, %v2857
  %v2859 = vpop.f32.mrb[0].mxu0
  %2860 = vmatprep.mubr.f32.mxu0 0.0
  %v2861 = vand.u32 %v2007, 4294901760
  %v2862 = vsub.f32 %v2007, %v2861
  %2863 = vmatmul.mubr.f32.gmra.mrb[0].mxu0 %v2862
  %v2864 = vpop.f32.mrb[0].mxu0
  %v2865 = vadd.f32 %v2594, %v2864
  %v2866 = vpop.f32.mrb[0].mxu0
  %2867 = vmatprep.mubr.f32.mxu0 0.0
  %v2868 = vand.u32 %v2010, 4294901760
  %v2869 = vsub.f32 %v2010, %v2868
  %2870 = vmatmul.mubr.f32.gmra.mrb[0].mxu0 %v2869
  %v2871 = vpop.f32.mrb[0].mxu0
  %v2872 = vadd.f32 %v2600, %v2871
  %v2873 = vpop.f32.mrb[0].mxu0
  %2874 = vmatprep.mubr.f32.mxu0 0.0
  %v2875 = vand.u32 %v2013, 4294901760
  %v2876 = vsub.f32 %v2013, %v2875
  %2877 = vmatmul.mubr.f32.gmra.mrb[0].mxu0 %v2876
  %v2878 = vpop.f32.mrb[0].mxu0
  %v2879 = vadd.f32 %v2606, %v2878
  %v2880 = vpop.f32.mrb[0].mxu0
  %2881 = vmatprep.mubr.f32.mxu0 0.0
  %v2882 = vand.u32 %v2016, 4294901760
  %v2883 = vsub.f32 %v2016, %v2882
  %2884 = vmatmul.mubr.f32.gmra.mrb[0].mxu0 %v2883
  %v2885 = vpop.f32.mrb[0].mxu0
  %v2886 = vadd.f32 %v2612, %v2885
  %v2887 = vpop.f32.mrb[0].mxu0
  %2888 = vmatprep.mubr.f32.mxu0 0.0
  %v2889 = vand.u32 %v2019, 4294901760
  %v2890 = vsub.f32 %v2019, %v2889
  %2891 = vmatmul.mubr.f32.gmra.mrb[0].mxu0 %v2890
  %v2892 = vpop.f32.mrb[0].mxu0
  %v2893 = vadd.f32 %v2618, %v2892
  %v2894 = vpop.f32.mrb[0].mxu0
  %2895 = vmatprep.mubr.f32.mxu0 0.0
  %v2896 = vand.u32 %v2022, 4294901760
  %v2897 = vsub.f32 %v2022, %v2896
  %2898 = vmatmul.mubr.f32.gmra.mrb[0].mxu0 %v2897
  %v2899 = vpop.f32.mrb[0].mxu0
  %v2900 = vadd.f32 %v2624, %v2899
  %v2901 = vpop.f32.mrb[0].mxu0
  %2902 = vmatprep.mubr.f32.mxu0 0.0
  %v2903 = vand.u32 %v2025, 4294901760
  %v2904 = vsub.f32 %v2025, %v2903
  %2905 = vmatmul.mubr.f32.gmra.mrb[0].mxu0 %v2904
  %v2906 = vpop.f32.mrb[0].mxu0
  %v2907 = vadd.f32 %v2630, %v2906
  %v2908 = vpop.f32.mrb[0].mxu0
  %2909 = vmatprep.mubr.f32.mxu0 0.0
  %v2910 = vand.u32 %v2028, 4294901760
  %v2911 = vsub.f32 %v2028, %v2910
  %2912 = vmatmul.mubr.f32.gmra.mrb[0].mxu0 %v2911
  %v2913 = vpop.f32.mrb[0].mxu0
  %v2914 = vadd.f32 %v2636, %v2913
  %v2915 = vpop.f32.mrb[0].mxu0
  %2916 = vmatprep.mubr.f32.mxu0 0.0
  %v2917 = vand.u32 %v2031, 4294901760
  %v2918 = vsub.f32 %v2031, %v2917
  %2919 = vmatmul.mubr.f32.gmra.mrb[0].mxu0 %v2918
  %v2920 = vpop.f32.mrb[0].mxu0
  %v2921 = vadd.f32 %v2642, %v2920
  %v2922 = vpop.f32.mrb[0].mxu0
  %2923 = vmatprep.mubr.f32.mxu0 0.0
  %v2924 = vand.u32 %v2034, 4294901760
  %v2925 = vsub.f32 %v2034, %v2924
  %2926 = vmatmul.mubr.f32.gmra.mrb[0].mxu0 %v2925
  %v2927 = vpop.f32.mrb[0].mxu0
  %v2928 = vadd.f32 %v2648, %v2927
  %v2929 = vpop.f32.mrb[0].mxu0
  %2930 = vmatprep.mubr.f32.mxu0 0.0
  %v2931 = vand.u32 %v2037, 4294901760
  %v2932 = vsub.f32 %v2037, %v2931
  %2933 = vmatmul.mubr.f32.gmra.mrb[0].mxu0 %v2932
  %v2934 = vpop.f32.mrb[0].mxu0
  %v2935 = vadd.f32 %v2654, %v2934
  %v2936 = vpop.f32.mrb[0].mxu0
  %2937 = vmatprep.mubr.f32.mxu0 0.0
  %v2938 = vand.u32 %v2040, 4294901760
  %v2939 = vsub.f32 %v2040, %v2938
  %2940 = vmatmul.mubr.f32.gmra.mrb[0].mxu0 %v2939
  %v2941 = vpop.f32.mrb[0].mxu0
  %v2942 = vadd.f32 %v2660, %v2941
  %v2943 = vpop.f32.mrb[0].mxu0
  %2944 = vmatprep.mubr.f32.mxu0 0.0
  %v2945 = vand.u32 %v2043, 4294901760
  %v2946 = vsub.f32 %v2043, %v2945
  %2947 = vmatmul.mubr.f32.gmra.mrb[0].mxu0 %v2946
  %v2948 = vpop.f32.mrb[0].mxu0
  %v2949 = vadd.f32 %v2666, %v2948
  %v2950 = vpop.f32.mrb[0].mxu0
  %2951 = vmatprep.mubr.f32.mxu0 0.0
  %v2952 = vand.u32 %v2046, 4294901760
  %v2953 = vsub.f32 %v2046, %v2952
  %2954 = vmatmul.mubr.f32.gmra.mrb[0].mxu0 %v2953
  %v2955 = vpop.f32.mrb[0].mxu0
  %v2956 = vadd.f32 %v2672, %v2955
  %v2957 = vpop.f32.mrb[0].mxu0
  %2958 = vmatprep.mubr.f32.mxu0 0.0
  %v2959 = vand.u32 %v2049, 4294901760
  %v2960 = vsub.f32 %v2049, %v2959
  %2961 = vmatmul.mubr.f32.gmra.mrb[0].mxu0 %v2960
  %v2962 = vpop.f32.mrb[0].mxu0
  %v2963 = vadd.f32 %v2678, %v2962
  %v2964 = vpop.f32.mrb[0].mxu0
  %2965 = vmatprep.mubr.f32.mxu0 0.0
  %v2966 = vand.u32 %v2052, 4294901760
  %v2967 = vsub.f32 %v2052, %v2966
  %2968 = vmatmul.mubr.f32.gmra.mrb[0].mxu0 %v2967
  %v2969 = vpop.f32.mrb[0].mxu0
  %v2970 = vadd.f32 %v2684, %v2969
  %v2971 = vpop.f32.mrb[0].mxu0
  %2972 = vmatprep.mubr.f32.mxu0 0.0
  %v2973 = vand.u32 %v2055, 4294901760
  %v2974 = vsub.f32 %v2055, %v2973
  %2975 = vmatmul.mubr.f32.gmra.mrb[0].mxu0 %v2974
  %v2976 = vpop.f32.mrb[0].mxu0
  %v2977 = vadd.f32 %v2690, %v2976
  %v2978 = vpop.f32.mrb[0].mxu0
  %2979 = vmatprep.mubr.f32.mxu0 0.0
  %v2980 = vand.u32 %v2058, 4294901760
  %v2981 = vsub.f32 %v2058, %v2980
  %2982 = vmatmul.mubr.f32.gmra.mrb[0].mxu0 %v2981
  %v2983 = vpop.f32.mrb[0].mxu0
  %v2984 = vadd.f32 %v2696, %v2983
  %v2985 = vpop.f32.mrb[0].mxu0
  %2986 = vmatprep.mubr.f32.mxu0 0.0
  %v2987 = vand.u32 %v2061, 4294901760
  %v2988 = vsub.f32 %v2061, %v2987
  %2989 = vmatmul.mubr.f32.gmra.mrb[0].mxu0 %v2988
  %v2990 = vpop.f32.mrb[0].mxu0
  %v2991 = vadd.f32 %v2702, %v2990
  %v2992 = vpop.f32.mrb[0].mxu0
  %2993 = vmatprep.mubr.f32.mxu0 0.0
  %v2994 = vand.u32 %v2064, 4294901760
  %v2995 = vsub.f32 %v2064, %v2994
  %2996 = vmatmul.mubr.f32.gmra.mrb[0].mxu0 %v2995
  %v2997 = vpop.f32.mrb[0].mxu0
  %v2998 = vadd.f32 %v2708, %v2997
  %v2999 = vpop.f32.mrb[0].mxu0
  %3000 = vmatprep.mubr.f32.mxu0 0.0
  %v3001 = vand.u32 %v2067, 4294901760
  %v3002 = vsub.f32 %v2067, %v3001
  %3003 = vmatmul.mubr.f32.gmra.mrb[0].mxu0 %v3002
  %v3004 = vpop.f32.mrb[0].mxu0
  %v3005 = vadd.f32 %v2714, %v3004
  %v3006 = vpop.f32.mrb[0].mxu0
  %3007 = vmatprep.mubr.f32.mxu0 0.0
  %v3008 = vand.u32 %v2070, 4294901760
  %v3009 = vsub.f32 %v2070, %v3008
  %3010 = vmatmul.mubr.f32.gmra.mrb[0].mxu0 %v3009
  %v3011 = vpop.f32.mrb[0].mxu0
  %v3012 = vadd.f32 %v2720, %v3011
  %v3013 = vpop.f32.mrb[0].mxu0
  %3014 = vmatprep.mubr.f32.mxu0 0.0
  %v3015 = vand.u32 %v2073, 4294901760
  %v3016 = vsub.f32 %v2073, %v3015
  %3017 = vmatmul.mubr.f32.gmra.mrb[0].mxu0 %v3016
  %v3018 = vpop.f32.mrb[0].mxu0
  %v3019 = vadd.f32 %v2726, %v3018
  %v3020 = vpop.f32.mrb[0].mxu0
  %3021 = vmatprep.mubr.f32.mxu0 0.0
  %v3022 = vand.u32 %v2076, 4294901760
  %v3023 = vsub.f32 %v2076, %v3022
  %3024 = vmatmul.mubr.f32.gmra.mrb[0].mxu0 %v3023
  %v3025 = vpop.f32.mrb[0].mxu0
  %v3026 = vadd.f32 %v2732, %v3025
  %v3027 = vpop.f32.mrb[0].mxu0
  %3028 = vmatprep.mubr.f32.mxu0 0.0
  %v3029 = vand.u32 %v2079, 4294901760
  %v3030 = vsub.f32 %v2079, %v3029
  %3031 = vmatmul.mubr.f32.gmra.mrb[0].mxu0 %v3030
  %v3032 = vpop.f32.mrb[0].mxu0
  %v3033 = vadd.f32 %v2738, %v3032
  %v3034 = vpop.f32.mrb[0].mxu0
  %3035 = vmatprep.mubr.f32.mxu0 0.0
  %v3036 = vand.u32 %v2082, 4294901760
  %v3037 = vsub.f32 %v2082, %v3036
  %3038 = vmatmul.mubr.f32.gmra.mrb[0].mxu0 %v3037
  %v3039 = vpop.f32.mrb[0].mxu0
  %v3040 = vadd.f32 %v2744, %v3039
  %v3041 = vpop.f32.mrb[0].mxu0
  %3042 = vmatprep.mubr.f32.mxu0 0.0
  %v3043 = vand.u32 %v2085, 4294901760
  %v3044 = vsub.f32 %v2085, %v3043
  %3045 = vmatmul.mubr.f32.gmra.mrb[0].mxu0 %v3044
  %v3046 = vpop.f32.mrb[0].mxu0
  %v3047 = vadd.f32 %v2750, %v3046
  %v3048 = vpop.f32.mrb[0].mxu0
  %3049 = vdwg.mxu0
  %3050 = vmatprep.subr.mxu0 0.0
  %v3051 = vand.u32 %v1982, 4294901760
  %3052 = vmatpush1.msra.mxu0 %v3051
  %3053 = vmatprep.subr.mxu0 0.0
  %v3054 = vand.u32 %v1983, 4294901760
  %3055 = vmatpush1.msra.mxu0 %v3054
  %3056 = vmatprep.subr.mxu0 0.0
  %v3057 = vand.u32 %v1984, 4294901760
  %3058 = vmatpush1.msra.mxu0 %v3057
  %3059 = vmatprep.subr.mxu0 0.0
  %v3060 = vand.u32 %v1985, 4294901760
  %3061 = vmatpush1.msra.mxu0 %v3060
  %3062 = vmatprep.subr.mxu0 0.0
  %3063 = vmatpush1.msra.mxu0 0.0
  %3064 = vmatprep.subr.mxu0 0.0
  %3065 = vmatpush1.msra.mxu0 0.0
  %3066 = vmatprep.subr.mxu0 0.0
  %3067 = vmatpush1.msra.mxu0 0.0
  %3068 = vmatprep.subr.mxu0 0.0
  %3069 = vmatpush1.msra.mxu0 0.0
  %3070 = vmatprep.subr.mxu0 0.0
  %3071 = vmatpush1.msra.mxu0 0.0
  %3072 = vmatprep.subr.mxu0 0.0
  %3073 = vmatpush1.msra.mxu0 0.0
  %3074 = vmatprep.subr.mxu0 0.0
  %3075 = vmatpush1.msra.mxu0 0.0
  %3076 = vmatprep.subr.mxu0 0.0
  %3077 = vmatpush1.msra.mxu0 0.0
  %3078 = vmatprep.subr.mxu0 0.0
  %3079 = vmatpush1.msra.mxu0 0.0
  %3080 = vmatprep.subr.mxu0 0.0
  %3081 = vmatpush1.msra.mxu0 0.0
  %3082 = vmatprep.subr.mxu0 0.0
  %3083 = vmatpush1.msra.mxu0 0.0
  %3084 = vmatprep.subr.mxu0 0.0
  %3085 = vmatpush1.msra.mxu0 0.0
  %3086 = vmatprep.subr.mxu0 0.0
  %3087 = vmatpush1.msra.mxu0 0.0
  %3088 = vmatprep.subr.mxu0 0.0
  %3089 = vmatpush1.msra.mxu0 0.0
  %3090 = vmatprep.subr.mxu0 0.0
  %3091 = vmatpush1.msra.mxu0 0.0
  %3092 = vmatprep.subr.mxu0 0.0
  %3093 = vmatpush1.msra.mxu0 0.0
  %3094 = vmatprep.subr.mxu0 0.0
  %3095 = vmatpush1.msra.mxu0 0.0
  %3096 = vmatprep.subr.mxu0 0.0
  %3097 = vmatpush1.msra.mxu0 0.0
  %3098 = vmatprep.subr.mxu0 0.0
  %3099 = vmatpush1.msra.mxu0 0.0
  %3100 = vmatprep.subr.mxu0 0.0
  %3101 = vmatpush1.msra.mxu0 0.0
  %3102 = vmatprep.subr.mxu0 0.0
  %3103 = vmatpush1.msra.mxu0 0.0
  %3104 = vmatprep.subr.mxu0 0.0
  %3105 = vmatpush1.msra.mxu0 0.0
  %3106 = vmatprep.subr.mxu0 0.0
  %3107 = vmatpush1.msra.mxu0 0.0
  %3108 = vmatprep.subr.mxu0 0.0
  %3109 = vmatpush1.msra.mxu0 0.0
  %3110 = vmatprep.subr.mxu0 0.0
  %3111 = vmatpush1.msra.mxu0 0.0
  %3112 = vmatprep.subr.mxu0 0.0
  %3113 = vmatpush1.msra.mxu0 0.0
  %3114 = vmatprep.subr.mxu0 0.0
  %3115 = vmatpush1.msra.mxu0 0.0
  %3116 = vmatprep.subr.mxu0 0.0
  %3117 = vmatpush1.msra.mxu0 0.0
  %3118 = vmatprep.mubr.f32.mxu0 0.0
  %v3119 = vand.u32 %v1992, 4294901760
  %v3120 = vsub.f32 %v1992, %v3119
  %v3121 = vand.u32 %v3120, 4294901760
  %3122 = vmatmul.mubr.f32.gmra.mrb[0].mxu0 %v3121
  %v3123 = vpop.f32.mrb[0].mxu0
  %v3124 = vadd.f32 %v2830, %v3123
  %v3125 = vpop.f32.mrb[0].mxu0
  %3126 = vmatprep.mubr.f32.mxu0 0.0
  %v3127 = vand.u32 %v1995, 4294901760
  %v3128 = vsub.f32 %v1995, %v3127
  %v3129 = vand.u32 %v3128, 4294901760
  %3130 = vmatmul.mubr.f32.gmra.mrb[0].mxu0 %v3129
  %v3131 = vpop.f32.mrb[0].mxu0
  %v3132 = vadd.f32 %v2837, %v3131
  %v3133 = vpop.f32.mrb[0].mxu0
  %3134 = vmatprep.mubr.f32.mxu0 0.0
  %v3135 = vand.u32 %v1998, 4294901760
  %v3136 = vsub.f32 %v1998, %v3135
  %v3137 = vand.u32 %v3136, 4294901760
  %3138 = vmatmul.mubr.f32.gmra.mrb[0].mxu0 %v3137
  %v3139 = vpop.f32.mrb[0].mxu0
  %v3140 = vadd.f32 %v2844, %v3139
  %v3141 = vpop.f32.mrb[0].mxu0
  %3142 = vmatprep.mubr.f32.mxu0 0.0
  %v3143 = vand.u32 %v2001, 4294901760
  %v3144 = vsub.f32 %v2001, %v3143
  %v3145 = vand.u32 %v3144, 4294901760
  %3146 = vmatmul.mubr.f32.gmra.mrb[0].mxu0 %v3145
  %v3147 = vpop.f32.mrb[0].mxu0
  %v3148 = vadd.f32 %v2851, %v3147
  %v3149 = vpop.f32.mrb[0].mxu0
  %3150 = vmatprep.mubr.f32.mxu0 0.0
  %v3151 = vand.u32 %v2004, 4294901760
  %v3152 = vsub.f32 %v2004, %v3151
  %v3153 = vand.u32 %v3152, 4294901760
  %3154 = vmatmul.mubr.f32.gmra.mrb[0].mxu0 %v3153
  %v3155 = vpop.f32.mrb[0].mxu0
  %v3156 = vadd.f32 %v2858, %v3155
  %v3157 = vpop.f32.mrb[0].mxu0
  %3158 = vmatprep.mubr.f32.mxu0 0.0
  %v3159 = vand.u32 %v2007, 4294901760
  %v3160 = vsub.f32 %v2007, %v3159
  %v3161 = vand.u32 %v3160, 4294901760
  %3162 = vmatmul.mubr.f32.gmra.mrb[0].mxu0 %v3161
  %v3163 = vpop.f32.mrb[0].mxu0
  %v3164 = vadd.f32 %v2865, %v3163
  %v3165 = vpop.f32.mrb[0].mxu0
  %3166 = vmatprep.mubr.f32.mxu0 0.0
  %v3167 = vand.u32 %v2010, 4294901760
  %v3168 = vsub.f32 %v2010, %v3167
  %v3169 = vand.u32 %v3168, 4294901760
  %3170 = vmatmul.mubr.f32.gmra.mrb[0].mxu0 %v3169
  %v3171 = vpop.f32.mrb[0].mxu0
  %v3172 = vadd.f32 %v2872, %v3171
  %v3173 = vpop.f32.mrb[0].mxu0
  %3174 = vmatprep.mubr.f32.mxu0 0.0
  %v3175 = vand.u32 %v2013, 4294901760
  %v3176 = vsub.f32 %v2013, %v3175
  %v3177 = vand.u32 %v3176, 4294901760
  %3178 = vmatmul.mubr.f32.gmra.mrb[0].mxu0 %v3177
  %v3179 = vpop.f32.mrb[0].mxu0
  %v3180 = vadd.f32 %v2879, %v3179
  %v3181 = vpop.f32.mrb[0].mxu0
  %3182 = vmatprep.mubr.f32.mxu0 0.0
  %v3183 = vand.u32 %v2016, 4294901760
  %v3184 = vsub.f32 %v2016, %v3183
  %v3185 = vand.u32 %v3184, 4294901760
  %3186 = vmatmul.mubr.f32.gmra.mrb[0].mxu0 %v3185
  %v3187 = vpop.f32.mrb[0].mxu0
  %v3188 = vadd.f32 %v2886, %v3187
  %v3189 = vpop.f32.mrb[0].mxu0
  %3190 = vmatprep.mubr.f32.mxu0 0.0
  %v3191 = vand.u32 %v2019, 4294901760
  %v3192 = vsub.f32 %v2019, %v3191
  %v3193 = vand.u32 %v3192, 4294901760
  %3194 = vmatmul.mubr.f32.gmra.mrb[0].mxu0 %v3193
  %v3195 = vpop.f32.mrb[0].mxu0
  %v3196 = vadd.f32 %v2893, %v3195
  %v3197 = vpop.f32.mrb[0].mxu0
  %3198 = vmatprep.mubr.f32.mxu0 0.0
  %v3199 = vand.u32 %v2022, 4294901760
  %v3200 = vsub.f32 %v2022, %v3199
  %v3201 = vand.u32 %v3200, 4294901760
  %3202 = vmatmul.mubr.f32.gmra.mrb[0].mxu0 %v3201
  %v3203 = vpop.f32.mrb[0].mxu0
  %v3204 = vadd.f32 %v2900, %v3203
  %v3205 = vpop.f32.mrb[0].mxu0
  %3206 = vmatprep.mubr.f32.mxu0 0.0
  %v3207 = vand.u32 %v2025, 4294901760
  %v3208 = vsub.f32 %v2025, %v3207
  %v3209 = vand.u32 %v3208, 4294901760
  %3210 = vmatmul.mubr.f32.gmra.mrb[0].mxu0 %v3209
  %v3211 = vpop.f32.mrb[0].mxu0
  %v3212 = vadd.f32 %v2907, %v3211
  %v3213 = vpop.f32.mrb[0].mxu0
  %3214 = vmatprep.mubr.f32.mxu0 0.0
  %v3215 = vand.u32 %v2028, 4294901760
  %v3216 = vsub.f32 %v2028, %v3215
  %v3217 = vand.u32 %v3216, 4294901760
  %3218 = vmatmul.mubr.f32.gmra.mrb[0].mxu0 %v3217
  %v3219 = vpop.f32.mrb[0].mxu0
  %v3220 = vadd.f32 %v2914, %v3219
  %v3221 = vpop.f32.mrb[0].mxu0
  %3222 = vmatprep.mubr.f32.mxu0 0.0
  %v3223 = vand.u32 %v2031, 4294901760
  %v3224 = vsub.f32 %v2031, %v3223
  %v3225 = vand.u32 %v3224, 4294901760
  %3226 = vmatmul.mubr.f32.gmra.mrb[0].mxu0 %v3225
  %v3227 = vpop.f32.mrb[0].mxu0
  %v3228 = vadd.f32 %v2921, %v3227
  %v3229 = vpop.f32.mrb[0].mxu0
  %3230 = vmatprep.mubr.f32.mxu0 0.0
  %v3231 = vand.u32 %v2034, 4294901760
  %v3232 = vsub.f32 %v2034, %v3231
  %v3233 = vand.u32 %v3232, 4294901760
  %3234 = vmatmul.mubr.f32.gmra.mrb[0].mxu0 %v3233
  %v3235 = vpop.f32.mrb[0].mxu0
  %v3236 = vadd.f32 %v2928, %v3235
  %v3237 = vpop.f32.mrb[0].mxu0
  %3238 = vmatprep.mubr.f32.mxu0 0.0
  %v3239 = vand.u32 %v2037, 4294901760
  %v3240 = vsub.f32 %v2037, %v3239
  %v3241 = vand.u32 %v3240, 4294901760
  %3242 = vmatmul.mubr.f32.gmra.mrb[0].mxu0 %v3241
  %v3243 = vpop.f32.mrb[0].mxu0
  %v3244 = vadd.f32 %v2935, %v3243
  %v3245 = vpop.f32.mrb[0].mxu0
  %3246 = vmatprep.mubr.f32.mxu0 0.0
  %v3247 = vand.u32 %v2040, 4294901760
  %v3248 = vsub.f32 %v2040, %v3247
  %v3249 = vand.u32 %v3248, 4294901760
  %3250 = vmatmul.mubr.f32.gmra.mrb[0].mxu0 %v3249
  %v3251 = vpop.f32.mrb[0].mxu0
  %v3252 = vadd.f32 %v2942, %v3251
  %v3253 = vpop.f32.mrb[0].mxu0
  %3254 = vmatprep.mubr.f32.mxu0 0.0
  %v3255 = vand.u32 %v2043, 4294901760
  %v3256 = vsub.f32 %v2043, %v3255
  %v3257 = vand.u32 %v3256, 4294901760
  %3258 = vmatmul.mubr.f32.gmra.mrb[0].mxu0 %v3257
  %v3259 = vpop.f32.mrb[0].mxu0
  %v3260 = vadd.f32 %v2949, %v3259
  %v3261 = vpop.f32.mrb[0].mxu0
  %3262 = vmatprep.mubr.f32.mxu0 0.0
  %v3263 = vand.u32 %v2046, 4294901760
  %v3264 = vsub.f32 %v2046, %v3263
  %v3265 = vand.u32 %v3264, 4294901760
  %3266 = vmatmul.mubr.f32.gmra.mrb[0].mxu0 %v3265
  %v3267 = vpop.f32.mrb[0].mxu0
  %v3268 = vadd.f32 %v2956, %v3267
  %v3269 = vpop.f32.mrb[0].mxu0
  %3270 = vmatprep.mubr.f32.mxu0 0.0
  %v3271 = vand.u32 %v2049, 4294901760
  %v3272 = vsub.f32 %v2049, %v3271
  %v3273 = vand.u32 %v3272, 4294901760
  %3274 = vmatmul.mubr.f32.gmra.mrb[0].mxu0 %v3273
  %v3275 = vpop.f32.mrb[0].mxu0
  %v3276 = vadd.f32 %v2963, %v3275
  %v3277 = vpop.f32.mrb[0].mxu0
  %3278 = vmatprep.mubr.f32.mxu0 0.0
  %v3279 = vand.u32 %v2052, 4294901760
  %v3280 = vsub.f32 %v2052, %v3279
  %v3281 = vand.u32 %v3280, 4294901760
  %3282 = vmatmul.mubr.f32.gmra.mrb[0].mxu0 %v3281
  %v3283 = vpop.f32.mrb[0].mxu0
  %v3284 = vadd.f32 %v2970, %v3283
  %v3285 = vpop.f32.mrb[0].mxu0
  %3286 = vmatprep.mubr.f32.mxu0 0.0
  %v3287 = vand.u32 %v2055, 4294901760
  %v3288 = vsub.f32 %v2055, %v3287
  %v3289 = vand.u32 %v3288, 4294901760
  %3290 = vmatmul.mubr.f32.gmra.mrb[0].mxu0 %v3289
  %v3291 = vpop.f32.mrb[0].mxu0
  %v3292 = vadd.f32 %v2977, %v3291
  %v3293 = vpop.f32.mrb[0].mxu0
  %3294 = vmatprep.mubr.f32.mxu0 0.0
  %v3295 = vand.u32 %v2058, 4294901760
  %v3296 = vsub.f32 %v2058, %v3295
  %v3297 = vand.u32 %v3296, 4294901760
  %3298 = vmatmul.mubr.f32.gmra.mrb[0].mxu0 %v3297
  %v3299 = vpop.f32.mrb[0].mxu0
  %v3300 = vadd.f32 %v2984, %v3299
  %v3301 = vpop.f32.mrb[0].mxu0
  %3302 = vmatprep.mubr.f32.mxu0 0.0
  %v3303 = vand.u32 %v2061, 4294901760
  %v3304 = vsub.f32 %v2061, %v3303
  %v3305 = vand.u32 %v3304, 4294901760
  %3306 = vmatmul.mubr.f32.gmra.mrb[0].mxu0 %v3305
  %v3307 = vpop.f32.mrb[0].mxu0
  %v3308 = vadd.f32 %v2991, %v3307
  %v3309 = vpop.f32.mrb[0].mxu0
  %3310 = vmatprep.mubr.f32.mxu0 0.0
  %v3311 = vand.u32 %v2064, 4294901760
  %v3312 = vsub.f32 %v2064, %v3311
  %v3313 = vand.u32 %v3312, 4294901760
  %3314 = vmatmul.mubr.f32.gmra.mrb[0].mxu0 %v3313
  %v3315 = vpop.f32.mrb[0].mxu0
  %v3316 = vadd.f32 %v2998, %v3315
  %v3317 = vpop.f32.mrb[0].mxu0
  %3318 = vmatprep.mubr.f32.mxu0 0.0
  %v3319 = vand.u32 %v2067, 4294901760
  %v3320 = vsub.f32 %v2067, %v3319
  %v3321 = vand.u32 %v3320, 4294901760
  %3322 = vmatmul.mubr.f32.gmra.mrb[0].mxu0 %v3321
  %v3323 = vpop.f32.mrb[0].mxu0
  %v3324 = vadd.f32 %v3005, %v3323
  %v3325 = vpop.f32.mrb[0].mxu0
  %3326 = vmatprep.mubr.f32.mxu0 0.0
  %v3327 = vand.u32 %v2070, 4294901760
  %v3328 = vsub.f32 %v2070, %v3327
  %v3329 = vand.u32 %v3328, 4294901760
  %3330 = vmatmul.mubr.f32.gmra.mrb[0].mxu0 %v3329
  %v3331 = vpop.f32.mrb[0].mxu0
  %v3332 = vadd.f32 %v3012, %v3331
  %v3333 = vpop.f32.mrb[0].mxu0
  %3334 = vmatprep.mubr.f32.mxu0 0.0
  %v3335 = vand.u32 %v2073, 4294901760
  %v3336 = vsub.f32 %v2073, %v3335
  %v3337 = vand.u32 %v3336, 4294901760
  %3338 = vmatmul.mubr.f32.gmra.mrb[0].mxu0 %v3337
  %v3339 = vpop.f32.mrb[0].mxu0
  %v3340 = vadd.f32 %v3019, %v3339
  %v3341 = vpop.f32.mrb[0].mxu0
  %3342 = vmatprep.mubr.f32.mxu0 0.0
  %v3343 = vand.u32 %v2076, 4294901760
  %v3344 = vsub.f32 %v2076, %v3343
  %v3345 = vand.u32 %v3344, 4294901760
  %3346 = vmatmul.mubr.f32.gmra.mrb[0].mxu0 %v3345
  %v3347 = vpop.f32.mrb[0].mxu0
  %v3348 = vadd.f32 %v3026, %v3347
  %v3349 = vpop.f32.mrb[0].mxu0
  %3350 = vmatprep.mubr.f32.mxu0 0.0
  %v3351 = vand.u32 %v2079, 4294901760
  %v3352 = vsub.f32 %v2079, %v3351
  %v3353 = vand.u32 %v3352, 4294901760
  %3354 = vmatmul.mubr.f32.gmra.mrb[0].mxu0 %v3353
  %v3355 = vpop.f32.mrb[0].mxu0
  %v3356 = vadd.f32 %v3033, %v3355
  %v3357 = vpop.f32.mrb[0].mxu0
  %3358 = vmatprep.mubr.f32.mxu0 0.0
  %v3359 = vand.u32 %v2082, 4294901760
  %v3360 = vsub.f32 %v2082, %v3359
  %v3361 = vand.u32 %v3360, 4294901760
  %3362 = vmatmul.mubr.f32.gmra.mrb[0].mxu0 %v3361
  %v3363 = vpop.f32.mrb[0].mxu0
  %v3364 = vadd.f32 %v3040, %v3363
  %v3365 = vpop.f32.mrb[0].mxu0
  %3366 = vmatprep.mubr.f32.mxu0 0.0
  %v3367 = vand.u32 %v2085, 4294901760
  %v3368 = vsub.f32 %v2085, %v3367
  %v3369 = vand.u32 %v3368, 4294901760
  %3370 = vmatmul.mubr.f32.gmra.mrb[0].mxu0 %v3369
  %v3371 = vpop.f32.mrb[0].mxu0
  %v3372 = vadd.f32 %v3047, %v3371
  %v3373 = vpop.f32.mrb[0].mxu0
  %3374 = vdwg.mxu0
  %3375 = vmatprep.subr.mxu0 0.0
  %v3376 = vand.u32 %v1982, 4294901760
  %v3377 = vsub.f32 %v1982, %v3376
  %v3378 = vand.u32 %v3377, 4294901760
  %3379 = vmatpush1.msra.mxu0 %v3378
  %3380 = vmatprep.subr.mxu0 0.0
  %v3381 = vand.u32 %v1983, 4294901760
  %v3382 = vsub.f32 %v1983, %v3381
  %v3383 = vand.u32 %v3382, 4294901760
  %3384 = vmatpush1.msra.mxu0 %v3383
  %3385 = vmatprep.subr.mxu0 0.0
  %v3386 = vand.u32 %v1984, 4294901760
  %v3387 = vsub.f32 %v1984, %v3386
  %v3388 = vand.u32 %v3387, 4294901760
  %3389 = vmatpush1.msra.mxu0 %v3388
  %3390 = vmatprep.subr.mxu0 0.0
  %v3391 = vand.u32 %v1985, 4294901760
  %v3392 = vsub.f32 %v1985, %v3391
  %v3393 = vand.u32 %v3392, 4294901760
  %3394 = vmatpush1.msra.mxu0 %v3393
  %3395 = vmatprep.subr.mxu0 0.0
  %3396 = vmatpush1.msra.mxu0 0.0
  %3397 = vmatprep.subr.mxu0 0.0
  %3398 = vmatpush1.msra.mxu0 0.0
  %3399 = vmatprep.subr.mxu0 0.0
  %3400 = vmatpush1.msra.mxu0 0.0
  %3401 = vmatprep.subr.mxu0 0.0
  %3402 = vmatpush1.msra.mxu0 0.0
  %3403 = vmatprep.subr.mxu0 0.0
  %3404 = vmatpush1.msra.mxu0 0.0
  %3405 = vmatprep.subr.mxu0 0.0
  %3406 = vmatpush1.msra.mxu0 0.0
  %3407 = vmatprep.subr.mxu0 0.0
  %3408 = vmatpush1.msra.mxu0 0.0
  %3409 = vmatprep.subr.mxu0 0.0
  %3410 = vmatpush1.msra.mxu0 0.0
  %3411 = vmatprep.subr.mxu0 0.0
  %3412 = vmatpush1.msra.mxu0 0.0
  %3413 = vmatprep.subr.mxu0 0.0
  %3414 = vmatpush1.msra.mxu0 0.0
  %3415 = vmatprep.subr.mxu0 0.0
  %3416 = vmatpush1.msra.mxu0 0.0
  %3417 = vmatprep.subr.mxu0 0.0
  %3418 = vmatpush1.msra.mxu0 0.0
  %3419 = vmatprep.subr.mxu0 0.0
  %3420 = vmatpush1.msra.mxu0 0.0
  %3421 = vmatprep.subr.mxu0 0.0
  %3422 = vmatpush1.msra.mxu0 0.0
  %3423 = vmatprep.subr.mxu0 0.0
  %3424 = vmatpush1.msra.mxu0 0.0
  %3425 = vmatprep.subr.mxu0 0.0
  %3426 = vmatpush1.msra.mxu0 0.0
  %3427 = vmatprep.subr.mxu0 0.0
  %3428 = vmatpush1.msra.mxu0 0.0
  %3429 = vmatprep.subr.mxu0 0.0
  %3430 = vmatpush1.msra.mxu0 0.0
  %3431 = vmatprep.subr.mxu0 0.0
  %3432 = vmatpush1.msra.mxu0 0.0
  %3433 = vmatprep.subr.mxu0 0.0
  %3434 = vmatpush1.msra.mxu0 0.0
  %3435 = vmatprep.subr.mxu0 0.0
  %3436 = vmatpush1.msra.mxu0 0.0
  %3437 = vmatprep.subr.mxu0 0.0
  %3438 = vmatpush1.msra.mxu0 0.0
  %3439 = vmatprep.subr.mxu0 0.0
  %3440 = vmatpush1.msra.mxu0 0.0
  %3441 = vmatprep.subr.mxu0 0.0
  %3442 = vmatpush1.msra.mxu0 0.0
  %3443 = vmatprep.subr.mxu0 0.0
  %3444 = vmatpush1.msra.mxu0 0.0
  %3445 = vmatprep.subr.mxu0 0.0
  %3446 = vmatpush1.msra.mxu0 0.0
  %3447 = vmatprep.subr.mxu0 0.0
  %3448 = vmatpush1.msra.mxu0 0.0
  %3449 = vmatprep.subr.mxu0 0.0
  %3450 = vmatpush1.msra.mxu0 0.0
  %3451 = vmatprep.mubr.f32.mxu0 0.0
  %v3452 = vand.u32 %v1992, 4294901760
  %3453 = vmatmul.mubr.f32.gmra.mrb[0].mxu0 %v3452
  %v3454 = vpop.f32.mrb[0].mxu0
  %v3455 = vadd.f32 %v3124, %v3454
  %v3456 = vpop.f32.mrb[0].mxu0
  %3457 = vmatprep.mubr.f32.mxu0 0.0
  %v3458 = vand.u32 %v1995, 4294901760
  %3459 = vmatmul.mubr.f32.gmra.mrb[0].mxu0 %v3458
  %v3460 = vpop.f32.mrb[0].mxu0
  %v3461 = vadd.f32 %v3132, %v3460
  %v3462 = vpop.f32.mrb[0].mxu0
  %3463 = vmatprep.mubr.f32.mxu0 0.0
  %v3464 = vand.u32 %v1998, 4294901760
  %3465 = vmatmul.mubr.f32.gmra.mrb[0].mxu0 %v3464
  %v3466 = vpop.f32.mrb[0].mxu0
  %v3467 = vadd.f32 %v3140, %v3466
  %v3468 = vpop.f32.mrb[0].mxu0
  %3469 = vmatprep.mubr.f32.mxu0 0.0
  %v3470 = vand.u32 %v2001, 4294901760
  %3471 = vmatmul.mubr.f32.gmra.mrb[0].mxu0 %v3470
  %v3472 = vpop.f32.mrb[0].mxu0
  %v3473 = vadd.f32 %v3148, %v3472
  %v3474 = vpop.f32.mrb[0].mxu0
  %3475 = vmatprep.mubr.f32.mxu0 0.0
  %v3476 = vand.u32 %v2004, 4294901760
  %3477 = vmatmul.mubr.f32.gmra.mrb[0].mxu0 %v3476
  %v3478 = vpop.f32.mrb[0].mxu0
  %v3479 = vadd.f32 %v3156, %v3478
  %v3480 = vpop.f32.mrb[0].mxu0
  %3481 = vmatprep.mubr.f32.mxu0 0.0
  %v3482 = vand.u32 %v2007, 4294901760
  %3483 = vmatmul.mubr.f32.gmra.mrb[0].mxu0 %v3482
  %v3484 = vpop.f32.mrb[0].mxu0
  %v3485 = vadd.f32 %v3164, %v3484
  %v3486 = vpop.f32.mrb[0].mxu0
  %3487 = vmatprep.mubr.f32.mxu0 0.0
  %v3488 = vand.u32 %v2010, 4294901760
  %3489 = vmatmul.mubr.f32.gmra.mrb[0].mxu0 %v3488
  %v3490 = vpop.f32.mrb[0].mxu0
  %v3491 = vadd.f32 %v3172, %v3490
  %v3492 = vpop.f32.mrb[0].mxu0
  %3493 = vmatprep.mubr.f32.mxu0 0.0
  %v3494 = vand.u32 %v2013, 4294901760
  %3495 = vmatmul.mubr.f32.gmra.mrb[0].mxu0 %v3494
  %v3496 = vpop.f32.mrb[0].mxu0
  %v3497 = vadd.f32 %v3180, %v3496
  %v3498 = vpop.f32.mrb[0].mxu0
  %3499 = vmatprep.mubr.f32.mxu0 0.0
  %v3500 = vand.u32 %v2016, 4294901760
  %3501 = vmatmul.mubr.f32.gmra.mrb[0].mxu0 %v3500
  %v3502 = vpop.f32.mrb[0].mxu0
  %v3503 = vadd.f32 %v3188, %v3502
  %v3504 = vpop.f32.mrb[0].mxu0
  %3505 = vmatprep.mubr.f32.mxu0 0.0
  %v3506 = vand.u32 %v2019, 4294901760
  %3507 = vmatmul.mubr.f32.gmra.mrb[0].mxu0 %v3506
  %v3508 = vpop.f32.mrb[0].mxu0
  %v3509 = vadd.f32 %v3196, %v3508
  %v3510 = vpop.f32.mrb[0].mxu0
  %3511 = vmatprep.mubr.f32.mxu0 0.0
  %v3512 = vand.u32 %v2022, 4294901760
  %3513 = vmatmul.mubr.f32.gmra.mrb[0].mxu0 %v3512
  %v3514 = vpop.f32.mrb[0].mxu0
  %v3515 = vadd.f32 %v3204, %v3514
  %v3516 = vpop.f32.mrb[0].mxu0
  %3517 = vmatprep.mubr.f32.mxu0 0.0
  %v3518 = vand.u32 %v2025, 4294901760
  %3519 = vmatmul.mubr.f32.gmra.mrb[0].mxu0 %v3518
  %v3520 = vpop.f32.mrb[0].mxu0
  %v3521 = vadd.f32 %v3212, %v3520
  %v3522 = vpop.f32.mrb[0].mxu0
  %3523 = vmatprep.mubr.f32.mxu0 0.0
  %v3524 = vand.u32 %v2028, 4294901760
  %3525 = vmatmul.mubr.f32.gmra.mrb[0].mxu0 %v3524
  %v3526 = vpop.f32.mrb[0].mxu0
  %v3527 = vadd.f32 %v3220, %v3526
  %v3528 = vpop.f32.mrb[0].mxu0
  %3529 = vmatprep.mubr.f32.mxu0 0.0
  %v3530 = vand.u32 %v2031, 4294901760
  %3531 = vmatmul.mubr.f32.gmra.mrb[0].mxu0 %v3530
  %v3532 = vpop.f32.mrb[0].mxu0
  %v3533 = vadd.f32 %v3228, %v3532
  %v3534 = vpop.f32.mrb[0].mxu0
  %3535 = vmatprep.mubr.f32.mxu0 0.0
  %v3536 = vand.u32 %v2034, 4294901760
  %3537 = vmatmul.mubr.f32.gmra.mrb[0].mxu0 %v3536
  %v3538 = vpop.f32.mrb[0].mxu0
  %v3539 = vadd.f32 %v3236, %v3538
  %v3540 = vpop.f32.mrb[0].mxu0
  %3541 = vmatprep.mubr.f32.mxu0 0.0
  %v3542 = vand.u32 %v2037, 4294901760
  %3543 = vmatmul.mubr.f32.gmra.mrb[0].mxu0 %v3542
  %v3544 = vpop.f32.mrb[0].mxu0
  %v3545 = vadd.f32 %v3244, %v3544
  %v3546 = vpop.f32.mrb[0].mxu0
  %3547 = vmatprep.mubr.f32.mxu0 0.0
  %v3548 = vand.u32 %v2040, 4294901760
  %3549 = vmatmul.mubr.f32.gmra.mrb[0].mxu0 %v3548
  %v3550 = vpop.f32.mrb[0].mxu0
  %v3551 = vadd.f32 %v3252, %v3550
  %v3552 = vpop.f32.mrb[0].mxu0
  %3553 = vmatprep.mubr.f32.mxu0 0.0
  %v3554 = vand.u32 %v2043, 4294901760
  %3555 = vmatmul.mubr.f32.gmra.mrb[0].mxu0 %v3554
  %v3556 = vpop.f32.mrb[0].mxu0
  %v3557 = vadd.f32 %v3260, %v3556
  %v3558 = vpop.f32.mrb[0].mxu0
  %3559 = vmatprep.mubr.f32.mxu0 0.0
  %v3560 = vand.u32 %v2046, 4294901760
  %3561 = vmatmul.mubr.f32.gmra.mrb[0].mxu0 %v3560
  %v3562 = vpop.f32.mrb[0].mxu0
  %v3563 = vadd.f32 %v3268, %v3562
  %v3564 = vpop.f32.mrb[0].mxu0
  %3565 = vmatprep.mubr.f32.mxu0 0.0
  %v3566 = vand.u32 %v2049, 4294901760
  %3567 = vmatmul.mubr.f32.gmra.mrb[0].mxu0 %v3566
  %v3568 = vpop.f32.mrb[0].mxu0
  %v3569 = vadd.f32 %v3276, %v3568
  %v3570 = vpop.f32.mrb[0].mxu0
  %3571 = vmatprep.mubr.f32.mxu0 0.0
  %v3572 = vand.u32 %v2052, 4294901760
  %3573 = vmatmul.mubr.f32.gmra.mrb[0].mxu0 %v3572
  %v3574 = vpop.f32.mrb[0].mxu0
  %v3575 = vadd.f32 %v3284, %v3574
  %v3576 = vpop.f32.mrb[0].mxu0
  %3577 = vmatprep.mubr.f32.mxu0 0.0
  %v3578 = vand.u32 %v2055, 4294901760
  %3579 = vmatmul.mubr.f32.gmra.mrb[0].mxu0 %v3578
  %v3580 = vpop.f32.mrb[0].mxu0
  %v3581 = vadd.f32 %v3292, %v3580
  %v3582 = vpop.f32.mrb[0].mxu0
  %3583 = vmatprep.mubr.f32.mxu0 0.0
  %v3584 = vand.u32 %v2058, 4294901760
  %3585 = vmatmul.mubr.f32.gmra.mrb[0].mxu0 %v3584
  %v3586 = vpop.f32.mrb[0].mxu0
  %v3587 = vadd.f32 %v3300, %v3586
  %v3588 = vpop.f32.mrb[0].mxu0
  %3589 = vmatprep.mubr.f32.mxu0 0.0
  %v3590 = vand.u32 %v2061, 4294901760
  %3591 = vmatmul.mubr.f32.gmra.mrb[0].mxu0 %v3590
  %v3592 = vpop.f32.mrb[0].mxu0
  %v3593 = vadd.f32 %v3308, %v3592
  %v3594 = vpop.f32.mrb[0].mxu0
  %3595 = vmatprep.mubr.f32.mxu0 0.0
  %v3596 = vand.u32 %v2064, 4294901760
  %3597 = vmatmul.mubr.f32.gmra.mrb[0].mxu0 %v3596
  %v3598 = vpop.f32.mrb[0].mxu0
  %v3599 = vadd.f32 %v3316, %v3598
  %v3600 = vpop.f32.mrb[0].mxu0
  %3601 = vmatprep.mubr.f32.mxu0 0.0
  %v3602 = vand.u32 %v2067, 4294901760
  %3603 = vmatmul.mubr.f32.gmra.mrb[0].mxu0 %v3602
  %v3604 = vpop.f32.mrb[0].mxu0
  %v3605 = vadd.f32 %v3324, %v3604
  %v3606 = vpop.f32.mrb[0].mxu0
  %3607 = vmatprep.mubr.f32.mxu0 0.0
  %v3608 = vand.u32 %v2070, 4294901760
  %3609 = vmatmul.mubr.f32.gmra.mrb[0].mxu0 %v3608
  %v3610 = vpop.f32.mrb[0].mxu0
  %v3611 = vadd.f32 %v3332, %v3610
  %v3612 = vpop.f32.mrb[0].mxu0
  %3613 = vmatprep.mubr.f32.mxu0 0.0
  %v3614 = vand.u32 %v2073, 4294901760
  %3615 = vmatmul.mubr.f32.gmra.mrb[0].mxu0 %v3614
  %v3616 = vpop.f32.mrb[0].mxu0
  %v3617 = vadd.f32 %v3340, %v3616
  %v3618 = vpop.f32.mrb[0].mxu0
  %3619 = vmatprep.mubr.f32.mxu0 0.0
  %v3620 = vand.u32 %v2076, 4294901760
  %3621 = vmatmul.mubr.f32.gmra.mrb[0].mxu0 %v3620
  %v3622 = vpop.f32.mrb[0].mxu0
  %v3623 = vadd.f32 %v3348, %v3622
  %v3624 = vpop.f32.mrb[0].mxu0
  %3625 = vmatprep.mubr.f32.mxu0 0.0
  %v3626 = vand.u32 %v2079, 4294901760
  %3627 = vmatmul.mubr.f32.gmra.mrb[0].mxu0 %v3626
  %v3628 = vpop.f32.mrb[0].mxu0
  %v3629 = vadd.f32 %v3356, %v3628
  %v3630 = vpop.f32.mrb[0].mxu0
  %3631 = vmatprep.mubr.f32.mxu0 0.0
  %v3632 = vand.u32 %v2082, 4294901760
  %3633 = vmatmul.mubr.f32.gmra.mrb[0].mxu0 %v3632
  %v3634 = vpop.f32.mrb[0].mxu0
  %v3635 = vadd.f32 %v3364, %v3634
  %v3636 = vpop.f32.mrb[0].mxu0
  %3637 = vmatprep.mubr.f32.mxu0 0.0
  %v3638 = vand.u32 %v2085, 4294901760
  %3639 = vmatmul.mubr.f32.gmra.mrb[0].mxu0 %v3638
  %v3640 = vpop.f32.mrb[0].mxu0
  %v3641 = vadd.f32 %v3372, %v3640
  %v3642 = vpop.f32.mrb[0].mxu0
  %3643 = vdwg.mxu0
  %3644 = vmatprep.subr.mxu0 0.0
  %v3645 = vand.u32 %v1982, 4294901760
  %3646 = vmatpush1.msra.mxu0 %v3645
  %3647 = vmatprep.subr.mxu0 0.0
  %v3648 = vand.u32 %v1983, 4294901760
  %3649 = vmatpush1.msra.mxu0 %v3648
  %3650 = vmatprep.subr.mxu0 0.0
  %v3651 = vand.u32 %v1984, 4294901760
  %3652 = vmatpush1.msra.mxu0 %v3651
  %3653 = vmatprep.subr.mxu0 0.0
  %v3654 = vand.u32 %v1985, 4294901760
  %3655 = vmatpush1.msra.mxu0 %v3654
  %3656 = vmatprep.subr.mxu0 0.0
  %3657 = vmatpush1.msra.mxu0 0.0
  %3658 = vmatprep.subr.mxu0 0.0
  %3659 = vmatpush1.msra.mxu0 0.0
  %3660 = vmatprep.subr.mxu0 0.0
  %3661 = vmatpush1.msra.mxu0 0.0
  %3662 = vmatprep.subr.mxu0 0.0
  %3663 = vmatpush1.msra.mxu0 0.0
  %3664 = vmatprep.subr.mxu0 0.0
  %3665 = vmatpush1.msra.mxu0 0.0
  %3666 = vmatprep.subr.mxu0 0.0
  %3667 = vmatpush1.msra.mxu0 0.0
  %3668 = vmatprep.subr.mxu0 0.0
  %3669 = vmatpush1.msra.mxu0 0.0
  %3670 = vmatprep.subr.mxu0 0.0
  %3671 = vmatpush1.msra.mxu0 0.0
  %3672 = vmatprep.subr.mxu0 0.0
  %3673 = vmatpush1.msra.mxu0 0.0
  %3674 = vmatprep.subr.mxu0 0.0
  %3675 = vmatpush1.msra.mxu0 0.0
  %3676 = vmatprep.subr.mxu0 0.0
  %3677 = vmatpush1.msra.mxu0 0.0
  %3678 = vmatprep.subr.mxu0 0.0
  %3679 = vmatpush1.msra.mxu0 0.0
  %3680 = vmatprep.subr.mxu0 0.0
  %3681 = vmatpush1.msra.mxu0 0.0
  %3682 = vmatprep.subr.mxu0 0.0
  %3683 = vmatpush1.msra.mxu0 0.0
  %3684 = vmatprep.subr.mxu0 0.0
  %3685 = vmatpush1.msra.mxu0 0.0
  %3686 = vmatprep.subr.mxu0 0.0
  %3687 = vmatpush1.msra.mxu0 0.0
  %3688 = vmatprep.subr.mxu0 0.0
  %3689 = vmatpush1.msra.mxu0 0.0
  %3690 = vmatprep.subr.mxu0 0.0
  %3691 = vmatpush1.msra.mxu0 0.0
  %3692 = vmatprep.subr.mxu0 0.0
  %3693 = vmatpush1.msra.mxu0 0.0
  %3694 = vmatprep.subr.mxu0 0.0
  %3695 = vmatpush1.msra.mxu0 0.0
  %3696 = vmatprep.subr.mxu0 0.0
  %3697 = vmatpush1.msra.mxu0 0.0
  %3698 = vmatprep.subr.mxu0 0.0
  %3699 = vmatpush1.msra.mxu0 0.0
  %3700 = vmatprep.subr.mxu0 0.0
  %3701 = vmatpush1.msra.mxu0 0.0
  %3702 = vmatprep.subr.mxu0 0.0
  %3703 = vmatpush1.msra.mxu0 0.0
  %3704 = vmatprep.subr.mxu0 0.0
  %3705 = vmatpush1.msra.mxu0 0.0
  %3706 = vmatprep.subr.mxu0 0.0
  %3707 = vmatpush1.msra.mxu0 0.0
  %3708 = vmatprep.subr.mxu0 0.0
  %3709 = vmatpush1.msra.mxu0 0.0
  %3710 = vmatprep.subr.mxu0 0.0
  %3711 = vmatpush1.msra.mxu0 0.0
  %3712 = vmatprep.mubr.f32.mxu0 0.0
  %v3713 = vand.u32 %v1992, 4294901760
  %3714 = vmatmul.mubr.f32.gmra.mrb[0].mxu0 %v3713
  %v3715 = vpop.f32.mrb[0].mxu0
  %v3716 = vadd.f32 %v3455, %v3715
  %v3717 = vpop.f32.mrb[0].mxu0
  %3718 = vmatprep.mubr.f32.mxu0 0.0
  %v3719 = vand.u32 %v1995, 4294901760
  %3720 = vmatmul.mubr.f32.gmra.mrb[0].mxu0 %v3719
  %v3721 = vpop.f32.mrb[0].mxu0
  %v3722 = vadd.f32 %v3461, %v3721
  %v3723 = vpop.f32.mrb[0].mxu0
  %3724 = vmatprep.mubr.f32.mxu0 0.0
  %v3725 = vand.u32 %v1998, 4294901760
  %3726 = vmatmul.mubr.f32.gmra.mrb[0].mxu0 %v3725
  %v3727 = vpop.f32.mrb[0].mxu0
  %v3728 = vadd.f32 %v3467, %v3727
  %v3729 = vpop.f32.mrb[0].mxu0
  %3730 = vmatprep.mubr.f32.mxu0 0.0
  %v3731 = vand.u32 %v2001, 4294901760
  %3732 = vmatmul.mubr.f32.gmra.mrb[0].mxu0 %v3731
  %v3733 = vpop.f32.mrb[0].mxu0
  %v3734 = vadd.f32 %v3473, %v3733
  %v3735 = vpop.f32.mrb[0].mxu0
  %3736 = vmatprep.mubr.f32.mxu0 0.0
  %v3737 = vand.u32 %v2004, 4294901760
  %3738 = vmatmul.mubr.f32.gmra.mrb[0].mxu0 %v3737
  %v3739 = vpop.f32.mrb[0].mxu0
  %v3740 = vadd.f32 %v3479, %v3739
  %v3741 = vpop.f32.mrb[0].mxu0
  %3742 = vmatprep.mubr.f32.mxu0 0.0
  %v3743 = vand.u32 %v2007, 4294901760
  %3744 = vmatmul.mubr.f32.gmra.mrb[0].mxu0 %v3743
  %v3745 = vpop.f32.mrb[0].mxu0
  %v3746 = vadd.f32 %v3485, %v3745
  %v3747 = vpop.f32.mrb[0].mxu0
  %3748 = vmatprep.mubr.f32.mxu0 0.0
  %v3749 = vand.u32 %v2010, 4294901760
  %3750 = vmatmul.mubr.f32.gmra.mrb[0].mxu0 %v3749
  %v3751 = vpop.f32.mrb[0].mxu0
  %v3752 = vadd.f32 %v3491, %v3751
  %v3753 = vpop.f32.mrb[0].mxu0
  %3754 = vmatprep.mubr.f32.mxu0 0.0
  %v3755 = vand.u32 %v2013, 4294901760
  %3756 = vmatmul.mubr.f32.gmra.mrb[0].mxu0 %v3755
  %v3757 = vpop.f32.mrb[0].mxu0
  %v3758 = vadd.f32 %v3497, %v3757
  %v3759 = vpop.f32.mrb[0].mxu0
  %3760 = vmatprep.mubr.f32.mxu0 0.0
  %v3761 = vand.u32 %v2016, 4294901760
  %3762 = vmatmul.mubr.f32.gmra.mrb[0].mxu0 %v3761
  %v3763 = vpop.f32.mrb[0].mxu0
  %v3764 = vadd.f32 %v3503, %v3763
  %v3765 = vpop.f32.mrb[0].mxu0
  %3766 = vmatprep.mubr.f32.mxu0 0.0
  %v3767 = vand.u32 %v2019, 4294901760
  %3768 = vmatmul.mubr.f32.gmra.mrb[0].mxu0 %v3767
  %v3769 = vpop.f32.mrb[0].mxu0
  %v3770 = vadd.f32 %v3509, %v3769
  %v3771 = vpop.f32.mrb[0].mxu0
  %3772 = vmatprep.mubr.f32.mxu0 0.0
  %v3773 = vand.u32 %v2022, 4294901760
  %3774 = vmatmul.mubr.f32.gmra.mrb[0].mxu0 %v3773
  %v3775 = vpop.f32.mrb[0].mxu0
  %v3776 = vadd.f32 %v3515, %v3775
  %v3777 = vpop.f32.mrb[0].mxu0
  %3778 = vmatprep.mubr.f32.mxu0 0.0
  %v3779 = vand.u32 %v2025, 4294901760
  %3780 = vmatmul.mubr.f32.gmra.mrb[0].mxu0 %v3779
  %v3781 = vpop.f32.mrb[0].mxu0
  %v3782 = vadd.f32 %v3521, %v3781
  %v3783 = vpop.f32.mrb[0].mxu0
  %3784 = vmatprep.mubr.f32.mxu0 0.0
  %v3785 = vand.u32 %v2028, 4294901760
  %3786 = vmatmul.mubr.f32.gmra.mrb[0].mxu0 %v3785
  %v3787 = vpop.f32.mrb[0].mxu0
  %v3788 = vadd.f32 %v3527, %v3787
  %v3789 = vpop.f32.mrb[0].mxu0
  %3790 = vmatprep.mubr.f32.mxu0 0.0
  %v3791 = vand.u32 %v2031, 4294901760
  %3792 = vmatmul.mubr.f32.gmra.mrb[0].mxu0 %v3791
  %v3793 = vpop.f32.mrb[0].mxu0
  %v3794 = vadd.f32 %v3533, %v3793
  %v3795 = vpop.f32.mrb[0].mxu0
  %3796 = vmatprep.mubr.f32.mxu0 0.0
  %v3797 = vand.u32 %v2034, 4294901760
  %3798 = vmatmul.mubr.f32.gmra.mrb[0].mxu0 %v3797
  %v3799 = vpop.f32.mrb[0].mxu0
  %v3800 = vadd.f32 %v3539, %v3799
  %v3801 = vpop.f32.mrb[0].mxu0
  %3802 = vmatprep.mubr.f32.mxu0 0.0
  %v3803 = vand.u32 %v2037, 4294901760
  %3804 = vmatmul.mubr.f32.gmra.mrb[0].mxu0 %v3803
  %v3805 = vpop.f32.mrb[0].mxu0
  %v3806 = vadd.f32 %v3545, %v3805
  %v3807 = vpop.f32.mrb[0].mxu0
  %3808 = vmatprep.mubr.f32.mxu0 0.0
  %v3809 = vand.u32 %v2040, 4294901760
  %3810 = vmatmul.mubr.f32.gmra.mrb[0].mxu0 %v3809
  %v3811 = vpop.f32.mrb[0].mxu0
  %v3812 = vadd.f32 %v3551, %v3811
  %v3813 = vpop.f32.mrb[0].mxu0
  %3814 = vmatprep.mubr.f32.mxu0 0.0
  %v3815 = vand.u32 %v2043, 4294901760
  %3816 = vmatmul.mubr.f32.gmra.mrb[0].mxu0 %v3815
  %v3817 = vpop.f32.mrb[0].mxu0
  %v3818 = vadd.f32 %v3557, %v3817
  %v3819 = vpop.f32.mrb[0].mxu0
  %3820 = vmatprep.mubr.f32.mxu0 0.0
  %v3821 = vand.u32 %v2046, 4294901760
  %3822 = vmatmul.mubr.f32.gmra.mrb[0].mxu0 %v3821
  %v3823 = vpop.f32.mrb[0].mxu0
  %v3824 = vadd.f32 %v3563, %v3823
  %v3825 = vpop.f32.mrb[0].mxu0
  %3826 = vmatprep.mubr.f32.mxu0 0.0
  %v3827 = vand.u32 %v2049, 4294901760
  %3828 = vmatmul.mubr.f32.gmra.mrb[0].mxu0 %v3827
  %v3829 = vpop.f32.mrb[0].mxu0
  %v3830 = vadd.f32 %v3569, %v3829
  %v3831 = vpop.f32.mrb[0].mxu0
  %3832 = vmatprep.mubr.f32.mxu0 0.0
  %v3833 = vand.u32 %v2052, 4294901760
  %3834 = vmatmul.mubr.f32.gmra.mrb[0].mxu0 %v3833
  %v3835 = vpop.f32.mrb[0].mxu0
  %v3836 = vadd.f32 %v3575, %v3835
  %v3837 = vpop.f32.mrb[0].mxu0
  %3838 = vmatprep.mubr.f32.mxu0 0.0
  %v3839 = vand.u32 %v2055, 4294901760
  %3840 = vmatmul.mubr.f32.gmra.mrb[0].mxu0 %v3839
  %v3841 = vpop.f32.mrb[0].mxu0
  %v3842 = vadd.f32 %v3581, %v3841
  %v3843 = vpop.f32.mrb[0].mxu0
  %3844 = vmatprep.mubr.f32.mxu0 0.0
  %v3845 = vand.u32 %v2058, 4294901760
  %3846 = vmatmul.mubr.f32.gmra.mrb[0].mxu0 %v3845
  %v3847 = vpop.f32.mrb[0].mxu0
  %v3848 = vadd.f32 %v3587, %v3847
  %v3849 = vpop.f32.mrb[0].mxu0
  %3850 = vmatprep.mubr.f32.mxu0 0.0
  %v3851 = vand.u32 %v2061, 4294901760
  %3852 = vmatmul.mubr.f32.gmra.mrb[0].mxu0 %v3851
  %v3853 = vpop.f32.mrb[0].mxu0
  %v3854 = vadd.f32 %v3593, %v3853
  %v3855 = vpop.f32.mrb[0].mxu0
  %3856 = vmatprep.mubr.f32.mxu0 0.0
  %v3857 = vand.u32 %v2064, 4294901760
  %3858 = vmatmul.mubr.f32.gmra.mrb[0].mxu0 %v3857
  %v3859 = vpop.f32.mrb[0].mxu0
  %v3860 = vadd.f32 %v3599, %v3859
  %v3861 = vpop.f32.mrb[0].mxu0
  %3862 = vmatprep.mubr.f32.mxu0 0.0
  %v3863 = vand.u32 %v2067, 4294901760
  %3864 = vmatmul.mubr.f32.gmra.mrb[0].mxu0 %v3863
  %v3865 = vpop.f32.mrb[0].mxu0
  %v3866 = vadd.f32 %v3605, %v3865
  %v3867 = vpop.f32.mrb[0].mxu0
  %3868 = vmatprep.mubr.f32.mxu0 0.0
  %v3869 = vand.u32 %v2070, 4294901760
  %3870 = vmatmul.mubr.f32.gmra.mrb[0].mxu0 %v3869
  %v3871 = vpop.f32.mrb[0].mxu0
  %v3872 = vadd.f32 %v3611, %v3871
  %v3873 = vpop.f32.mrb[0].mxu0
  %3874 = vmatprep.mubr.f32.mxu0 0.0
  %v3875 = vand.u32 %v2073, 4294901760
  %3876 = vmatmul.mubr.f32.gmra.mrb[0].mxu0 %v3875
  %v3877 = vpop.f32.mrb[0].mxu0
  %v3878 = vadd.f32 %v3617, %v3877
  %v3879 = vpop.f32.mrb[0].mxu0
  %3880 = vmatprep.mubr.f32.mxu0 0.0
  %v3881 = vand.u32 %v2076, 4294901760
  %3882 = vmatmul.mubr.f32.gmra.mrb[0].mxu0 %v3881
  %v3883 = vpop.f32.mrb[0].mxu0
  %v3884 = vadd.f32 %v3623, %v3883
  %v3885 = vpop.f32.mrb[0].mxu0
  %3886 = vmatprep.mubr.f32.mxu0 0.0
  %v3887 = vand.u32 %v2079, 4294901760
  %3888 = vmatmul.mubr.f32.gmra.mrb[0].mxu0 %v3887
  %v3889 = vpop.f32.mrb[0].mxu0
  %v3890 = vadd.f32 %v3629, %v3889
  %v3891 = vpop.f32.mrb[0].mxu0
  %3892 = vmatprep.mubr.f32.mxu0 0.0
  %v3893 = vand.u32 %v2082, 4294901760
  %3894 = vmatmul.mubr.f32.gmra.mrb[0].mxu0 %v3893
  %v3895 = vpop.f32.mrb[0].mxu0
  %v3896 = vadd.f32 %v3635, %v3895
  %v3897 = vpop.f32.mrb[0].mxu0
  %3898 = vmatprep.mubr.f32.mxu0 0.0
  %v3899 = vand.u32 %v2085, 4294901760
  %3900 = vmatmul.mubr.f32.gmra.mrb[0].mxu0 %v3899
  %v3901 = vpop.f32.mrb[0].mxu0
  %v3902 = vadd.f32 %v3641, %v3901
  %v3903 = vpop.f32.mrb[0].mxu0
  %3904 = vdwg.mxu0
  %v3905 = vmax.f32 %v3716, 0.0
  %v3906 = vmax.f32 %v3722, 0.0
  %v3907 = vmax.f32 %v3728, 0.0
  %v3908 = vmax.f32 %v3734, 0.0
  %v3909 = vmax.f32 %v3740, 0.0
  %v3910 = vmax.f32 %v3746, 0.0
  %v3911 = vmax.f32 %v3752, 0.0
  %v3912 = vmax.f32 %v3758, 0.0
  %v3913 = vmax.f32 %v3764, 0.0
  %v3914 = vmax.f32 %v3770, 0.0
  %v3915 = vmax.f32 %v3776, 0.0
  %v3916 = vmax.f32 %v3782, 0.0
  %v3917 = vmax.f32 %v3788, 0.0
  %v3918 = vmax.f32 %v3794, 0.0
  %v3919 = vmax.f32 %v3800, 0.0
  %v3920 = vmax.f32 %v3806, 0.0
  %v3921 = vmax.f32 %v3812, 0.0
  %v3922 = vmax.f32 %v3818, 0.0
  %v3923 = vmax.f32 %v3824, 0.0
  %v3924 = vmax.f32 %v3830, 0.0
  %v3925 = vmax.f32 %v3836, 0.0
  %v3926 = vmax.f32 %v3842, 0.0
  %v3927 = vmax.f32 %v3848, 0.0
  %v3928 = vmax.f32 %v3854, 0.0
  %v3929 = vmax.f32 %v3860, 0.0
  %v3930 = vmax.f32 %v3866, 0.0
  %v3931 = vmax.f32 %v3872, 0.0
  %v3932 = vmax.f32 %v3878, 0.0
  %v3933 = vmax.f32 %v3884, 0.0
  %v3934 = vmax.f32 %v3890, 0.0
  %v3935 = vmax.f32 %v3896, 0.0
  %v3936 = vmax.f32 %v3902, 0.0
  %v3937 = vld [vmem:[%s3] sm:$0xff]
  %v3938 = vld [vmem:[%s3 + $0x8] sm:$0xff]
  %v3939 = vld [vmem:[%s3 + $0x10] sm:$0xff]
  %v3940 = vld [vmem:[%s3 + $0x18] sm:$0xff]
  %v3941 = vlaneseq
  %v3942 = vshrl.u32 %v3941, 7
  %v3943 = vsub.s32 0, %v3942
  %v3944 = vrot.slane %v22, %v3943
  %v3946 = vsel %vm1990, %v3905, 0
  %v3949 = vsel %vm1990, %v3906, 0
  %v3952 = vsel %vm1990, %v3907, 0
  %v3955 = vsel %vm1990, %v3908, 0
  %v3958 = vsel %vm1990, %v3909, 0
  %v3961 = vsel %vm1990, %v3910, 0
  %v3964 = vsel %vm1990, %v3911, 0
  %v3967 = vsel %vm1990, %v3912, 0
  %v3970 = vsel %vm1990, %v3913, 0
  %v3973 = vsel %vm1990, %v3914, 0
  %v3976 = vsel %vm1990, %v3915, 0
  %v3979 = vsel %vm1990, %v3916, 0
  %v3982 = vsel %vm1990, %v3917, 0
  %v3985 = vsel %vm1990, %v3918, 0
  %v3988 = vsel %vm1990, %v3919, 0
  %v3991 = vsel %vm1990, %v3920, 0
  %v3994 = vsel %vm1990, %v3921, 0
  %v3997 = vsel %vm1990, %v3922, 0
  %v4000 = vsel %vm1990, %v3923, 0
  %v4003 = vsel %vm1990, %v3924, 0
  %v4006 = vsel %vm1990, %v3925, 0
  %v4009 = vsel %vm1990, %v3926, 0
  %v4012 = vsel %vm1990, %v3927, 0
  %v4015 = vsel %vm1990, %v3928, 0
  %v4018 = vsel %vm1990, %v3929, 0
  %v4021 = vsel %vm1990, %v3930, 0
  %v4024 = vsel %vm1990, %v3931, 0
  %v4027 = vsel %vm1990, %v3932, 0
  %v4030 = vsel %vm1990, %v3933, 0
  %v4033 = vsel %vm1990, %v3934, 0
  %v4036 = vsel %vm1990, %v3935, 0
  %v4039 = vsel %vm1990, %v3936, 0
  %4041 = vmatprep.subr.mxu0 0.0
  %v4042 = vand.u32 %v3937, 4294901760
  %4043 = vmatpush1.msra.mxu0 %v4042
  %4044 = vmatprep.subr.mxu0 0.0
  %v4045 = vand.u32 %v3938, 4294901760
  %4046 = vmatpush1.msra.mxu0 %v4045
  %4047 = vmatprep.subr.mxu0 0.0
  %v4048 = vand.u32 %v3939, 4294901760
  %4049 = vmatpush1.msra.mxu0 %v4048
  %4050 = vmatprep.subr.mxu0 0.0
  %v4051 = vand.u32 %v3940, 4294901760
  %4052 = vmatpush1.msra.mxu0 %v4051
  %4053 = vmatprep.subr.mxu0 0.0
  %4054 = vmatpush1.msra.mxu0 0.0
  %4055 = vmatprep.subr.mxu0 0.0
  %4056 = vmatpush1.msra.mxu0 0.0
  %4057 = vmatprep.subr.mxu0 0.0
  %4058 = vmatpush1.msra.mxu0 0.0
  %4059 = vmatprep.subr.mxu0 0.0
  %4060 = vmatpush1.msra.mxu0 0.0
  %4061 = vmatprep.subr.mxu0 0.0
  %4062 = vmatpush1.msra.mxu0 0.0
  %4063 = vmatprep.subr.mxu0 0.0
  %4064 = vmatpush1.msra.mxu0 0.0
  %4065 = vmatprep.subr.mxu0 0.0
  %4066 = vmatpush1.msra.mxu0 0.0
  %4067 = vmatprep.subr.mxu0 0.0
  %4068 = vmatpush1.msra.mxu0 0.0
  %4069 = vmatprep.subr.mxu0 0.0
  %4070 = vmatpush1.msra.mxu0 0.0
  %4071 = vmatprep.subr.mxu0 0.0
  %4072 = vmatpush1.msra.mxu0 0.0
  %4073 = vmatprep.subr.mxu0 0.0
  %4074 = vmatpush1.msra.mxu0 0.0
  %4075 = vmatprep.subr.mxu0 0.0
  %4076 = vmatpush1.msra.mxu0 0.0
  %4077 = vmatprep.subr.mxu0 0.0
  %4078 = vmatpush1.msra.mxu0 0.0
  %4079 = vmatprep.subr.mxu0 0.0
  %4080 = vmatpush1.msra.mxu0 0.0
  %4081 = vmatprep.subr.mxu0 0.0
  %4082 = vmatpush1.msra.mxu0 0.0
  %4083 = vmatprep.subr.mxu0 0.0
  %4084 = vmatpush1.msra.mxu0 0.0
  %4085 = vmatprep.subr.mxu0 0.0
  %4086 = vmatpush1.msra.mxu0 0.0
  %4087 = vmatprep.subr.mxu0 0.0
  %4088 = vmatpush1.msra.mxu0 0.0
  %4089 = vmatprep.subr.mxu0 0.0
  %4090 = vmatpush1.msra.mxu0 0.0
  %4091 = vmatprep.subr.mxu0 0.0
  %4092 = vmatpush1.msra.mxu0 0.0
  %4093 = vmatprep.subr.mxu0 0.0
  %4094 = vmatpush1.msra.mxu0 0.0
  %4095 = vmatprep.subr.mxu0 0.0
  %4096 = vmatpush1.msra.mxu0 0.0
  %4097 = vmatprep.subr.mxu0 0.0
  %4098 = vmatpush1.msra.mxu0 0.0
  %4099 = vmatprep.subr.mxu0 0.0
  %4100 = vmatpush1.msra.mxu0 0.0
  %4101 = vmatprep.subr.mxu0 0.0
  %4102 = vmatpush1.msra.mxu0 0.0
  %4103 = vmatprep.subr.mxu0 0.0
  %4104 = vmatpush1.msra.mxu0 0.0
  %4105 = vmatprep.subr.mxu0 0.0
  %4106 = vmatpush1.msra.mxu0 0.0
  %4107 = vmatprep.subr.mxu0 0.0
  %4108 = vmatpush1.msra.mxu0 0.0
  %4109 = vmatprep.mubr.f32.mxu0 0.0
  %v4110 = vand.u32 %v3946, 4294901760
  %v4111 = vsub.f32 %v3946, %v4110
  %v4112 = vand.u32 %v4111, 4294901760
  %v4113 = vsub.f32 %v4111, %v4112
  %v4114 = vand.u32 %v4113, 4294901760
  %4115 = vmatmul.mubr.f32.gmra.mrb[0].mxu0 %v4114
  %v4116 = vpop.f32.mrb[0].mxu0
  %v4117 = vadd.f32 %v3944, %v4116
  %v4118 = vpop.f32.mrb[0].mxu0
  %4119 = vmatprep.mubr.f32.mxu0 0.0
  %v4120 = vand.u32 %v3949, 4294901760
  %v4121 = vsub.f32 %v3949, %v4120
  %v4122 = vand.u32 %v4121, 4294901760
  %v4123 = vsub.f32 %v4121, %v4122
  %v4124 = vand.u32 %v4123, 4294901760
  %4125 = vmatmul.mubr.f32.gmra.mrb[0].mxu0 %v4124
  %v4126 = vpop.f32.mrb[0].mxu0
  %v4127 = vadd.f32 %v3944, %v4126
  %v4128 = vpop.f32.mrb[0].mxu0
  %4129 = vmatprep.mubr.f32.mxu0 0.0
  %v4130 = vand.u32 %v3952, 4294901760
  %v4131 = vsub.f32 %v3952, %v4130
  %v4132 = vand.u32 %v4131, 4294901760
  %v4133 = vsub.f32 %v4131, %v4132
  %v4134 = vand.u32 %v4133, 4294901760
  %4135 = vmatmul.mubr.f32.gmra.mrb[0].mxu0 %v4134
  %v4136 = vpop.f32.mrb[0].mxu0
  %v4137 = vadd.f32 %v3944, %v4136
  %v4138 = vpop.f32.mrb[0].mxu0
  %4139 = vmatprep.mubr.f32.mxu0 0.0
  %v4140 = vand.u32 %v3955, 4294901760
  %v4141 = vsub.f32 %v3955, %v4140
  %v4142 = vand.u32 %v4141, 4294901760
  %v4143 = vsub.f32 %v4141, %v4142
  %v4144 = vand.u32 %v4143, 4294901760
  %4145 = vmatmul.mubr.f32.gmra.mrb[0].mxu0 %v4144
  %v4146 = vpop.f32.mrb[0].mxu0
  %v4147 = vadd.f32 %v3944, %v4146
  %v4148 = vpop.f32.mrb[0].mxu0
  %4149 = vmatprep.mubr.f32.mxu0 0.0
  %v4150 = vand.u32 %v3958, 4294901760
  %v4151 = vsub.f32 %v3958, %v4150
  %v4152 = vand.u32 %v4151, 4294901760
  %v4153 = vsub.f32 %v4151, %v4152
  %v4154 = vand.u32 %v4153, 4294901760
  %4155 = vmatmul.mubr.f32.gmra.mrb[0].mxu0 %v4154
  %v4156 = vpop.f32.mrb[0].mxu0
  %v4157 = vadd.f32 %v3944, %v4156
  %v4158 = vpop.f32.mrb[0].mxu0
  %4159 = vmatprep.mubr.f32.mxu0 0.0
  %v4160 = vand.u32 %v3961, 4294901760
  %v4161 = vsub.f32 %v3961, %v4160
  %v4162 = vand.u32 %v4161, 4294901760
  %v4163 = vsub.f32 %v4161, %v4162
  %v4164 = vand.u32 %v4163, 4294901760
  %4165 = vmatmul.mubr.f32.gmra.mrb[0].mxu0 %v4164
  %v4166 = vpop.f32.mrb[0].mxu0
  %v4167 = vadd.f32 %v3944, %v4166
  %v4168 = vpop.f32.mrb[0].mxu0
  %4169 = vmatprep.mubr.f32.mxu0 0.0
  %v4170 = vand.u32 %v3964, 4294901760
  %v4171 = vsub.f32 %v3964, %v4170
  %v4172 = vand.u32 %v4171, 4294901760
  %v4173 = vsub.f32 %v4171, %v4172
  %v4174 = vand.u32 %v4173, 4294901760
  %4175 = vmatmul.mubr.f32.gmra.mrb[0].mxu0 %v4174
  %v4176 = vpop.f32.mrb[0].mxu0
  %v4177 = vadd.f32 %v3944, %v4176
  %v4178 = vpop.f32.mrb[0].mxu0
  %4179 = vmatprep.mubr.f32.mxu0 0.0
  %v4180 = vand.u32 %v3967, 4294901760
  %v4181 = vsub.f32 %v3967, %v4180
  %v4182 = vand.u32 %v4181, 4294901760
  %v4183 = vsub.f32 %v4181, %v4182
  %v4184 = vand.u32 %v4183, 4294901760
  %4185 = vmatmul.mubr.f32.gmra.mrb[0].mxu0 %v4184
  %v4186 = vpop.f32.mrb[0].mxu0
  %v4187 = vadd.f32 %v3944, %v4186
  %v4188 = vpop.f32.mrb[0].mxu0
  %4189 = vmatprep.mubr.f32.mxu0 0.0
  %v4190 = vand.u32 %v3970, 4294901760
  %v4191 = vsub.f32 %v3970, %v4190
  %v4192 = vand.u32 %v4191, 4294901760
  %v4193 = vsub.f32 %v4191, %v4192
  %v4194 = vand.u32 %v4193, 4294901760
  %4195 = vmatmul.mubr.f32.gmra.mrb[0].mxu0 %v4194
  %v4196 = vpop.f32.mrb[0].mxu0
  %v4197 = vadd.f32 %v3944, %v4196
  %v4198 = vpop.f32.mrb[0].mxu0
  %4199 = vmatprep.mubr.f32.mxu0 0.0
  %v4200 = vand.u32 %v3973, 4294901760
  %v4201 = vsub.f32 %v3973, %v4200
  %v4202 = vand.u32 %v4201, 4294901760
  %v4203 = vsub.f32 %v4201, %v4202
  %v4204 = vand.u32 %v4203, 4294901760
  %4205 = vmatmul.mubr.f32.gmra.mrb[0].mxu0 %v4204
  %v4206 = vpop.f32.mrb[0].mxu0
  %v4207 = vadd.f32 %v3944, %v4206
  %v4208 = vpop.f32.mrb[0].mxu0
  %4209 = vmatprep.mubr.f32.mxu0 0.0
  %v4210 = vand.u32 %v3976, 4294901760
  %v4211 = vsub.f32 %v3976, %v4210
  %v4212 = vand.u32 %v4211, 4294901760
  %v4213 = vsub.f32 %v4211, %v4212
  %v4214 = vand.u32 %v4213, 4294901760
  %4215 = vmatmul.mubr.f32.gmra.mrb[0].mxu0 %v4214
  %v4216 = vpop.f32.mrb[0].mxu0
  %v4217 = vadd.f32 %v3944, %v4216
  %v4218 = vpop.f32.mrb[0].mxu0
  %4219 = vmatprep.mubr.f32.mxu0 0.0
  %v4220 = vand.u32 %v3979, 4294901760
  %v4221 = vsub.f32 %v3979, %v4220
  %v4222 = vand.u32 %v4221, 4294901760
  %v4223 = vsub.f32 %v4221, %v4222
  %v4224 = vand.u32 %v4223, 4294901760
  %4225 = vmatmul.mubr.f32.gmra.mrb[0].mxu0 %v4224
  %v4226 = vpop.f32.mrb[0].mxu0
  %v4227 = vadd.f32 %v3944, %v4226
  %v4228 = vpop.f32.mrb[0].mxu0
  %4229 = vmatprep.mubr.f32.mxu0 0.0
  %v4230 = vand.u32 %v3982, 4294901760
  %v4231 = vsub.f32 %v3982, %v4230
  %v4232 = vand.u32 %v4231, 4294901760
  %v4233 = vsub.f32 %v4231, %v4232
  %v4234 = vand.u32 %v4233, 4294901760
  %4235 = vmatmul.mubr.f32.gmra.mrb[0].mxu0 %v4234
  %v4236 = vpop.f32.mrb[0].mxu0
  %v4237 = vadd.f32 %v3944, %v4236
  %v4238 = vpop.f32.mrb[0].mxu0
  %4239 = vmatprep.mubr.f32.mxu0 0.0
  %v4240 = vand.u32 %v3985, 4294901760
  %v4241 = vsub.f32 %v3985, %v4240
  %v4242 = vand.u32 %v4241, 4294901760
  %v4243 = vsub.f32 %v4241, %v4242
  %v4244 = vand.u32 %v4243, 4294901760
  %4245 = vmatmul.mubr.f32.gmra.mrb[0].mxu0 %v4244
  %v4246 = vpop.f32.mrb[0].mxu0
  %v4247 = vadd.f32 %v3944, %v4246
  %v4248 = vpop.f32.mrb[0].mxu0
  %4249 = vmatprep.mubr.f32.mxu0 0.0
  %v4250 = vand.u32 %v3988, 4294901760
  %v4251 = vsub.f32 %v3988, %v4250
  %v4252 = vand.u32 %v4251, 4294901760
  %v4253 = vsub.f32 %v4251, %v4252
  %v4254 = vand.u32 %v4253, 4294901760
  %4255 = vmatmul.mubr.f32.gmra.mrb[0].mxu0 %v4254
  %v4256 = vpop.f32.mrb[0].mxu0
  %v4257 = vadd.f32 %v3944, %v4256
  %v4258 = vpop.f32.mrb[0].mxu0
  %4259 = vmatprep.mubr.f32.mxu0 0.0
  %v4260 = vand.u32 %v3991, 4294901760
  %v4261 = vsub.f32 %v3991, %v4260
  %v4262 = vand.u32 %v4261, 4294901760
  %v4263 = vsub.f32 %v4261, %v4262
  %v4264 = vand.u32 %v4263, 4294901760
  %4265 = vmatmul.mubr.f32.gmra.mrb[0].mxu0 %v4264
  %v4266 = vpop.f32.mrb[0].mxu0
  %v4267 = vadd.f32 %v3944, %v4266
  %v4268 = vpop.f32.mrb[0].mxu0
  %4269 = vmatprep.mubr.f32.mxu0 0.0
  %v4270 = vand.u32 %v3994, 4294901760
  %v4271 = vsub.f32 %v3994, %v4270
  %v4272 = vand.u32 %v4271, 4294901760
  %v4273 = vsub.f32 %v4271, %v4272
  %v4274 = vand.u32 %v4273, 4294901760
  %4275 = vmatmul.mubr.f32.gmra.mrb[0].mxu0 %v4274
  %v4276 = vpop.f32.mrb[0].mxu0
  %v4277 = vadd.f32 %v3944, %v4276
  %v4278 = vpop.f32.mrb[0].mxu0
  %4279 = vmatprep.mubr.f32.mxu0 0.0
  %v4280 = vand.u32 %v3997, 4294901760
  %v4281 = vsub.f32 %v3997, %v4280
  %v4282 = vand.u32 %v4281, 4294901760
  %v4283 = vsub.f32 %v4281, %v4282
  %v4284 = vand.u32 %v4283, 4294901760
  %4285 = vmatmul.mubr.f32.gmra.mrb[0].mxu0 %v4284
  %v4286 = vpop.f32.mrb[0].mxu0
  %v4287 = vadd.f32 %v3944, %v4286
  %v4288 = vpop.f32.mrb[0].mxu0
  %4289 = vmatprep.mubr.f32.mxu0 0.0
  %v4290 = vand.u32 %v4000, 4294901760
  %v4291 = vsub.f32 %v4000, %v4290
  %v4292 = vand.u32 %v4291, 4294901760
  %v4293 = vsub.f32 %v4291, %v4292
  %v4294 = vand.u32 %v4293, 4294901760
  %4295 = vmatmul.mubr.f32.gmra.mrb[0].mxu0 %v4294
  %v4296 = vpop.f32.mrb[0].mxu0
  %v4297 = vadd.f32 %v3944, %v4296
  %v4298 = vpop.f32.mrb[0].mxu0
  %4299 = vmatprep.mubr.f32.mxu0 0.0
  %v4300 = vand.u32 %v4003, 4294901760
  %v4301 = vsub.f32 %v4003, %v4300
  %v4302 = vand.u32 %v4301, 4294901760
  %v4303 = vsub.f32 %v4301, %v4302
  %v4304 = vand.u32 %v4303, 4294901760
  %4305 = vmatmul.mubr.f32.gmra.mrb[0].mxu0 %v4304
  %v4306 = vpop.f32.mrb[0].mxu0
  %v4307 = vadd.f32 %v3944, %v4306
  %v4308 = vpop.f32.mrb[0].mxu0
  %4309 = vmatprep.mubr.f32.mxu0 0.0
  %v4310 = vand.u32 %v4006, 4294901760
  %v4311 = vsub.f32 %v4006, %v4310
  %v4312 = vand.u32 %v4311, 4294901760
  %v4313 = vsub.f32 %v4311, %v4312
  %v4314 = vand.u32 %v4313, 4294901760
  %4315 = vmatmul.mubr.f32.gmra.mrb[0].mxu0 %v4314
  %v4316 = vpop.f32.mrb[0].mxu0
  %v4317 = vadd.f32 %v3944, %v4316
  %v4318 = vpop.f32.mrb[0].mxu0
  %4319 = vmatprep.mubr.f32.mxu0 0.0
  %v4320 = vand.u32 %v4009, 4294901760
  %v4321 = vsub.f32 %v4009, %v4320
  %v4322 = vand.u32 %v4321, 4294901760
  %v4323 = vsub.f32 %v4321, %v4322
  %v4324 = vand.u32 %v4323, 4294901760
  %4325 = vmatmul.mubr.f32.gmra.mrb[0].mxu0 %v4324
  %v4326 = vpop.f32.mrb[0].mxu0
  %v4327 = vadd.f32 %v3944, %v4326
  %v4328 = vpop.f32.mrb[0].mxu0
  %4329 = vmatprep.mubr.f32.mxu0 0.0
  %v4330 = vand.u32 %v4012, 4294901760
  %v4331 = vsub.f32 %v4012, %v4330
  %v4332 = vand.u32 %v4331, 4294901760
  %v4333 = vsub.f32 %v4331, %v4332
  %v4334 = vand.u32 %v4333, 4294901760
  %4335 = vmatmul.mubr.f32.gmra.mrb[0].mxu0 %v4334
  %v4336 = vpop.f32.mrb[0].mxu0
  %v4337 = vadd.f32 %v3944, %v4336
  %v4338 = vpop.f32.mrb[0].mxu0
  %4339 = vmatprep.mubr.f32.mxu0 0.0
  %v4340 = vand.u32 %v4015, 4294901760
  %v4341 = vsub.f32 %v4015, %v4340
  %v4342 = vand.u32 %v4341, 4294901760
  %v4343 = vsub.f32 %v4341, %v4342
  %v4344 = vand.u32 %v4343, 4294901760
  %4345 = vmatmul.mubr.f32.gmra.mrb[0].mxu0 %v4344
  %v4346 = vpop.f32.mrb[0].mxu0
  %v4347 = vadd.f32 %v3944, %v4346
  %v4348 = vpop.f32.mrb[0].mxu0
  %4349 = vmatprep.mubr.f32.mxu0 0.0
  %v4350 = vand.u32 %v4018, 4294901760
  %v4351 = vsub.f32 %v4018, %v4350
  %v4352 = vand.u32 %v4351, 4294901760
  %v4353 = vsub.f32 %v4351, %v4352
  %v4354 = vand.u32 %v4353, 4294901760
  %4355 = vmatmul.mubr.f32.gmra.mrb[0].mxu0 %v4354
  %v4356 = vpop.f32.mrb[0].mxu0
  %v4357 = vadd.f32 %v3944, %v4356
  %v4358 = vpop.f32.mrb[0].mxu0
  %4359 = vmatprep.mubr.f32.mxu0 0.0
  %v4360 = vand.u32 %v4021, 4294901760
  %v4361 = vsub.f32 %v4021, %v4360
  %v4362 = vand.u32 %v4361, 4294901760
  %v4363 = vsub.f32 %v4361, %v4362
  %v4364 = vand.u32 %v4363, 4294901760
  %4365 = vmatmul.mubr.f32.gmra.mrb[0].mxu0 %v4364
  %v4366 = vpop.f32.mrb[0].mxu0
  %v4367 = vadd.f32 %v3944, %v4366
  %v4368 = vpop.f32.mrb[0].mxu0
  %4369 = vmatprep.mubr.f32.mxu0 0.0
  %v4370 = vand.u32 %v4024, 4294901760
  %v4371 = vsub.f32 %v4024, %v4370
  %v4372 = vand.u32 %v4371, 4294901760
  %v4373 = vsub.f32 %v4371, %v4372
  %v4374 = vand.u32 %v4373, 4294901760
  %4375 = vmatmul.mubr.f32.gmra.mrb[0].mxu0 %v4374
  %v4376 = vpop.f32.mrb[0].mxu0
  %v4377 = vadd.f32 %v3944, %v4376
  %v4378 = vpop.f32.mrb[0].mxu0
  %4379 = vmatprep.mubr.f32.mxu0 0.0
  %v4380 = vand.u32 %v4027, 4294901760
  %v4381 = vsub.f32 %v4027, %v4380
  %v4382 = vand.u32 %v4381, 4294901760
  %v4383 = vsub.f32 %v4381, %v4382
  %v4384 = vand.u32 %v4383, 4294901760
  %4385 = vmatmul.mubr.f32.gmra.mrb[0].mxu0 %v4384
  %v4386 = vpop.f32.mrb[0].mxu0
  %v4387 = vadd.f32 %v3944, %v4386
  %v4388 = vpop.f32.mrb[0].mxu0
  %4389 = vmatprep.mubr.f32.mxu0 0.0
  %v4390 = vand.u32 %v4030, 4294901760
  %v4391 = vsub.f32 %v4030, %v4390
  %v4392 = vand.u32 %v4391, 4294901760
  %v4393 = vsub.f32 %v4391, %v4392
  %v4394 = vand.u32 %v4393, 4294901760
  %4395 = vmatmul.mubr.f32.gmra.mrb[0].mxu0 %v4394
  %v4396 = vpop.f32.mrb[0].mxu0
  %v4397 = vadd.f32 %v3944, %v4396
  %v4398 = vpop.f32.mrb[0].mxu0
  %4399 = vmatprep.mubr.f32.mxu0 0.0
  %v4400 = vand.u32 %v4033, 4294901760
  %v4401 = vsub.f32 %v4033, %v4400
  %v4402 = vand.u32 %v4401, 4294901760
  %v4403 = vsub.f32 %v4401, %v4402
  %v4404 = vand.u32 %v4403, 4294901760
  %4405 = vmatmul.mubr.f32.gmra.mrb[0].mxu0 %v4404
  %v4406 = vpop.f32.mrb[0].mxu0
  %v4407 = vadd.f32 %v3944, %v4406
  %v4408 = vpop.f32.mrb[0].mxu0
  %4409 = vmatprep.mubr.f32.mxu0 0.0
  %v4410 = vand.u32 %v4036, 4294901760
  %v4411 = vsub.f32 %v4036, %v4410
  %v4412 = vand.u32 %v4411, 4294901760
  %v4413 = vsub.f32 %v4411, %v4412
  %v4414 = vand.u32 %v4413, 4294901760
  %4415 = vmatmul.mubr.f32.gmra.mrb[0].mxu0 %v4414
  %v4416 = vpop.f32.mrb[0].mxu0
  %v4417 = vadd.f32 %v3944, %v4416
  %v4418 = vpop.f32.mrb[0].mxu0
  %4419 = vmatprep.mubr.f32.mxu0 0.0
  %v4420 = vand.u32 %v4039, 4294901760
  %v4421 = vsub.f32 %v4039, %v4420
  %v4422 = vand.u32 %v4421, 4294901760
  %v4423 = vsub.f32 %v4421, %v4422
  %v4424 = vand.u32 %v4423, 4294901760
  %4425 = vmatmul.mubr.f32.gmra.mrb[0].mxu0 %v4424
  %v4426 = vpop.f32.mrb[0].mxu0
  %v4427 = vadd.f32 %v3944, %v4426
  %v4428 = vpop.f32.mrb[0].mxu0
  %4429 = vdwg.mxu0
  %4430 = vmatprep.subr.mxu0 0.0
  %v4431 = vand.u32 %v3937, 4294901760
  %v4432 = vsub.f32 %v3937, %v4431
  %v4433 = vand.u32 %v4432, 4294901760
  %v4434 = vsub.f32 %v4432, %v4433
  %v4435 = vand.u32 %v4434, 4294901760
  %4436 = vmatpush1.msra.mxu0 %v4435
  %4437 = vmatprep.subr.mxu0 0.0
  %v4438 = vand.u32 %v3938, 4294901760
  %v4439 = vsub.f32 %v3938, %v4438
  %v4440 = vand.u32 %v4439, 4294901760
  %v4441 = vsub.f32 %v4439, %v4440
  %v4442 = vand.u32 %v4441, 4294901760
  %4443 = vmatpush1.msra.mxu0 %v4442
  %4444 = vmatprep.subr.mxu0 0.0
  %v4445 = vand.u32 %v3939, 4294901760
  %v4446 = vsub.f32 %v3939, %v4445
  %v4447 = vand.u32 %v4446, 4294901760
  %v4448 = vsub.f32 %v4446, %v4447
  %v4449 = vand.u32 %v4448, 4294901760
  %4450 = vmatpush1.msra.mxu0 %v4449
  %4451 = vmatprep.subr.mxu0 0.0
  %v4452 = vand.u32 %v3940, 4294901760
  %v4453 = vsub.f32 %v3940, %v4452
  %v4454 = vand.u32 %v4453, 4294901760
  %v4455 = vsub.f32 %v4453, %v4454
  %v4456 = vand.u32 %v4455, 4294901760
  %4457 = vmatpush1.msra.mxu0 %v4456
  %4458 = vmatprep.subr.mxu0 0.0
  %4459 = vmatpush1.msra.mxu0 0.0
  %4460 = vmatprep.subr.mxu0 0.0
  %4461 = vmatpush1.msra.mxu0 0.0
  %4462 = vmatprep.subr.mxu0 0.0
  %4463 = vmatpush1.msra.mxu0 0.0
  %4464 = vmatprep.subr.mxu0 0.0
  %4465 = vmatpush1.msra.mxu0 0.0
  %4466 = vmatprep.subr.mxu0 0.0
  %4467 = vmatpush1.msra.mxu0 0.0
  %4468 = vmatprep.subr.mxu0 0.0
  %4469 = vmatpush1.msra.mxu0 0.0
  %4470 = vmatprep.subr.mxu0 0.0
  %4471 = vmatpush1.msra.mxu0 0.0
  %4472 = vmatprep.subr.mxu0 0.0
  %4473 = vmatpush1.msra.mxu0 0.0
  %4474 = vmatprep.subr.mxu0 0.0
  %4475 = vmatpush1.msra.mxu0 0.0
  %4476 = vmatprep.subr.mxu0 0.0
  %4477 = vmatpush1.msra.mxu0 0.0
  %4478 = vmatprep.subr.mxu0 0.0
  %4479 = vmatpush1.msra.mxu0 0.0
  %4480 = vmatprep.subr.mxu0 0.0
  %4481 = vmatpush1.msra.mxu0 0.0
  %4482 = vmatprep.subr.mxu0 0.0
  %4483 = vmatpush1.msra.mxu0 0.0
  %4484 = vmatprep.subr.mxu0 0.0
  %4485 = vmatpush1.msra.mxu0 0.0
  %4486 = vmatprep.subr.mxu0 0.0
  %4487 = vmatpush1.msra.mxu0 0.0
  %4488 = vmatprep.subr.mxu0 0.0
  %4489 = vmatpush1.msra.mxu0 0.0
  %4490 = vmatprep.subr.mxu0 0.0
  %4491 = vmatpush1.msra.mxu0 0.0
  %4492 = vmatprep.subr.mxu0 0.0
  %4493 = vmatpush1.msra.mxu0 0.0
  %4494 = vmatprep.subr.mxu0 0.0
  %4495 = vmatpush1.msra.mxu0 0.0
  %4496 = vmatprep.subr.mxu0 0.0
  %4497 = vmatpush1.msra.mxu0 0.0
  %4498 = vmatprep.subr.mxu0 0.0
  %4499 = vmatpush1.msra.mxu0 0.0
  %4500 = vmatprep.subr.mxu0 0.0
  %4501 = vmatpush1.msra.mxu0 0.0
  %4502 = vmatprep.subr.mxu0 0.0
  %4503 = vmatpush1.msra.mxu0 0.0
  %4504 = vmatprep.subr.mxu0 0.0
  %4505 = vmatpush1.msra.mxu0 0.0
  %4506 = vmatprep.subr.mxu0 0.0
  %4507 = vmatpush1.msra.mxu0 0.0
  %4508 = vmatprep.subr.mxu0 0.0
  %4509 = vmatpush1.msra.mxu0 0.0
  %4510 = vmatprep.subr.mxu0 0.0
  %4511 = vmatpush1.msra.mxu0 0.0
  %4512 = vmatprep.subr.mxu0 0.0
  %4513 = vmatpush1.msra.mxu0 0.0
  %4514 = vmatprep.mubr.f32.mxu0 0.0
  %v4515 = vand.u32 %v3946, 4294901760
  %4516 = vmatmul.mubr.f32.gmra.mrb[0].mxu0 %v4515
  %v4517 = vpop.f32.mrb[0].mxu0
  %v4518 = vadd.f32 %v4117, %v4517
  %v4519 = vpop.f32.mrb[0].mxu0
  %4520 = vmatprep.mubr.f32.mxu0 0.0
  %v4521 = vand.u32 %v3949, 4294901760
  %4522 = vmatmul.mubr.f32.gmra.mrb[0].mxu0 %v4521
  %v4523 = vpop.f32.mrb[0].mxu0
  %v4524 = vadd.f32 %v4127, %v4523
  %v4525 = vpop.f32.mrb[0].mxu0
  %4526 = vmatprep.mubr.f32.mxu0 0.0
  %v4527 = vand.u32 %v3952, 4294901760
  %4528 = vmatmul.mubr.f32.gmra.mrb[0].mxu0 %v4527
  %v4529 = vpop.f32.mrb[0].mxu0
  %v4530 = vadd.f32 %v4137, %v4529
  %v4531 = vpop.f32.mrb[0].mxu0
  %4532 = vmatprep.mubr.f32.mxu0 0.0
  %v4533 = vand.u32 %v3955, 4294901760
  %4534 = vmatmul.mubr.f32.gmra.mrb[0].mxu0 %v4533
  %v4535 = vpop.f32.mrb[0].mxu0
  %v4536 = vadd.f32 %v4147, %v4535
  %v4537 = vpop.f32.mrb[0].mxu0
  %4538 = vmatprep.mubr.f32.mxu0 0.0
  %v4539 = vand.u32 %v3958, 4294901760
  %4540 = vmatmul.mubr.f32.gmra.mrb[0].mxu0 %v4539
  %v4541 = vpop.f32.mrb[0].mxu0
  %v4542 = vadd.f32 %v4157, %v4541
  %v4543 = vpop.f32.mrb[0].mxu0
  %4544 = vmatprep.mubr.f32.mxu0 0.0
  %v4545 = vand.u32 %v3961, 4294901760
  %4546 = vmatmul.mubr.f32.gmra.mrb[0].mxu0 %v4545
  %v4547 = vpop.f32.mrb[0].mxu0
  %v4548 = vadd.f32 %v4167, %v4547
  %v4549 = vpop.f32.mrb[0].mxu0
  %4550 = vmatprep.mubr.f32.mxu0 0.0
  %v4551 = vand.u32 %v3964, 4294901760
  %4552 = vmatmul.mubr.f32.gmra.mrb[0].mxu0 %v4551
  %v4553 = vpop.f32.mrb[0].mxu0
  %v4554 = vadd.f32 %v4177, %v4553
  %v4555 = vpop.f32.mrb[0].mxu0
  %4556 = vmatprep.mubr.f32.mxu0 0.0
  %v4557 = vand.u32 %v3967, 4294901760
  %4558 = vmatmul.mubr.f32.gmra.mrb[0].mxu0 %v4557
  %v4559 = vpop.f32.mrb[0].mxu0
  %v4560 = vadd.f32 %v4187, %v4559
  %v4561 = vpop.f32.mrb[0].mxu0
  %4562 = vmatprep.mubr.f32.mxu0 0.0
  %v4563 = vand.u32 %v3970, 4294901760
  %4564 = vmatmul.mubr.f32.gmra.mrb[0].mxu0 %v4563
  %v4565 = vpop.f32.mrb[0].mxu0
  %v4566 = vadd.f32 %v4197, %v4565
  %v4567 = vpop.f32.mrb[0].mxu0
  %4568 = vmatprep.mubr.f32.mxu0 0.0
  %v4569 = vand.u32 %v3973, 4294901760
  %4570 = vmatmul.mubr.f32.gmra.mrb[0].mxu0 %v4569
  %v4571 = vpop.f32.mrb[0].mxu0
  %v4572 = vadd.f32 %v4207, %v4571
  %v4573 = vpop.f32.mrb[0].mxu0
  %4574 = vmatprep.mubr.f32.mxu0 0.0
  %v4575 = vand.u32 %v3976, 4294901760
  %4576 = vmatmul.mubr.f32.gmra.mrb[0].mxu0 %v4575
  %v4577 = vpop.f32.mrb[0].mxu0
  %v4578 = vadd.f32 %v4217, %v4577
  %v4579 = vpop.f32.mrb[0].mxu0
  %4580 = vmatprep.mubr.f32.mxu0 0.0
  %v4581 = vand.u32 %v3979, 4294901760
  %4582 = vmatmul.mubr.f32.gmra.mrb[0].mxu0 %v4581
  %v4583 = vpop.f32.mrb[0].mxu0
  %v4584 = vadd.f32 %v4227, %v4583
  %v4585 = vpop.f32.mrb[0].mxu0
  %4586 = vmatprep.mubr.f32.mxu0 0.0
  %v4587 = vand.u32 %v3982, 4294901760
  %4588 = vmatmul.mubr.f32.gmra.mrb[0].mxu0 %v4587
  %v4589 = vpop.f32.mrb[0].mxu0
  %v4590 = vadd.f32 %v4237, %v4589
  %v4591 = vpop.f32.mrb[0].mxu0
  %4592 = vmatprep.mubr.f32.mxu0 0.0
  %v4593 = vand.u32 %v3985, 4294901760
  %4594 = vmatmul.mubr.f32.gmra.mrb[0].mxu0 %v4593
  %v4595 = vpop.f32.mrb[0].mxu0
  %v4596 = vadd.f32 %v4247, %v4595
  %v4597 = vpop.f32.mrb[0].mxu0
  %4598 = vmatprep.mubr.f32.mxu0 0.0
  %v4599 = vand.u32 %v3988, 4294901760
  %4600 = vmatmul.mubr.f32.gmra.mrb[0].mxu0 %v4599
  %v4601 = vpop.f32.mrb[0].mxu0
  %v4602 = vadd.f32 %v4257, %v4601
  %v4603 = vpop.f32.mrb[0].mxu0
  %4604 = vmatprep.mubr.f32.mxu0 0.0
  %v4605 = vand.u32 %v3991, 4294901760
  %4606 = vmatmul.mubr.f32.gmra.mrb[0].mxu0 %v4605
  %v4607 = vpop.f32.mrb[0].mxu0
  %v4608 = vadd.f32 %v4267, %v4607
  %v4609 = vpop.f32.mrb[0].mxu0
  %4610 = vmatprep.mubr.f32.mxu0 0.0
  %v4611 = vand.u32 %v3994, 4294901760
  %4612 = vmatmul.mubr.f32.gmra.mrb[0].mxu0 %v4611
  %v4613 = vpop.f32.mrb[0].mxu0
  %v4614 = vadd.f32 %v4277, %v4613
  %v4615 = vpop.f32.mrb[0].mxu0
  %4616 = vmatprep.mubr.f32.mxu0 0.0
  %v4617 = vand.u32 %v3997, 4294901760
  %4618 = vmatmul.mubr.f32.gmra.mrb[0].mxu0 %v4617
  %v4619 = vpop.f32.mrb[0].mxu0
  %v4620 = vadd.f32 %v4287, %v4619
  %v4621 = vpop.f32.mrb[0].mxu0
  %4622 = vmatprep.mubr.f32.mxu0 0.0
  %v4623 = vand.u32 %v4000, 4294901760
  %4624 = vmatmul.mubr.f32.gmra.mrb[0].mxu0 %v4623
  %v4625 = vpop.f32.mrb[0].mxu0
  %v4626 = vadd.f32 %v4297, %v4625
  %v4627 = vpop.f32.mrb[0].mxu0
  %4628 = vmatprep.mubr.f32.mxu0 0.0
  %v4629 = vand.u32 %v4003, 4294901760
  %4630 = vmatmul.mubr.f32.gmra.mrb[0].mxu0 %v4629
  %v4631 = vpop.f32.mrb[0].mxu0
  %v4632 = vadd.f32 %v4307, %v4631
  %v4633 = vpop.f32.mrb[0].mxu0
  %4634 = vmatprep.mubr.f32.mxu0 0.0
  %v4635 = vand.u32 %v4006, 4294901760
  %4636 = vmatmul.mubr.f32.gmra.mrb[0].mxu0 %v4635
  %v4637 = vpop.f32.mrb[0].mxu0
  %v4638 = vadd.f32 %v4317, %v4637
  %v4639 = vpop.f32.mrb[0].mxu0
  %4640 = vmatprep.mubr.f32.mxu0 0.0
  %v4641 = vand.u32 %v4009, 4294901760
  %4642 = vmatmul.mubr.f32.gmra.mrb[0].mxu0 %v4641
  %v4643 = vpop.f32.mrb[0].mxu0
  %v4644 = vadd.f32 %v4327, %v4643
  %v4645 = vpop.f32.mrb[0].mxu0
  %4646 = vmatprep.mubr.f32.mxu0 0.0
  %v4647 = vand.u32 %v4012, 4294901760
  %4648 = vmatmul.mubr.f32.gmra.mrb[0].mxu0 %v4647
  %v4649 = vpop.f32.mrb[0].mxu0
  %v4650 = vadd.f32 %v4337, %v4649
  %v4651 = vpop.f32.mrb[0].mxu0
  %4652 = vmatprep.mubr.f32.mxu0 0.0
  %v4653 = vand.u32 %v4015, 4294901760
  %4654 = vmatmul.mubr.f32.gmra.mrb[0].mxu0 %v4653
  %v4655 = vpop.f32.mrb[0].mxu0
  %v4656 = vadd.f32 %v4347, %v4655
  %v4657 = vpop.f32.mrb[0].mxu0
  %4658 = vmatprep.mubr.f32.mxu0 0.0
  %v4659 = vand.u32 %v4018, 4294901760
  %4660 = vmatmul.mubr.f32.gmra.mrb[0].mxu0 %v4659
  %v4661 = vpop.f32.mrb[0].mxu0
  %v4662 = vadd.f32 %v4357, %v4661
  %v4663 = vpop.f32.mrb[0].mxu0
  %4664 = vmatprep.mubr.f32.mxu0 0.0
  %v4665 = vand.u32 %v4021, 4294901760
  %4666 = vmatmul.mubr.f32.gmra.mrb[0].mxu0 %v4665
  %v4667 = vpop.f32.mrb[0].mxu0
  %v4668 = vadd.f32 %v4367, %v4667
  %v4669 = vpop.f32.mrb[0].mxu0
  %4670 = vmatprep.mubr.f32.mxu0 0.0
  %v4671 = vand.u32 %v4024, 4294901760
  %4672 = vmatmul.mubr.f32.gmra.mrb[0].mxu0 %v4671
  %v4673 = vpop.f32.mrb[0].mxu0
  %v4674 = vadd.f32 %v4377, %v4673
  %v4675 = vpop.f32.mrb[0].mxu0
  %4676 = vmatprep.mubr.f32.mxu0 0.0
  %v4677 = vand.u32 %v4027, 4294901760
  %4678 = vmatmul.mubr.f32.gmra.mrb[0].mxu0 %v4677
  %v4679 = vpop.f32.mrb[0].mxu0
  %v4680 = vadd.f32 %v4387, %v4679
  %v4681 = vpop.f32.mrb[0].mxu0
  %4682 = vmatprep.mubr.f32.mxu0 0.0
  %v4683 = vand.u32 %v4030, 4294901760
  %4684 = vmatmul.mubr.f32.gmra.mrb[0].mxu0 %v4683
  %v4685 = vpop.f32.mrb[0].mxu0
  %v4686 = vadd.f32 %v4397, %v4685
  %v4687 = vpop.f32.mrb[0].mxu0
  %4688 = vmatprep.mubr.f32.mxu0 0.0
  %v4689 = vand.u32 %v4033, 4294901760
  %4690 = vmatmul.mubr.f32.gmra.mrb[0].mxu0 %v4689
  %v4691 = vpop.f32.mrb[0].mxu0
  %v4692 = vadd.f32 %v4407, %v4691
  %v4693 = vpop.f32.mrb[0].mxu0
  %4694 = vmatprep.mubr.f32.mxu0 0.0
  %v4695 = vand.u32 %v4036, 4294901760
  %4696 = vmatmul.mubr.f32.gmra.mrb[0].mxu0 %v4695
  %v4697 = vpop.f32.mrb[0].mxu0
  %v4698 = vadd.f32 %v4417, %v4697
  %v4699 = vpop.f32.mrb[0].mxu0
  %4700 = vmatprep.mubr.f32.mxu0 0.0
  %v4701 = vand.u32 %v4039, 4294901760
  %4702 = vmatmul.mubr.f32.gmra.mrb[0].mxu0 %v4701
  %v4703 = vpop.f32.mrb[0].mxu0
  %v4704 = vadd.f32 %v4427, %v4703
  %v4705 = vpop.f32.mrb[0].mxu0
  %4706 = vdwg.mxu0
  %4707 = vmatprep.subr.mxu0 0.0
  %v4708 = vand.u32 %v3937, 4294901760
  %v4709 = vsub.f32 %v3937, %v4708
  %4710 = vmatpush1.msra.mxu0 %v4709
  %4711 = vmatprep.subr.mxu0 0.0
  %v4712 = vand.u32 %v3938, 4294901760
  %v4713 = vsub.f32 %v3938, %v4712
  %4714 = vmatpush1.msra.mxu0 %v4713
  %4715 = vmatprep.subr.mxu0 0.0
  %v4716 = vand.u32 %v3939, 4294901760
  %v4717 = vsub.f32 %v3939, %v4716
  %4718 = vmatpush1.msra.mxu0 %v4717
  %4719 = vmatprep.subr.mxu0 0.0
  %v4720 = vand.u32 %v3940, 4294901760
  %v4721 = vsub.f32 %v3940, %v4720
  %4722 = vmatpush1.msra.mxu0 %v4721
  %4723 = vmatprep.subr.mxu0 0.0
  %4724 = vmatpush1.msra.mxu0 0.0
  %4725 = vmatprep.subr.mxu0 0.0
  %4726 = vmatpush1.msra.mxu0 0.0
  %4727 = vmatprep.subr.mxu0 0.0
  %4728 = vmatpush1.msra.mxu0 0.0
  %4729 = vmatprep.subr.mxu0 0.0
  %4730 = vmatpush1.msra.mxu0 0.0
  %4731 = vmatprep.subr.mxu0 0.0
  %4732 = vmatpush1.msra.mxu0 0.0
  %4733 = vmatprep.subr.mxu0 0.0
  %4734 = vmatpush1.msra.mxu0 0.0
  %4735 = vmatprep.subr.mxu0 0.0
  %4736 = vmatpush1.msra.mxu0 0.0
  %4737 = vmatprep.subr.mxu0 0.0
  %4738 = vmatpush1.msra.mxu0 0.0
  %4739 = vmatprep.subr.mxu0 0.0
  %4740 = vmatpush1.msra.mxu0 0.0
  %4741 = vmatprep.subr.mxu0 0.0
  %4742 = vmatpush1.msra.mxu0 0.0
  %4743 = vmatprep.subr.mxu0 0.0
  %4744 = vmatpush1.msra.mxu0 0.0
  %4745 = vmatprep.subr.mxu0 0.0
  %4746 = vmatpush1.msra.mxu0 0.0
  %4747 = vmatprep.subr.mxu0 0.0
  %4748 = vmatpush1.msra.mxu0 0.0
  %4749 = vmatprep.subr.mxu0 0.0
  %4750 = vmatpush1.msra.mxu0 0.0
  %4751 = vmatprep.subr.mxu0 0.0
  %4752 = vmatpush1.msra.mxu0 0.0
  %4753 = vmatprep.subr.mxu0 0.0
  %4754 = vmatpush1.msra.mxu0 0.0
  %4755 = vmatprep.subr.mxu0 0.0
  %4756 = vmatpush1.msra.mxu0 0.0
  %4757 = vmatprep.subr.mxu0 0.0
  %4758 = vmatpush1.msra.mxu0 0.0
  %4759 = vmatprep.subr.mxu0 0.0
  %4760 = vmatpush1.msra.mxu0 0.0
  %4761 = vmatprep.subr.mxu0 0.0
  %4762 = vmatpush1.msra.mxu0 0.0
  %4763 = vmatprep.subr.mxu0 0.0
  %4764 = vmatpush1.msra.mxu0 0.0
  %4765 = vmatprep.subr.mxu0 0.0
  %4766 = vmatpush1.msra.mxu0 0.0
  %4767 = vmatprep.subr.mxu0 0.0
  %4768 = vmatpush1.msra.mxu0 0.0
  %4769 = vmatprep.subr.mxu0 0.0
  %4770 = vmatpush1.msra.mxu0 0.0
  %4771 = vmatprep.subr.mxu0 0.0
  %4772 = vmatpush1.msra.mxu0 0.0
  %4773 = vmatprep.subr.mxu0 0.0
  %4774 = vmatpush1.msra.mxu0 0.0
  %4775 = vmatprep.subr.mxu0 0.0
  %4776 = vmatpush1.msra.mxu0 0.0
  %4777 = vmatprep.subr.mxu0 0.0
  %4778 = vmatpush1.msra.mxu0 0.0
  %4779 = vmatprep.mubr.f32.mxu0 0.0
  %v4780 = vand.u32 %v3946, 4294901760
  %v4781 = vsub.f32 %v3946, %v4780
  %4782 = vmatmul.mubr.f32.gmra.mrb[0].mxu0 %v4781
  %v4783 = vpop.f32.mrb[0].mxu0
  %v4784 = vadd.f32 %v4518, %v4783
  %v4785 = vpop.f32.mrb[0].mxu0
  %4786 = vmatprep.mubr.f32.mxu0 0.0
  %v4787 = vand.u32 %v3949, 4294901760
  %v4788 = vsub.f32 %v3949, %v4787
  %4789 = vmatmul.mubr.f32.gmra.mrb[0].mxu0 %v4788
  %v4790 = vpop.f32.mrb[0].mxu0
  %v4791 = vadd.f32 %v4524, %v4790
  %v4792 = vpop.f32.mrb[0].mxu0
  %4793 = vmatprep.mubr.f32.mxu0 0.0
  %v4794 = vand.u32 %v3952, 4294901760
  %v4795 = vsub.f32 %v3952, %v4794
  %4796 = vmatmul.mubr.f32.gmra.mrb[0].mxu0 %v4795
  %v4797 = vpop.f32.mrb[0].mxu0
  %v4798 = vadd.f32 %v4530, %v4797
  %v4799 = vpop.f32.mrb[0].mxu0
  %4800 = vmatprep.mubr.f32.mxu0 0.0
  %v4801 = vand.u32 %v3955, 4294901760
  %v4802 = vsub.f32 %v3955, %v4801
  %4803 = vmatmul.mubr.f32.gmra.mrb[0].mxu0 %v4802
  %v4804 = vpop.f32.mrb[0].mxu0
  %v4805 = vadd.f32 %v4536, %v4804
  %v4806 = vpop.f32.mrb[0].mxu0
  %4807 = vmatprep.mubr.f32.mxu0 0.0
  %v4808 = vand.u32 %v3958, 4294901760
  %v4809 = vsub.f32 %v3958, %v4808
  %4810 = vmatmul.mubr.f32.gmra.mrb[0].mxu0 %v4809
  %v4811 = vpop.f32.mrb[0].mxu0
  %v4812 = vadd.f32 %v4542, %v4811
  %v4813 = vpop.f32.mrb[0].mxu0
  %4814 = vmatprep.mubr.f32.mxu0 0.0
  %v4815 = vand.u32 %v3961, 4294901760
  %v4816 = vsub.f32 %v3961, %v4815
  %4817 = vmatmul.mubr.f32.gmra.mrb[0].mxu0 %v4816
  %v4818 = vpop.f32.mrb[0].mxu0
  %v4819 = vadd.f32 %v4548, %v4818
  %v4820 = vpop.f32.mrb[0].mxu0
  %4821 = vmatprep.mubr.f32.mxu0 0.0
  %v4822 = vand.u32 %v3964, 4294901760
  %v4823 = vsub.f32 %v3964, %v4822
  %4824 = vmatmul.mubr.f32.gmra.mrb[0].mxu0 %v4823
  %v4825 = vpop.f32.mrb[0].mxu0
  %v4826 = vadd.f32 %v4554, %v4825
  %v4827 = vpop.f32.mrb[0].mxu0
  %4828 = vmatprep.mubr.f32.mxu0 0.0
  %v4829 = vand.u32 %v3967, 4294901760
  %v4830 = vsub.f32 %v3967, %v4829
  %4831 = vmatmul.mubr.f32.gmra.mrb[0].mxu0 %v4830
  %v4832 = vpop.f32.mrb[0].mxu0
  %v4833 = vadd.f32 %v4560, %v4832
  %v4834 = vpop.f32.mrb[0].mxu0
  %4835 = vmatprep.mubr.f32.mxu0 0.0
  %v4836 = vand.u32 %v3970, 4294901760
  %v4837 = vsub.f32 %v3970, %v4836
  %4838 = vmatmul.mubr.f32.gmra.mrb[0].mxu0 %v4837
  %v4839 = vpop.f32.mrb[0].mxu0
  %v4840 = vadd.f32 %v4566, %v4839
  %v4841 = vpop.f32.mrb[0].mxu0
  %4842 = vmatprep.mubr.f32.mxu0 0.0
  %v4843 = vand.u32 %v3973, 4294901760
  %v4844 = vsub.f32 %v3973, %v4843
  %4845 = vmatmul.mubr.f32.gmra.mrb[0].mxu0 %v4844
  %v4846 = vpop.f32.mrb[0].mxu0
  %v4847 = vadd.f32 %v4572, %v4846
  %v4848 = vpop.f32.mrb[0].mxu0
  %4849 = vmatprep.mubr.f32.mxu0 0.0
  %v4850 = vand.u32 %v3976, 4294901760
  %v4851 = vsub.f32 %v3976, %v4850
  %4852 = vmatmul.mubr.f32.gmra.mrb[0].mxu0 %v4851
  %v4853 = vpop.f32.mrb[0].mxu0
  %v4854 = vadd.f32 %v4578, %v4853
  %v4855 = vpop.f32.mrb[0].mxu0
  %4856 = vmatprep.mubr.f32.mxu0 0.0
  %v4857 = vand.u32 %v3979, 4294901760
  %v4858 = vsub.f32 %v3979, %v4857
  %4859 = vmatmul.mubr.f32.gmra.mrb[0].mxu0 %v4858
  %v4860 = vpop.f32.mrb[0].mxu0
  %v4861 = vadd.f32 %v4584, %v4860
  %v4862 = vpop.f32.mrb[0].mxu0
  %4863 = vmatprep.mubr.f32.mxu0 0.0
  %v4864 = vand.u32 %v3982, 4294901760
  %v4865 = vsub.f32 %v3982, %v4864
  %4866 = vmatmul.mubr.f32.gmra.mrb[0].mxu0 %v4865
  %v4867 = vpop.f32.mrb[0].mxu0
  %v4868 = vadd.f32 %v4590, %v4867
  %v4869 = vpop.f32.mrb[0].mxu0
  %4870 = vmatprep.mubr.f32.mxu0 0.0
  %v4871 = vand.u32 %v3985, 4294901760
  %v4872 = vsub.f32 %v3985, %v4871
  %4873 = vmatmul.mubr.f32.gmra.mrb[0].mxu0 %v4872
  %v4874 = vpop.f32.mrb[0].mxu0
  %v4875 = vadd.f32 %v4596, %v4874
  %v4876 = vpop.f32.mrb[0].mxu0
  %4877 = vmatprep.mubr.f32.mxu0 0.0
  %v4878 = vand.u32 %v3988, 4294901760
  %v4879 = vsub.f32 %v3988, %v4878
  %4880 = vmatmul.mubr.f32.gmra.mrb[0].mxu0 %v4879
  %v4881 = vpop.f32.mrb[0].mxu0
  %v4882 = vadd.f32 %v4602, %v4881
  %v4883 = vpop.f32.mrb[0].mxu0
  %4884 = vmatprep.mubr.f32.mxu0 0.0
  %v4885 = vand.u32 %v3991, 4294901760
  %v4886 = vsub.f32 %v3991, %v4885
  %4887 = vmatmul.mubr.f32.gmra.mrb[0].mxu0 %v4886
  %v4888 = vpop.f32.mrb[0].mxu0
  %v4889 = vadd.f32 %v4608, %v4888
  %v4890 = vpop.f32.mrb[0].mxu0
  %4891 = vmatprep.mubr.f32.mxu0 0.0
  %v4892 = vand.u32 %v3994, 4294901760
  %v4893 = vsub.f32 %v3994, %v4892
  %4894 = vmatmul.mubr.f32.gmra.mrb[0].mxu0 %v4893
  %v4895 = vpop.f32.mrb[0].mxu0
  %v4896 = vadd.f32 %v4614, %v4895
  %v4897 = vpop.f32.mrb[0].mxu0
  %4898 = vmatprep.mubr.f32.mxu0 0.0
  %v4899 = vand.u32 %v3997, 4294901760
  %v4900 = vsub.f32 %v3997, %v4899
  %4901 = vmatmul.mubr.f32.gmra.mrb[0].mxu0 %v4900
  %v4902 = vpop.f32.mrb[0].mxu0
  %v4903 = vadd.f32 %v4620, %v4902
  %v4904 = vpop.f32.mrb[0].mxu0
  %4905 = vmatprep.mubr.f32.mxu0 0.0
  %v4906 = vand.u32 %v4000, 4294901760
  %v4907 = vsub.f32 %v4000, %v4906
  %4908 = vmatmul.mubr.f32.gmra.mrb[0].mxu0 %v4907
  %v4909 = vpop.f32.mrb[0].mxu0
  %v4910 = vadd.f32 %v4626, %v4909
  %v4911 = vpop.f32.mrb[0].mxu0
  %4912 = vmatprep.mubr.f32.mxu0 0.0
  %v4913 = vand.u32 %v4003, 4294901760
  %v4914 = vsub.f32 %v4003, %v4913
  %4915 = vmatmul.mubr.f32.gmra.mrb[0].mxu0 %v4914
  %v4916 = vpop.f32.mrb[0].mxu0
  %v4917 = vadd.f32 %v4632, %v4916
  %v4918 = vpop.f32.mrb[0].mxu0
  %4919 = vmatprep.mubr.f32.mxu0 0.0
  %v4920 = vand.u32 %v4006, 4294901760
  %v4921 = vsub.f32 %v4006, %v4920
  %4922 = vmatmul.mubr.f32.gmra.mrb[0].mxu0 %v4921
  %v4923 = vpop.f32.mrb[0].mxu0
  %v4924 = vadd.f32 %v4638, %v4923
  %v4925 = vpop.f32.mrb[0].mxu0
  %4926 = vmatprep.mubr.f32.mxu0 0.0
  %v4927 = vand.u32 %v4009, 4294901760
  %v4928 = vsub.f32 %v4009, %v4927
  %4929 = vmatmul.mubr.f32.gmra.mrb[0].mxu0 %v4928
  %v4930 = vpop.f32.mrb[0].mxu0
  %v4931 = vadd.f32 %v4644, %v4930
  %v4932 = vpop.f32.mrb[0].mxu0
  %4933 = vmatprep.mubr.f32.mxu0 0.0
  %v4934 = vand.u32 %v4012, 4294901760
  %v4935 = vsub.f32 %v4012, %v4934
  %4936 = vmatmul.mubr.f32.gmra.mrb[0].mxu0 %v4935
  %v4937 = vpop.f32.mrb[0].mxu0
  %v4938 = vadd.f32 %v4650, %v4937
  %v4939 = vpop.f32.mrb[0].mxu0
  %4940 = vmatprep.mubr.f32.mxu0 0.0
  %v4941 = vand.u32 %v4015, 4294901760
  %v4942 = vsub.f32 %v4015, %v4941
  %4943 = vmatmul.mubr.f32.gmra.mrb[0].mxu0 %v4942
  %v4944 = vpop.f32.mrb[0].mxu0
  %v4945 = vadd.f32 %v4656, %v4944
  %v4946 = vpop.f32.mrb[0].mxu0
  %4947 = vmatprep.mubr.f32.mxu0 0.0
  %v4948 = vand.u32 %v4018, 4294901760
  %v4949 = vsub.f32 %v4018, %v4948
  %4950 = vmatmul.mubr.f32.gmra.mrb[0].mxu0 %v4949
  %v4951 = vpop.f32.mrb[0].mxu0
  %v4952 = vadd.f32 %v4662, %v4951
  %v4953 = vpop.f32.mrb[0].mxu0
  %4954 = vmatprep.mubr.f32.mxu0 0.0
  %v4955 = vand.u32 %v4021, 4294901760
  %v4956 = vsub.f32 %v4021, %v4955
  %4957 = vmatmul.mubr.f32.gmra.mrb[0].mxu0 %v4956
  %v4958 = vpop.f32.mrb[0].mxu0
  %v4959 = vadd.f32 %v4668, %v4958
  %v4960 = vpop.f32.mrb[0].mxu0
  %4961 = vmatprep.mubr.f32.mxu0 0.0
  %v4962 = vand.u32 %v4024, 4294901760
  %v4963 = vsub.f32 %v4024, %v4962
  %4964 = vmatmul.mubr.f32.gmra.mrb[0].mxu0 %v4963
  %v4965 = vpop.f32.mrb[0].mxu0
  %v4966 = vadd.f32 %v4674, %v4965
  %v4967 = vpop.f32.mrb[0].mxu0
  %4968 = vmatprep.mubr.f32.mxu0 0.0
  %v4969 = vand.u32 %v4027, 4294901760
  %v4970 = vsub.f32 %v4027, %v4969
  %4971 = vmatmul.mubr.f32.gmra.mrb[0].mxu0 %v4970
  %v4972 = vpop.f32.mrb[0].mxu0
  %v4973 = vadd.f32 %v4680, %v4972
  %v4974 = vpop.f32.mrb[0].mxu0
  %4975 = vmatprep.mubr.f32.mxu0 0.0
  %v4976 = vand.u32 %v4030, 4294901760
  %v4977 = vsub.f32 %v4030, %v4976
  %4978 = vmatmul.mubr.f32.gmra.mrb[0].mxu0 %v4977
  %v4979 = vpop.f32.mrb[0].mxu0
  %v4980 = vadd.f32 %v4686, %v4979
  %v4981 = vpop.f32.mrb[0].mxu0
  %4982 = vmatprep.mubr.f32.mxu0 0.0
  %v4983 = vand.u32 %v4033, 4294901760
  %v4984 = vsub.f32 %v4033, %v4983
  %4985 = vmatmul.mubr.f32.gmra.mrb[0].mxu0 %v4984
  %v4986 = vpop.f32.mrb[0].mxu0
  %v4987 = vadd.f32 %v4692, %v4986
  %v4988 = vpop.f32.mrb[0].mxu0
  %4989 = vmatprep.mubr.f32.mxu0 0.0
  %v4990 = vand.u32 %v4036, 4294901760
  %v4991 = vsub.f32 %v4036, %v4990
  %4992 = vmatmul.mubr.f32.gmra.mrb[0].mxu0 %v4991
  %v4993 = vpop.f32.mrb[0].mxu0
  %v4994 = vadd.f32 %v4698, %v4993
  %v4995 = vpop.f32.mrb[0].mxu0
  %4996 = vmatprep.mubr.f32.mxu0 0.0
  %v4997 = vand.u32 %v4039, 4294901760
  %v4998 = vsub.f32 %v4039, %v4997
  %4999 = vmatmul.mubr.f32.gmra.mrb[0].mxu0 %v4998
  %v5000 = vpop.f32.mrb[0].mxu0
  %v5001 = vadd.f32 %v4704, %v5000
  %v5002 = vpop.f32.mrb[0].mxu0
  %5003 = vdwg.mxu0
  %5004 = vmatprep.subr.mxu0 0.0
  %v5005 = vand.u32 %v3937, 4294901760
  %5006 = vmatpush1.msra.mxu0 %v5005
  %5007 = vmatprep.subr.mxu0 0.0
  %v5008 = vand.u32 %v3938, 4294901760
  %5009 = vmatpush1.msra.mxu0 %v5008
  %5010 = vmatprep.subr.mxu0 0.0
  %v5011 = vand.u32 %v3939, 4294901760
  %5012 = vmatpush1.msra.mxu0 %v5011
  %5013 = vmatprep.subr.mxu0 0.0
  %v5014 = vand.u32 %v3940, 4294901760
  %5015 = vmatpush1.msra.mxu0 %v5014
  %5016 = vmatprep.subr.mxu0 0.0
  %5017 = vmatpush1.msra.mxu0 0.0
  %5018 = vmatprep.subr.mxu0 0.0
  %5019 = vmatpush1.msra.mxu0 0.0
  %5020 = vmatprep.subr.mxu0 0.0
  %5021 = vmatpush1.msra.mxu0 0.0
  %5022 = vmatprep.subr.mxu0 0.0
  %5023 = vmatpush1.msra.mxu0 0.0
  %5024 = vmatprep.subr.mxu0 0.0
  %5025 = vmatpush1.msra.mxu0 0.0
  %5026 = vmatprep.subr.mxu0 0.0
  %5027 = vmatpush1.msra.mxu0 0.0
  %5028 = vmatprep.subr.mxu0 0.0
  %5029 = vmatpush1.msra.mxu0 0.0
  %5030 = vmatprep.subr.mxu0 0.0
  %5031 = vmatpush1.msra.mxu0 0.0
  %5032 = vmatprep.subr.mxu0 0.0
  %5033 = vmatpush1.msra.mxu0 0.0
  %5034 = vmatprep.subr.mxu0 0.0
  %5035 = vmatpush1.msra.mxu0 0.0
  %5036 = vmatprep.subr.mxu0 0.0
  %5037 = vmatpush1.msra.mxu0 0.0
  %5038 = vmatprep.subr.mxu0 0.0
  %5039 = vmatpush1.msra.mxu0 0.0
  %5040 = vmatprep.subr.mxu0 0.0
  %5041 = vmatpush1.msra.mxu0 0.0
  %5042 = vmatprep.subr.mxu0 0.0
  %5043 = vmatpush1.msra.mxu0 0.0
  %5044 = vmatprep.subr.mxu0 0.0
  %5045 = vmatpush1.msra.mxu0 0.0
  %5046 = vmatprep.subr.mxu0 0.0
  %5047 = vmatpush1.msra.mxu0 0.0
  %5048 = vmatprep.subr.mxu0 0.0
  %5049 = vmatpush1.msra.mxu0 0.0
  %5050 = vmatprep.subr.mxu0 0.0
  %5051 = vmatpush1.msra.mxu0 0.0
  %5052 = vmatprep.subr.mxu0 0.0
  %5053 = vmatpush1.msra.mxu0 0.0
  %5054 = vmatprep.subr.mxu0 0.0
  %5055 = vmatpush1.msra.mxu0 0.0
  %5056 = vmatprep.subr.mxu0 0.0
  %5057 = vmatpush1.msra.mxu0 0.0
  %5058 = vmatprep.subr.mxu0 0.0
  %5059 = vmatpush1.msra.mxu0 0.0
  %5060 = vmatprep.subr.mxu0 0.0
  %5061 = vmatpush1.msra.mxu0 0.0
  %5062 = vmatprep.subr.mxu0 0.0
  %5063 = vmatpush1.msra.mxu0 0.0
  %5064 = vmatprep.subr.mxu0 0.0
  %5065 = vmatpush1.msra.mxu0 0.0
  %5066 = vmatprep.subr.mxu0 0.0
  %5067 = vmatpush1.msra.mxu0 0.0
  %5068 = vmatprep.subr.mxu0 0.0
  %5069 = vmatpush1.msra.mxu0 0.0
  %5070 = vmatprep.subr.mxu0 0.0
  %5071 = vmatpush1.msra.mxu0 0.0
  %5072 = vmatprep.mubr.f32.mxu0 0.0
  %v5073 = vand.u32 %v3946, 4294901760
  %v5074 = vsub.f32 %v3946, %v5073
  %v5075 = vand.u32 %v5074, 4294901760
  %5076 = vmatmul.mubr.f32.gmra.mrb[0].mxu0 %v5075
  %v5077 = vpop.f32.mrb[0].mxu0
  %v5078 = vadd.f32 %v4784, %v5077
  %v5079 = vpop.f32.mrb[0].mxu0
  %5080 = vmatprep.mubr.f32.mxu0 0.0
  %v5081 = vand.u32 %v3949, 4294901760
  %v5082 = vsub.f32 %v3949, %v5081
  %v5083 = vand.u32 %v5082, 4294901760
  %5084 = vmatmul.mubr.f32.gmra.mrb[0].mxu0 %v5083
  %v5085 = vpop.f32.mrb[0].mxu0
  %v5086 = vadd.f32 %v4791, %v5085
  %v5087 = vpop.f32.mrb[0].mxu0
  %5088 = vmatprep.mubr.f32.mxu0 0.0
  %v5089 = vand.u32 %v3952, 4294901760
  %v5090 = vsub.f32 %v3952, %v5089
  %v5091 = vand.u32 %v5090, 4294901760
  %5092 = vmatmul.mubr.f32.gmra.mrb[0].mxu0 %v5091
  %v5093 = vpop.f32.mrb[0].mxu0
  %v5094 = vadd.f32 %v4798, %v5093
  %v5095 = vpop.f32.mrb[0].mxu0
  %5096 = vmatprep.mubr.f32.mxu0 0.0
  %v5097 = vand.u32 %v3955, 4294901760
  %v5098 = vsub.f32 %v3955, %v5097
  %v5099 = vand.u32 %v5098, 4294901760
  %5100 = vmatmul.mubr.f32.gmra.mrb[0].mxu0 %v5099
  %v5101 = vpop.f32.mrb[0].mxu0
  %v5102 = vadd.f32 %v4805, %v5101
  %v5103 = vpop.f32.mrb[0].mxu0
  %5104 = vmatprep.mubr.f32.mxu0 0.0
  %v5105 = vand.u32 %v3958, 4294901760
  %v5106 = vsub.f32 %v3958, %v5105
  %v5107 = vand.u32 %v5106, 4294901760
  %5108 = vmatmul.mubr.f32.gmra.mrb[0].mxu0 %v5107
  %v5109 = vpop.f32.mrb[0].mxu0
  %v5110 = vadd.f32 %v4812, %v5109
  %v5111 = vpop.f32.mrb[0].mxu0
  %5112 = vmatprep.mubr.f32.mxu0 0.0
  %v5113 = vand.u32 %v3961, 4294901760
  %v5114 = vsub.f32 %v3961, %v5113
  %v5115 = vand.u32 %v5114, 4294901760
  %5116 = vmatmul.mubr.f32.gmra.mrb[0].mxu0 %v5115
  %v5117 = vpop.f32.mrb[0].mxu0
  %v5118 = vadd.f32 %v4819, %v5117
  %v5119 = vpop.f32.mrb[0].mxu0
  %5120 = vmatprep.mubr.f32.mxu0 0.0
  %v5121 = vand.u32 %v3964, 4294901760
  %v5122 = vsub.f32 %v3964, %v5121
  %v5123 = vand.u32 %v5122, 4294901760
  %5124 = vmatmul.mubr.f32.gmra.mrb[0].mxu0 %v5123
  %v5125 = vpop.f32.mrb[0].mxu0
  %v5126 = vadd.f32 %v4826, %v5125
  %v5127 = vpop.f32.mrb[0].mxu0
  %5128 = vmatprep.mubr.f32.mxu0 0.0
  %v5129 = vand.u32 %v3967, 4294901760
  %v5130 = vsub.f32 %v3967, %v5129
  %v5131 = vand.u32 %v5130, 4294901760
  %5132 = vmatmul.mubr.f32.gmra.mrb[0].mxu0 %v5131
  %v5133 = vpop.f32.mrb[0].mxu0
  %v5134 = vadd.f32 %v4833, %v5133
  %v5135 = vpop.f32.mrb[0].mxu0
  %5136 = vmatprep.mubr.f32.mxu0 0.0
  %v5137 = vand.u32 %v3970, 4294901760
  %v5138 = vsub.f32 %v3970, %v5137
  %v5139 = vand.u32 %v5138, 4294901760
  %5140 = vmatmul.mubr.f32.gmra.mrb[0].mxu0 %v5139
  %v5141 = vpop.f32.mrb[0].mxu0
  %v5142 = vadd.f32 %v4840, %v5141
  %v5143 = vpop.f32.mrb[0].mxu0
  %5144 = vmatprep.mubr.f32.mxu0 0.0
  %v5145 = vand.u32 %v3973, 4294901760
  %v5146 = vsub.f32 %v3973, %v5145
  %v5147 = vand.u32 %v5146, 4294901760
  %5148 = vmatmul.mubr.f32.gmra.mrb[0].mxu0 %v5147
  %v5149 = vpop.f32.mrb[0].mxu0
  %v5150 = vadd.f32 %v4847, %v5149
  %v5151 = vpop.f32.mrb[0].mxu0
  %5152 = vmatprep.mubr.f32.mxu0 0.0
  %v5153 = vand.u32 %v3976, 4294901760
  %v5154 = vsub.f32 %v3976, %v5153
  %v5155 = vand.u32 %v5154, 4294901760
  %5156 = vmatmul.mubr.f32.gmra.mrb[0].mxu0 %v5155
  %v5157 = vpop.f32.mrb[0].mxu0
  %v5158 = vadd.f32 %v4854, %v5157
  %v5159 = vpop.f32.mrb[0].mxu0
  %5160 = vmatprep.mubr.f32.mxu0 0.0
  %v5161 = vand.u32 %v3979, 4294901760
  %v5162 = vsub.f32 %v3979, %v5161
  %v5163 = vand.u32 %v5162, 4294901760
  %5164 = vmatmul.mubr.f32.gmra.mrb[0].mxu0 %v5163
  %v5165 = vpop.f32.mrb[0].mxu0
  %v5166 = vadd.f32 %v4861, %v5165
  %v5167 = vpop.f32.mrb[0].mxu0
  %5168 = vmatprep.mubr.f32.mxu0 0.0
  %v5169 = vand.u32 %v3982, 4294901760
  %v5170 = vsub.f32 %v3982, %v5169
  %v5171 = vand.u32 %v5170, 4294901760
  %5172 = vmatmul.mubr.f32.gmra.mrb[0].mxu0 %v5171
  %v5173 = vpop.f32.mrb[0].mxu0
  %v5174 = vadd.f32 %v4868, %v5173
  %v5175 = vpop.f32.mrb[0].mxu0
  %5176 = vmatprep.mubr.f32.mxu0 0.0
  %v5177 = vand.u32 %v3985, 4294901760
  %v5178 = vsub.f32 %v3985, %v5177
  %v5179 = vand.u32 %v5178, 4294901760
  %5180 = vmatmul.mubr.f32.gmra.mrb[0].mxu0 %v5179
  %v5181 = vpop.f32.mrb[0].mxu0
  %v5182 = vadd.f32 %v4875, %v5181
  %v5183 = vpop.f32.mrb[0].mxu0
  %5184 = vmatprep.mubr.f32.mxu0 0.0
  %v5185 = vand.u32 %v3988, 4294901760
  %v5186 = vsub.f32 %v3988, %v5185
  %v5187 = vand.u32 %v5186, 4294901760
  %5188 = vmatmul.mubr.f32.gmra.mrb[0].mxu0 %v5187
  %v5189 = vpop.f32.mrb[0].mxu0
  %v5190 = vadd.f32 %v4882, %v5189
  %v5191 = vpop.f32.mrb[0].mxu0
  %5192 = vmatprep.mubr.f32.mxu0 0.0
  %v5193 = vand.u32 %v3991, 4294901760
  %v5194 = vsub.f32 %v3991, %v5193
  %v5195 = vand.u32 %v5194, 4294901760
  %5196 = vmatmul.mubr.f32.gmra.mrb[0].mxu0 %v5195
  %v5197 = vpop.f32.mrb[0].mxu0
  %v5198 = vadd.f32 %v4889, %v5197
  %v5199 = vpop.f32.mrb[0].mxu0
  %5200 = vmatprep.mubr.f32.mxu0 0.0
  %v5201 = vand.u32 %v3994, 4294901760
  %v5202 = vsub.f32 %v3994, %v5201
  %v5203 = vand.u32 %v5202, 4294901760
  %5204 = vmatmul.mubr.f32.gmra.mrb[0].mxu0 %v5203
  %v5205 = vpop.f32.mrb[0].mxu0
  %v5206 = vadd.f32 %v4896, %v5205
  %v5207 = vpop.f32.mrb[0].mxu0
  %5208 = vmatprep.mubr.f32.mxu0 0.0
  %v5209 = vand.u32 %v3997, 4294901760
  %v5210 = vsub.f32 %v3997, %v5209
  %v5211 = vand.u32 %v5210, 4294901760
  %5212 = vmatmul.mubr.f32.gmra.mrb[0].mxu0 %v5211
  %v5213 = vpop.f32.mrb[0].mxu0
  %v5214 = vadd.f32 %v4903, %v5213
  %v5215 = vpop.f32.mrb[0].mxu0
  %5216 = vmatprep.mubr.f32.mxu0 0.0
  %v5217 = vand.u32 %v4000, 4294901760
  %v5218 = vsub.f32 %v4000, %v5217
  %v5219 = vand.u32 %v5218, 4294901760
  %5220 = vmatmul.mubr.f32.gmra.mrb[0].mxu0 %v5219
  %v5221 = vpop.f32.mrb[0].mxu0
  %v5222 = vadd.f32 %v4910, %v5221
  %v5223 = vpop.f32.mrb[0].mxu0
  %5224 = vmatprep.mubr.f32.mxu0 0.0
  %v5225 = vand.u32 %v4003, 4294901760
  %v5226 = vsub.f32 %v4003, %v5225
  %v5227 = vand.u32 %v5226, 4294901760
  %5228 = vmatmul.mubr.f32.gmra.mrb[0].mxu0 %v5227
  %v5229 = vpop.f32.mrb[0].mxu0
  %v5230 = vadd.f32 %v4917, %v5229
  %v5231 = vpop.f32.mrb[0].mxu0
  %5232 = vmatprep.mubr.f32.mxu0 0.0
  %v5233 = vand.u32 %v4006, 4294901760
  %v5234 = vsub.f32 %v4006, %v5233
  %v5235 = vand.u32 %v5234, 4294901760
  %5236 = vmatmul.mubr.f32.gmra.mrb[0].mxu0 %v5235
  %v5237 = vpop.f32.mrb[0].mxu0
  %v5238 = vadd.f32 %v4924, %v5237
  %v5239 = vpop.f32.mrb[0].mxu0
  %5240 = vmatprep.mubr.f32.mxu0 0.0
  %v5241 = vand.u32 %v4009, 4294901760
  %v5242 = vsub.f32 %v4009, %v5241
  %v5243 = vand.u32 %v5242, 4294901760
  %5244 = vmatmul.mubr.f32.gmra.mrb[0].mxu0 %v5243
  %v5245 = vpop.f32.mrb[0].mxu0
  %v5246 = vadd.f32 %v4931, %v5245
  %v5247 = vpop.f32.mrb[0].mxu0
  %5248 = vmatprep.mubr.f32.mxu0 0.0
  %v5249 = vand.u32 %v4012, 4294901760
  %v5250 = vsub.f32 %v4012, %v5249
  %v5251 = vand.u32 %v5250, 4294901760
  %5252 = vmatmul.mubr.f32.gmra.mrb[0].mxu0 %v5251
  %v5253 = vpop.f32.mrb[0].mxu0
  %v5254 = vadd.f32 %v4938, %v5253
  %v5255 = vpop.f32.mrb[0].mxu0
  %5256 = vmatprep.mubr.f32.mxu0 0.0
  %v5257 = vand.u32 %v4015, 4294901760
  %v5258 = vsub.f32 %v4015, %v5257
  %v5259 = vand.u32 %v5258, 4294901760
  %5260 = vmatmul.mubr.f32.gmra.mrb[0].mxu0 %v5259
  %v5261 = vpop.f32.mrb[0].mxu0
  %v5262 = vadd.f32 %v4945, %v5261
  %v5263 = vpop.f32.mrb[0].mxu0
  %5264 = vmatprep.mubr.f32.mxu0 0.0
  %v5265 = vand.u32 %v4018, 4294901760
  %v5266 = vsub.f32 %v4018, %v5265
  %v5267 = vand.u32 %v5266, 4294901760
  %5268 = vmatmul.mubr.f32.gmra.mrb[0].mxu0 %v5267
  %v5269 = vpop.f32.mrb[0].mxu0
  %v5270 = vadd.f32 %v4952, %v5269
  %v5271 = vpop.f32.mrb[0].mxu0
  %5272 = vmatprep.mubr.f32.mxu0 0.0
  %v5273 = vand.u32 %v4021, 4294901760
  %v5274 = vsub.f32 %v4021, %v5273
  %v5275 = vand.u32 %v5274, 4294901760
  %5276 = vmatmul.mubr.f32.gmra.mrb[0].mxu0 %v5275
  %v5277 = vpop.f32.mrb[0].mxu0
  %v5278 = vadd.f32 %v4959, %v5277
  %v5279 = vpop.f32.mrb[0].mxu0
  %5280 = vmatprep.mubr.f32.mxu0 0.0
  %v5281 = vand.u32 %v4024, 4294901760
  %v5282 = vsub.f32 %v4024, %v5281
  %v5283 = vand.u32 %v5282, 4294901760
  %5284 = vmatmul.mubr.f32.gmra.mrb[0].mxu0 %v5283
  %v5285 = vpop.f32.mrb[0].mxu0
  %v5286 = vadd.f32 %v4966, %v5285
  %v5287 = vpop.f32.mrb[0].mxu0
  %5288 = vmatprep.mubr.f32.mxu0 0.0
  %v5289 = vand.u32 %v4027, 4294901760
  %v5290 = vsub.f32 %v4027, %v5289
  %v5291 = vand.u32 %v5290, 4294901760
  %5292 = vmatmul.mubr.f32.gmra.mrb[0].mxu0 %v5291
  %v5293 = vpop.f32.mrb[0].mxu0
  %v5294 = vadd.f32 %v4973, %v5293
  %v5295 = vpop.f32.mrb[0].mxu0
  %5296 = vmatprep.mubr.f32.mxu0 0.0
  %v5297 = vand.u32 %v4030, 4294901760
  %v5298 = vsub.f32 %v4030, %v5297
  %v5299 = vand.u32 %v5298, 4294901760
  %5300 = vmatmul.mubr.f32.gmra.mrb[0].mxu0 %v5299
  %v5301 = vpop.f32.mrb[0].mxu0
  %v5302 = vadd.f32 %v4980, %v5301
  %v5303 = vpop.f32.mrb[0].mxu0
  %5304 = vmatprep.mubr.f32.mxu0 0.0
  %v5305 = vand.u32 %v4033, 4294901760
  %v5306 = vsub.f32 %v4033, %v5305
  %v5307 = vand.u32 %v5306, 4294901760
  %5308 = vmatmul.mubr.f32.gmra.mrb[0].mxu0 %v5307
  %v5309 = vpop.f32.mrb[0].mxu0
  %v5310 = vadd.f32 %v4987, %v5309
  %v5311 = vpop.f32.mrb[0].mxu0
  %5312 = vmatprep.mubr.f32.mxu0 0.0
  %v5313 = vand.u32 %v4036, 4294901760
  %v5314 = vsub.f32 %v4036, %v5313
  %v5315 = vand.u32 %v5314, 4294901760
  %5316 = vmatmul.mubr.f32.gmra.mrb[0].mxu0 %v5315
  %v5317 = vpop.f32.mrb[0].mxu0
  %v5318 = vadd.f32 %v4994, %v5317
  %v5319 = vpop.f32.mrb[0].mxu0
  %5320 = vmatprep.mubr.f32.mxu0 0.0
  %v5321 = vand.u32 %v4039, 4294901760
  %v5322 = vsub.f32 %v4039, %v5321
  %v5323 = vand.u32 %v5322, 4294901760
  %5324 = vmatmul.mubr.f32.gmra.mrb[0].mxu0 %v5323
  %v5325 = vpop.f32.mrb[0].mxu0
  %v5326 = vadd.f32 %v5001, %v5325
  %v5327 = vpop.f32.mrb[0].mxu0
  %5328 = vdwg.mxu0
  %5329 = vmatprep.subr.mxu0 0.0
  %v5330 = vand.u32 %v3937, 4294901760
  %v5331 = vsub.f32 %v3937, %v5330
  %v5332 = vand.u32 %v5331, 4294901760
  %5333 = vmatpush1.msra.mxu0 %v5332
  %5334 = vmatprep.subr.mxu0 0.0
  %v5335 = vand.u32 %v3938, 4294901760
  %v5336 = vsub.f32 %v3938, %v5335
  %v5337 = vand.u32 %v5336, 4294901760
  %5338 = vmatpush1.msra.mxu0 %v5337
  %5339 = vmatprep.subr.mxu0 0.0
  %v5340 = vand.u32 %v3939, 4294901760
  %v5341 = vsub.f32 %v3939, %v5340
  %v5342 = vand.u32 %v5341, 4294901760
  %5343 = vmatpush1.msra.mxu0 %v5342
  %5344 = vmatprep.subr.mxu0 0.0
  %v5345 = vand.u32 %v3940, 4294901760
  %v5346 = vsub.f32 %v3940, %v5345
  %v5347 = vand.u32 %v5346, 4294901760
  %5348 = vmatpush1.msra.mxu0 %v5347
  %5349 = vmatprep.subr.mxu0 0.0
  %5350 = vmatpush1.msra.mxu0 0.0
  %5351 = vmatprep.subr.mxu0 0.0
  %5352 = vmatpush1.msra.mxu0 0.0
  %5353 = vmatprep.subr.mxu0 0.0
  %5354 = vmatpush1.msra.mxu0 0.0
  %5355 = vmatprep.subr.mxu0 0.0
  %5356 = vmatpush1.msra.mxu0 0.0
  %5357 = vmatprep.subr.mxu0 0.0
  %5358 = vmatpush1.msra.mxu0 0.0
  %5359 = vmatprep.subr.mxu0 0.0
  %5360 = vmatpush1.msra.mxu0 0.0
  %5361 = vmatprep.subr.mxu0 0.0
  %5362 = vmatpush1.msra.mxu0 0.0
  %5363 = vmatprep.subr.mxu0 0.0
  %5364 = vmatpush1.msra.mxu0 0.0
  %5365 = vmatprep.subr.mxu0 0.0
  %5366 = vmatpush1.msra.mxu0 0.0
  %5367 = vmatprep.subr.mxu0 0.0
  %5368 = vmatpush1.msra.mxu0 0.0
  %5369 = vmatprep.subr.mxu0 0.0
  %5370 = vmatpush1.msra.mxu0 0.0
  %5371 = vmatprep.subr.mxu0 0.0
  %5372 = vmatpush1.msra.mxu0 0.0
  %5373 = vmatprep.subr.mxu0 0.0
  %5374 = vmatpush1.msra.mxu0 0.0
  %5375 = vmatprep.subr.mxu0 0.0
  %5376 = vmatpush1.msra.mxu0 0.0
  %5377 = vmatprep.subr.mxu0 0.0
  %5378 = vmatpush1.msra.mxu0 0.0
  %5379 = vmatprep.subr.mxu0 0.0
  %5380 = vmatpush1.msra.mxu0 0.0
  %5381 = vmatprep.subr.mxu0 0.0
  %5382 = vmatpush1.msra.mxu0 0.0
  %5383 = vmatprep.subr.mxu0 0.0
  %5384 = vmatpush1.msra.mxu0 0.0
  %5385 = vmatprep.subr.mxu0 0.0
  %5386 = vmatpush1.msra.mxu0 0.0
  %5387 = vmatprep.subr.mxu0 0.0
  %5388 = vmatpush1.msra.mxu0 0.0
  %5389 = vmatprep.subr.mxu0 0.0
  %5390 = vmatpush1.msra.mxu0 0.0
  %5391 = vmatprep.subr.mxu0 0.0
  %5392 = vmatpush1.msra.mxu0 0.0
  %5393 = vmatprep.subr.mxu0 0.0
  %5394 = vmatpush1.msra.mxu0 0.0
  %5395 = vmatprep.subr.mxu0 0.0
  %5396 = vmatpush1.msra.mxu0 0.0
  %5397 = vmatprep.subr.mxu0 0.0
  %5398 = vmatpush1.msra.mxu0 0.0
  %5399 = vmatprep.subr.mxu0 0.0
  %5400 = vmatpush1.msra.mxu0 0.0
  %5401 = vmatprep.subr.mxu0 0.0
  %5402 = vmatpush1.msra.mxu0 0.0
  %5403 = vmatprep.subr.mxu0 0.0
  %5404 = vmatpush1.msra.mxu0 0.0
  %5405 = vmatprep.mubr.f32.mxu0 0.0
  %v5406 = vand.u32 %v3946, 4294901760
  %5407 = vmatmul.mubr.f32.gmra.mrb[0].mxu0 %v5406
  %v5408 = vpop.f32.mrb[0].mxu0
  %v5409 = vadd.f32 %v5078, %v5408
  %v5410 = vpop.f32.mrb[0].mxu0
  %5411 = vmatprep.mubr.f32.mxu0 0.0
  %v5412 = vand.u32 %v3949, 4294901760
  %5413 = vmatmul.mubr.f32.gmra.mrb[0].mxu0 %v5412
  %v5414 = vpop.f32.mrb[0].mxu0
  %v5415 = vadd.f32 %v5086, %v5414
  %v5416 = vpop.f32.mrb[0].mxu0
  %5417 = vmatprep.mubr.f32.mxu0 0.0
  %v5418 = vand.u32 %v3952, 4294901760
  %5419 = vmatmul.mubr.f32.gmra.mrb[0].mxu0 %v5418
  %v5420 = vpop.f32.mrb[0].mxu0
  %v5421 = vadd.f32 %v5094, %v5420
  %v5422 = vpop.f32.mrb[0].mxu0
  %5423 = vmatprep.mubr.f32.mxu0 0.0
  %v5424 = vand.u32 %v3955, 4294901760
  %5425 = vmatmul.mubr.f32.gmra.mrb[0].mxu0 %v5424
  %v5426 = vpop.f32.mrb[0].mxu0
  %v5427 = vadd.f32 %v5102, %v5426
  %v5428 = vpop.f32.mrb[0].mxu0
  %5429 = vmatprep.mubr.f32.mxu0 0.0
  %v5430 = vand.u32 %v3958, 4294901760
  %5431 = vmatmul.mubr.f32.gmra.mrb[0].mxu0 %v5430
  %v5432 = vpop.f32.mrb[0].mxu0
  %v5433 = vadd.f32 %v5110, %v5432
  %v5434 = vpop.f32.mrb[0].mxu0
  %5435 = vmatprep.mubr.f32.mxu0 0.0
  %v5436 = vand.u32 %v3961, 4294901760
  %5437 = vmatmul.mubr.f32.gmra.mrb[0].mxu0 %v5436
  %v5438 = vpop.f32.mrb[0].mxu0
  %v5439 = vadd.f32 %v5118, %v5438
  %v5440 = vpop.f32.mrb[0].mxu0
  %5441 = vmatprep.mubr.f32.mxu0 0.0
  %v5442 = vand.u32 %v3964, 4294901760
  %5443 = vmatmul.mubr.f32.gmra.mrb[0].mxu0 %v5442
  %v5444 = vpop.f32.mrb[0].mxu0
  %v5445 = vadd.f32 %v5126, %v5444
  %v5446 = vpop.f32.mrb[0].mxu0
  %5447 = vmatprep.mubr.f32.mxu0 0.0
  %v5448 = vand.u32 %v3967, 4294901760
  %5449 = vmatmul.mubr.f32.gmra.mrb[0].mxu0 %v5448
  %v5450 = vpop.f32.mrb[0].mxu0
  %v5451 = vadd.f32 %v5134, %v5450
  %v5452 = vpop.f32.mrb[0].mxu0
  %5453 = vmatprep.mubr.f32.mxu0 0.0
  %v5454 = vand.u32 %v3970, 4294901760
  %5455 = vmatmul.mubr.f32.gmra.mrb[0].mxu0 %v5454
  %v5456 = vpop.f32.mrb[0].mxu0
  %v5457 = vadd.f32 %v5142, %v5456
  %v5458 = vpop.f32.mrb[0].mxu0
  %5459 = vmatprep.mubr.f32.mxu0 0.0
  %v5460 = vand.u32 %v3973, 4294901760
  %5461 = vmatmul.mubr.f32.gmra.mrb[0].mxu0 %v5460
  %v5462 = vpop.f32.mrb[0].mxu0
  %v5463 = vadd.f32 %v5150, %v5462
  %v5464 = vpop.f32.mrb[0].mxu0
  %5465 = vmatprep.mubr.f32.mxu0 0.0
  %v5466 = vand.u32 %v3976, 4294901760
  %5467 = vmatmul.mubr.f32.gmra.mrb[0].mxu0 %v5466
  %v5468 = vpop.f32.mrb[0].mxu0
  %v5469 = vadd.f32 %v5158, %v5468
  %v5470 = vpop.f32.mrb[0].mxu0
  %5471 = vmatprep.mubr.f32.mxu0 0.0
  %v5472 = vand.u32 %v3979, 4294901760
  %5473 = vmatmul.mubr.f32.gmra.mrb[0].mxu0 %v5472
  %v5474 = vpop.f32.mrb[0].mxu0
  %v5475 = vadd.f32 %v5166, %v5474
  %v5476 = vpop.f32.mrb[0].mxu0
  %5477 = vmatprep.mubr.f32.mxu0 0.0
  %v5478 = vand.u32 %v3982, 4294901760
  %5479 = vmatmul.mubr.f32.gmra.mrb[0].mxu0 %v5478
  %v5480 = vpop.f32.mrb[0].mxu0
  %v5481 = vadd.f32 %v5174, %v5480
  %v5482 = vpop.f32.mrb[0].mxu0
  %5483 = vmatprep.mubr.f32.mxu0 0.0
  %v5484 = vand.u32 %v3985, 4294901760
  %5485 = vmatmul.mubr.f32.gmra.mrb[0].mxu0 %v5484
  %v5486 = vpop.f32.mrb[0].mxu0
  %v5487 = vadd.f32 %v5182, %v5486
  %v5488 = vpop.f32.mrb[0].mxu0
  %5489 = vmatprep.mubr.f32.mxu0 0.0
  %v5490 = vand.u32 %v3988, 4294901760
  %5491 = vmatmul.mubr.f32.gmra.mrb[0].mxu0 %v5490
  %v5492 = vpop.f32.mrb[0].mxu0
  %v5493 = vadd.f32 %v5190, %v5492
  %v5494 = vpop.f32.mrb[0].mxu0
  %5495 = vmatprep.mubr.f32.mxu0 0.0
  %v5496 = vand.u32 %v3991, 4294901760
  %5497 = vmatmul.mubr.f32.gmra.mrb[0].mxu0 %v5496
  %v5498 = vpop.f32.mrb[0].mxu0
  %v5499 = vadd.f32 %v5198, %v5498
  %v5500 = vpop.f32.mrb[0].mxu0
  %5501 = vmatprep.mubr.f32.mxu0 0.0
  %v5502 = vand.u32 %v3994, 4294901760
  %5503 = vmatmul.mubr.f32.gmra.mrb[0].mxu0 %v5502
  %v5504 = vpop.f32.mrb[0].mxu0
  %v5505 = vadd.f32 %v5206, %v5504
  %v5506 = vpop.f32.mrb[0].mxu0
  %5507 = vmatprep.mubr.f32.mxu0 0.0
  %v5508 = vand.u32 %v3997, 4294901760
  %5509 = vmatmul.mubr.f32.gmra.mrb[0].mxu0 %v5508
  %v5510 = vpop.f32.mrb[0].mxu0
  %v5511 = vadd.f32 %v5214, %v5510
  %v5512 = vpop.f32.mrb[0].mxu0
  %5513 = vmatprep.mubr.f32.mxu0 0.0
  %v5514 = vand.u32 %v4000, 4294901760
  %5515 = vmatmul.mubr.f32.gmra.mrb[0].mxu0 %v5514
  %v5516 = vpop.f32.mrb[0].mxu0
  %v5517 = vadd.f32 %v5222, %v5516
  %v5518 = vpop.f32.mrb[0].mxu0
  %5519 = vmatprep.mubr.f32.mxu0 0.0
  %v5520 = vand.u32 %v4003, 4294901760
  %5521 = vmatmul.mubr.f32.gmra.mrb[0].mxu0 %v5520
  %v5522 = vpop.f32.mrb[0].mxu0
  %v5523 = vadd.f32 %v5230, %v5522
  %v5524 = vpop.f32.mrb[0].mxu0
  %5525 = vmatprep.mubr.f32.mxu0 0.0
  %v5526 = vand.u32 %v4006, 4294901760
  %5527 = vmatmul.mubr.f32.gmra.mrb[0].mxu0 %v5526
  %v5528 = vpop.f32.mrb[0].mxu0
  %v5529 = vadd.f32 %v5238, %v5528
  %v5530 = vpop.f32.mrb[0].mxu0
  %5531 = vmatprep.mubr.f32.mxu0 0.0
  %v5532 = vand.u32 %v4009, 4294901760
  %5533 = vmatmul.mubr.f32.gmra.mrb[0].mxu0 %v5532
  %v5534 = vpop.f32.mrb[0].mxu0
  %v5535 = vadd.f32 %v5246, %v5534
  %v5536 = vpop.f32.mrb[0].mxu0
  %5537 = vmatprep.mubr.f32.mxu0 0.0
  %v5538 = vand.u32 %v4012, 4294901760
  %5539 = vmatmul.mubr.f32.gmra.mrb[0].mxu0 %v5538
  %v5540 = vpop.f32.mrb[0].mxu0
  %v5541 = vadd.f32 %v5254, %v5540
  %v5542 = vpop.f32.mrb[0].mxu0
  %5543 = vmatprep.mubr.f32.mxu0 0.0
  %v5544 = vand.u32 %v4015, 4294901760
  %5545 = vmatmul.mubr.f32.gmra.mrb[0].mxu0 %v5544
  %v5546 = vpop.f32.mrb[0].mxu0
  %v5547 = vadd.f32 %v5262, %v5546
  %v5548 = vpop.f32.mrb[0].mxu0
  %5549 = vmatprep.mubr.f32.mxu0 0.0
  %v5550 = vand.u32 %v4018, 4294901760
  %5551 = vmatmul.mubr.f32.gmra.mrb[0].mxu0 %v5550
  %v5552 = vpop.f32.mrb[0].mxu0
  %v5553 = vadd.f32 %v5270, %v5552
  %v5554 = vpop.f32.mrb[0].mxu0
  %5555 = vmatprep.mubr.f32.mxu0 0.0
  %v5556 = vand.u32 %v4021, 4294901760
  %5557 = vmatmul.mubr.f32.gmra.mrb[0].mxu0 %v5556
  %v5558 = vpop.f32.mrb[0].mxu0
  %v5559 = vadd.f32 %v5278, %v5558
  %v5560 = vpop.f32.mrb[0].mxu0
  %5561 = vmatprep.mubr.f32.mxu0 0.0
  %v5562 = vand.u32 %v4024, 4294901760
  %5563 = vmatmul.mubr.f32.gmra.mrb[0].mxu0 %v5562
  %v5564 = vpop.f32.mrb[0].mxu0
  %v5565 = vadd.f32 %v5286, %v5564
  %v5566 = vpop.f32.mrb[0].mxu0
  %5567 = vmatprep.mubr.f32.mxu0 0.0
  %v5568 = vand.u32 %v4027, 4294901760
  %5569 = vmatmul.mubr.f32.gmra.mrb[0].mxu0 %v5568
  %v5570 = vpop.f32.mrb[0].mxu0
  %v5571 = vadd.f32 %v5294, %v5570
  %v5572 = vpop.f32.mrb[0].mxu0
  %5573 = vmatprep.mubr.f32.mxu0 0.0
  %v5574 = vand.u32 %v4030, 4294901760
  %5575 = vmatmul.mubr.f32.gmra.mrb[0].mxu0 %v5574
  %v5576 = vpop.f32.mrb[0].mxu0
  %v5577 = vadd.f32 %v5302, %v5576
  %v5578 = vpop.f32.mrb[0].mxu0
  %5579 = vmatprep.mubr.f32.mxu0 0.0
  %v5580 = vand.u32 %v4033, 4294901760
  %5581 = vmatmul.mubr.f32.gmra.mrb[0].mxu0 %v5580
  %v5582 = vpop.f32.mrb[0].mxu0
  %v5583 = vadd.f32 %v5310, %v5582
  %v5584 = vpop.f32.mrb[0].mxu0
  %5585 = vmatprep.mubr.f32.mxu0 0.0
  %v5586 = vand.u32 %v4036, 4294901760
  %5587 = vmatmul.mubr.f32.gmra.mrb[0].mxu0 %v5586
  %v5588 = vpop.f32.mrb[0].mxu0
  %v5589 = vadd.f32 %v5318, %v5588
  %v5590 = vpop.f32.mrb[0].mxu0
  %5591 = vmatprep.mubr.f32.mxu0 0.0
  %v5592 = vand.u32 %v4039, 4294901760
  %5593 = vmatmul.mubr.f32.gmra.mrb[0].mxu0 %v5592
  %v5594 = vpop.f32.mrb[0].mxu0
  %v5595 = vadd.f32 %v5326, %v5594
  %v5596 = vpop.f32.mrb[0].mxu0
  %5597 = vdwg.mxu0
  %5598 = vmatprep.subr.mxu0 0.0
  %v5599 = vand.u32 %v3937, 4294901760
  %5600 = vmatpush1.msra.mxu0 %v5599
  %5601 = vmatprep.subr.mxu0 0.0
  %v5602 = vand.u32 %v3938, 4294901760
  %5603 = vmatpush1.msra.mxu0 %v5602
  %5604 = vmatprep.subr.mxu0 0.0
  %v5605 = vand.u32 %v3939, 4294901760
  %5606 = vmatpush1.msra.mxu0 %v5605
  %5607 = vmatprep.subr.mxu0 0.0
  %v5608 = vand.u32 %v3940, 4294901760
  %5609 = vmatpush1.msra.mxu0 %v5608
  %5610 = vmatprep.subr.mxu0 0.0
  %5611 = vmatpush1.msra.mxu0 0.0
  %5612 = vmatprep.subr.mxu0 0.0
  %5613 = vmatpush1.msra.mxu0 0.0
  %5614 = vmatprep.subr.mxu0 0.0
  %5615 = vmatpush1.msra.mxu0 0.0
  %5616 = vmatprep.subr.mxu0 0.0
  %5617 = vmatpush1.msra.mxu0 0.0
  %5618 = vmatprep.subr.mxu0 0.0
  %5619 = vmatpush1.msra.mxu0 0.0
  %5620 = vmatprep.subr.mxu0 0.0
  %5621 = vmatpush1.msra.mxu0 0.0
  %5622 = vmatprep.subr.mxu0 0.0
  %5623 = vmatpush1.msra.mxu0 0.0
  %5624 = vmatprep.subr.mxu0 0.0
  %5625 = vmatpush1.msra.mxu0 0.0
  %5626 = vmatprep.subr.mxu0 0.0
  %5627 = vmatpush1.msra.mxu0 0.0
  %5628 = vmatprep.subr.mxu0 0.0
  %5629 = vmatpush1.msra.mxu0 0.0
  %5630 = vmatprep.subr.mxu0 0.0
  %5631 = vmatpush1.msra.mxu0 0.0
  %5632 = vmatprep.subr.mxu0 0.0
  %5633 = vmatpush1.msra.mxu0 0.0
  %5634 = vmatprep.subr.mxu0 0.0
  %5635 = vmatpush1.msra.mxu0 0.0
  %5636 = vmatprep.subr.mxu0 0.0
  %5637 = vmatpush1.msra.mxu0 0.0
  %5638 = vmatprep.subr.mxu0 0.0
  %5639 = vmatpush1.msra.mxu0 0.0
  %5640 = vmatprep.subr.mxu0 0.0
  %5641 = vmatpush1.msra.mxu0 0.0
  %5642 = vmatprep.subr.mxu0 0.0
  %5643 = vmatpush1.msra.mxu0 0.0
  %5644 = vmatprep.subr.mxu0 0.0
  %5645 = vmatpush1.msra.mxu0 0.0
  %5646 = vmatprep.subr.mxu0 0.0
  %5647 = vmatpush1.msra.mxu0 0.0
  %5648 = vmatprep.subr.mxu0 0.0
  %5649 = vmatpush1.msra.mxu0 0.0
  %5650 = vmatprep.subr.mxu0 0.0
  %5651 = vmatpush1.msra.mxu0 0.0
  %5652 = vmatprep.subr.mxu0 0.0
  %5653 = vmatpush1.msra.mxu0 0.0
  %5654 = vmatprep.subr.mxu0 0.0
  %5655 = vmatpush1.msra.mxu0 0.0
  %5656 = vmatprep.subr.mxu0 0.0
  %5657 = vmatpush1.msra.mxu0 0.0
  %5658 = vmatprep.subr.mxu0 0.0
  %5659 = vmatpush1.msra.mxu0 0.0
  %5660 = vmatprep.subr.mxu0 0.0
  %5661 = vmatpush1.msra.mxu0 0.0
  %5662 = vmatprep.subr.mxu0 0.0
  %5663 = vmatpush1.msra.mxu0 0.0
  %5664 = vmatprep.subr.mxu0 0.0
  %5665 = vmatpush1.msra.mxu0 0.0
  %5666 = vmatprep.mubr.f32.mxu0 0.0
  %v5667 = vand.u32 %v3946, 4294901760
  %5668 = vmatmul.mubr.f32.gmra.mrb[0].mxu0 %v5667
  %v5669 = vpop.f32.mrb[0].mxu0
  %v5670 = vadd.f32 %v5409, %v5669
  %v5671 = vpop.f32.mrb[0].mxu0
  %5672 = vmatprep.mubr.f32.mxu0 0.0
  %v5673 = vand.u32 %v3949, 4294901760
  %5674 = vmatmul.mubr.f32.gmra.mrb[0].mxu0 %v5673
  %v5675 = vpop.f32.mrb[0].mxu0
  %v5676 = vadd.f32 %v5415, %v5675
  %v5677 = vpop.f32.mrb[0].mxu0
  %5678 = vmatprep.mubr.f32.mxu0 0.0
  %v5679 = vand.u32 %v3952, 4294901760
  %5680 = vmatmul.mubr.f32.gmra.mrb[0].mxu0 %v5679
  %v5681 = vpop.f32.mrb[0].mxu0
  %v5682 = vadd.f32 %v5421, %v5681
  %v5683 = vpop.f32.mrb[0].mxu0
  %5684 = vmatprep.mubr.f32.mxu0 0.0
  %v5685 = vand.u32 %v3955, 4294901760
  %5686 = vmatmul.mubr.f32.gmra.mrb[0].mxu0 %v5685
  %v5687 = vpop.f32.mrb[0].mxu0
  %v5688 = vadd.f32 %v5427, %v5687
  %v5689 = vpop.f32.mrb[0].mxu0
  %5690 = vmatprep.mubr.f32.mxu0 0.0
  %v5691 = vand.u32 %v3958, 4294901760
  %5692 = vmatmul.mubr.f32.gmra.mrb[0].mxu0 %v5691
  %v5693 = vpop.f32.mrb[0].mxu0
  %v5694 = vadd.f32 %v5433, %v5693
  %v5695 = vpop.f32.mrb[0].mxu0
  %5696 = vmatprep.mubr.f32.mxu0 0.0
  %v5697 = vand.u32 %v3961, 4294901760
  %5698 = vmatmul.mubr.f32.gmra.mrb[0].mxu0 %v5697
  %v5699 = vpop.f32.mrb[0].mxu0
  %v5700 = vadd.f32 %v5439, %v5699
  %v5701 = vpop.f32.mrb[0].mxu0
  %5702 = vmatprep.mubr.f32.mxu0 0.0
  %v5703 = vand.u32 %v3964, 4294901760
  %5704 = vmatmul.mubr.f32.gmra.mrb[0].mxu0 %v5703
  %v5705 = vpop.f32.mrb[0].mxu0
  %v5706 = vadd.f32 %v5445, %v5705
  %v5707 = vpop.f32.mrb[0].mxu0
  %5708 = vmatprep.mubr.f32.mxu0 0.0
  %v5709 = vand.u32 %v3967, 4294901760
  %5710 = vmatmul.mubr.f32.gmra.mrb[0].mxu0 %v5709
  %v5711 = vpop.f32.mrb[0].mxu0
  %v5712 = vadd.f32 %v5451, %v5711
  %v5713 = vpop.f32.mrb[0].mxu0
  %5714 = vmatprep.mubr.f32.mxu0 0.0
  %v5715 = vand.u32 %v3970, 4294901760
  %5716 = vmatmul.mubr.f32.gmra.mrb[0].mxu0 %v5715
  %v5717 = vpop.f32.mrb[0].mxu0
  %v5718 = vadd.f32 %v5457, %v5717
  %v5719 = vpop.f32.mrb[0].mxu0
  %5720 = vmatprep.mubr.f32.mxu0 0.0
  %v5721 = vand.u32 %v3973, 4294901760
  %5722 = vmatmul.mubr.f32.gmra.mrb[0].mxu0 %v5721
  %v5723 = vpop.f32.mrb[0].mxu0
  %v5724 = vadd.f32 %v5463, %v5723
  %v5725 = vpop.f32.mrb[0].mxu0
  %5726 = vmatprep.mubr.f32.mxu0 0.0
  %v5727 = vand.u32 %v3976, 4294901760
  %5728 = vmatmul.mubr.f32.gmra.mrb[0].mxu0 %v5727
  %v5729 = vpop.f32.mrb[0].mxu0
  %v5730 = vadd.f32 %v5469, %v5729
  %v5731 = vpop.f32.mrb[0].mxu0
  %5732 = vmatprep.mubr.f32.mxu0 0.0
  %v5733 = vand.u32 %v3979, 4294901760
  %5734 = vmatmul.mubr.f32.gmra.mrb[0].mxu0 %v5733
  %v5735 = vpop.f32.mrb[0].mxu0
  %v5736 = vadd.f32 %v5475, %v5735
  %v5737 = vpop.f32.mrb[0].mxu0
  %5738 = vmatprep.mubr.f32.mxu0 0.0
  %v5739 = vand.u32 %v3982, 4294901760
  %5740 = vmatmul.mubr.f32.gmra.mrb[0].mxu0 %v5739
  %v5741 = vpop.f32.mrb[0].mxu0
  %v5742 = vadd.f32 %v5481, %v5741
  %v5743 = vpop.f32.mrb[0].mxu0
  %5744 = vmatprep.mubr.f32.mxu0 0.0
  %v5745 = vand.u32 %v3985, 4294901760
  %5746 = vmatmul.mubr.f32.gmra.mrb[0].mxu0 %v5745
  %v5747 = vpop.f32.mrb[0].mxu0
  %v5748 = vadd.f32 %v5487, %v5747
  %v5749 = vpop.f32.mrb[0].mxu0
  %5750 = vmatprep.mubr.f32.mxu0 0.0
  %v5751 = vand.u32 %v3988, 4294901760
  %5752 = vmatmul.mubr.f32.gmra.mrb[0].mxu0 %v5751
  %v5753 = vpop.f32.mrb[0].mxu0
  %v5754 = vadd.f32 %v5493, %v5753
  %v5755 = vpop.f32.mrb[0].mxu0
  %5756 = vmatprep.mubr.f32.mxu0 0.0
  %v5757 = vand.u32 %v3991, 4294901760
  %5758 = vmatmul.mubr.f32.gmra.mrb[0].mxu0 %v5757
  %v5759 = vpop.f32.mrb[0].mxu0
  %v5760 = vadd.f32 %v5499, %v5759
  %v5761 = vpop.f32.mrb[0].mxu0
  %5762 = vmatprep.mubr.f32.mxu0 0.0
  %v5763 = vand.u32 %v3994, 4294901760
  %5764 = vmatmul.mubr.f32.gmra.mrb[0].mxu0 %v5763
  %v5765 = vpop.f32.mrb[0].mxu0
  %v5766 = vadd.f32 %v5505, %v5765
  %v5767 = vpop.f32.mrb[0].mxu0
  %5768 = vmatprep.mubr.f32.mxu0 0.0
  %v5769 = vand.u32 %v3997, 4294901760
  %5770 = vmatmul.mubr.f32.gmra.mrb[0].mxu0 %v5769
  %v5771 = vpop.f32.mrb[0].mxu0
  %v5772 = vadd.f32 %v5511, %v5771
  %v5773 = vpop.f32.mrb[0].mxu0
  %5774 = vmatprep.mubr.f32.mxu0 0.0
  %v5775 = vand.u32 %v4000, 4294901760
  %5776 = vmatmul.mubr.f32.gmra.mrb[0].mxu0 %v5775
  %v5777 = vpop.f32.mrb[0].mxu0
  %v5778 = vadd.f32 %v5517, %v5777
  %v5779 = vpop.f32.mrb[0].mxu0
  %5780 = vmatprep.mubr.f32.mxu0 0.0
  %v5781 = vand.u32 %v4003, 4294901760
  %5782 = vmatmul.mubr.f32.gmra.mrb[0].mxu0 %v5781
  %v5783 = vpop.f32.mrb[0].mxu0
  %v5784 = vadd.f32 %v5523, %v5783
  %v5785 = vpop.f32.mrb[0].mxu0
  %5786 = vmatprep.mubr.f32.mxu0 0.0
  %v5787 = vand.u32 %v4006, 4294901760
  %5788 = vmatmul.mubr.f32.gmra.mrb[0].mxu0 %v5787
  %v5789 = vpop.f32.mrb[0].mxu0
  %v5790 = vadd.f32 %v5529, %v5789
  %v5791 = vpop.f32.mrb[0].mxu0
  %5792 = vmatprep.mubr.f32.mxu0 0.0
  %v5793 = vand.u32 %v4009, 4294901760
  %5794 = vmatmul.mubr.f32.gmra.mrb[0].mxu0 %v5793
  %v5795 = vpop.f32.mrb[0].mxu0
  %v5796 = vadd.f32 %v5535, %v5795
  %v5797 = vpop.f32.mrb[0].mxu0
  %5798 = vmatprep.mubr.f32.mxu0 0.0
  %v5799 = vand.u32 %v4012, 4294901760
  %5800 = vmatmul.mubr.f32.gmra.mrb[0].mxu0 %v5799
  %v5801 = vpop.f32.mrb[0].mxu0
  %v5802 = vadd.f32 %v5541, %v5801
  %v5803 = vpop.f32.mrb[0].mxu0
  %5804 = vmatprep.mubr.f32.mxu0 0.0
  %v5805 = vand.u32 %v4015, 4294901760
  %5806 = vmatmul.mubr.f32.gmra.mrb[0].mxu0 %v5805
  %v5807 = vpop.f32.mrb[0].mxu0
  %v5808 = vadd.f32 %v5547, %v5807
  %v5809 = vpop.f32.mrb[0].mxu0
  %5810 = vmatprep.mubr.f32.mxu0 0.0
  %v5811 = vand.u32 %v4018, 4294901760
  %5812 = vmatmul.mubr.f32.gmra.mrb[0].mxu0 %v5811
  %v5813 = vpop.f32.mrb[0].mxu0
  %v5814 = vadd.f32 %v5553, %v5813
  %v5815 = vpop.f32.mrb[0].mxu0
  %5816 = vmatprep.mubr.f32.mxu0 0.0
  %v5817 = vand.u32 %v4021, 4294901760
  %5818 = vmatmul.mubr.f32.gmra.mrb[0].mxu0 %v5817
  %v5819 = vpop.f32.mrb[0].mxu0
  %v5820 = vadd.f32 %v5559, %v5819
  %v5821 = vpop.f32.mrb[0].mxu0
  %5822 = vmatprep.mubr.f32.mxu0 0.0
  %v5823 = vand.u32 %v4024, 4294901760
  %5824 = vmatmul.mubr.f32.gmra.mrb[0].mxu0 %v5823
  %v5825 = vpop.f32.mrb[0].mxu0
  %v5826 = vadd.f32 %v5565, %v5825
  %v5827 = vpop.f32.mrb[0].mxu0
  %5828 = vmatprep.mubr.f32.mxu0 0.0
  %v5829 = vand.u32 %v4027, 4294901760
  %5830 = vmatmul.mubr.f32.gmra.mrb[0].mxu0 %v5829
  %v5831 = vpop.f32.mrb[0].mxu0
  %v5832 = vadd.f32 %v5571, %v5831
  %v5833 = vpop.f32.mrb[0].mxu0
  %5834 = vmatprep.mubr.f32.mxu0 0.0
  %v5835 = vand.u32 %v4030, 4294901760
  %5836 = vmatmul.mubr.f32.gmra.mrb[0].mxu0 %v5835
  %v5837 = vpop.f32.mrb[0].mxu0
  %v5838 = vadd.f32 %v5577, %v5837
  %v5839 = vpop.f32.mrb[0].mxu0
  %5840 = vmatprep.mubr.f32.mxu0 0.0
  %v5841 = vand.u32 %v4033, 4294901760
  %5842 = vmatmul.mubr.f32.gmra.mrb[0].mxu0 %v5841
  %v5843 = vpop.f32.mrb[0].mxu0
  %v5844 = vadd.f32 %v5583, %v5843
  %v5845 = vpop.f32.mrb[0].mxu0
  %5846 = vmatprep.mubr.f32.mxu0 0.0
  %v5847 = vand.u32 %v4036, 4294901760
  %5848 = vmatmul.mubr.f32.gmra.mrb[0].mxu0 %v5847
  %v5849 = vpop.f32.mrb[0].mxu0
  %v5850 = vadd.f32 %v5589, %v5849
  %v5851 = vpop.f32.mrb[0].mxu0
  %5852 = vmatprep.mubr.f32.mxu0 0.0
  %v5853 = vand.u32 %v4039, 4294901760
  %5854 = vmatmul.mubr.f32.gmra.mrb[0].mxu0 %v5853
  %v5855 = vpop.f32.mrb[0].mxu0
  %v5856 = vadd.f32 %v5595, %v5855
  %v5857 = vpop.f32.mrb[0].mxu0
  %5858 = vdwg.mxu0
  %v5859 = vtanh.pop %v5670
  %v5860 = vtanh.pop %v5676
  %v5861 = vtanh.pop %v5682
  %v5862 = vtanh.pop %v5688
  %v5863 = vtanh.pop %v5694
  %v5864 = vtanh.pop %v5700
  %v5865 = vtanh.pop %v5706
  %v5866 = vtanh.pop %v5712
  %v5867 = vtanh.pop %v5718
  %v5868 = vtanh.pop %v5724
  %v5869 = vtanh.pop %v5730
  %v5870 = vtanh.pop %v5736
  %v5871 = vtanh.pop %v5742
  %v5872 = vtanh.pop %v5748
  %v5873 = vtanh.pop %v5754
  %v5874 = vtanh.pop %v5760
  %v5875 = vtanh.pop %v5766
  %v5876 = vtanh.pop %v5772
  %v5877 = vtanh.pop %v5778
  %v5878 = vtanh.pop %v5784
  %v5879 = vtanh.pop %v5790
  %v5880 = vtanh.pop %v5796
  %v5881 = vtanh.pop %v5802
  %v5882 = vtanh.pop %v5808
  %v5883 = vtanh.pop %v5814
  %v5884 = vtanh.pop %v5820
  %v5885 = vtanh.pop %v5826
  %v5886 = vtanh.pop %v5832
  %v5887 = vtanh.pop %v5838
  %v5888 = vtanh.pop %v5844
  %v5889 = vtanh.pop %v5850
  %v5890 = vtanh.pop %v5856
  %v5891 = vmul.f32 %v5859, 2.0
  %v5892 = vmul.f32 %v5860, 2.0
  %v5893 = vmul.f32 %v5861, 2.0
  %v5894 = vmul.f32 %v5862, 2.0
  %v5895 = vmul.f32 %v5863, 2.0
  %v5896 = vmul.f32 %v5864, 2.0
  %v5897 = vmul.f32 %v5865, 2.0
  %v5898 = vmul.f32 %v5866, 2.0
  %v5899 = vmul.f32 %v5867, 2.0
  %v5900 = vmul.f32 %v5868, 2.0
  %v5901 = vmul.f32 %v5869, 2.0
  %v5902 = vmul.f32 %v5870, 2.0
  %v5903 = vmul.f32 %v5871, 2.0
  %v5904 = vmul.f32 %v5872, 2.0
  %v5905 = vmul.f32 %v5873, 2.0
  %v5906 = vmul.f32 %v5874, 2.0
  %v5907 = vmul.f32 %v5875, 2.0
  %v5908 = vmul.f32 %v5876, 2.0
  %v5909 = vmul.f32 %v5877, 2.0
  %v5910 = vmul.f32 %v5878, 2.0
  %v5911 = vmul.f32 %v5879, 2.0
  %v5912 = vmul.f32 %v5880, 2.0
  %v5913 = vmul.f32 %v5881, 2.0
  %v5914 = vmul.f32 %v5882, 2.0
  %v5915 = vmul.f32 %v5883, 2.0
  %v5916 = vmul.f32 %v5884, 2.0
  %v5917 = vmul.f32 %v5885, 2.0
  %v5918 = vmul.f32 %v5886, 2.0
  %v5919 = vmul.f32 %v5887, 2.0
  %v5920 = vmul.f32 %v5888, 2.0
  %v5921 = vmul.f32 %v5889, 2.0
  %v5922 = vmul.f32 %v5890, 2.0
  %5923 = vst [vmem:[%s5] sm:$0xff] %v5891
  %5924 = vst [vmem:[%s5 + $0x8] sm:$0xff] %v5892
  %5925 = vst [vmem:[%s5 + $0x10] sm:$0xff] %v5893
  %5926 = vst [vmem:[%s5 + $0x18] sm:$0xff] %v5894
  %5927 = vst [vmem:[%s5 + $0x20] sm:$0xff] %v5895
  %5928 = vst [vmem:[%s5 + $0x28] sm:$0xff] %v5896
  %5929 = vst [vmem:[%s5 + $0x30] sm:$0xff] %v5897
  %5930 = vst [vmem:[%s5 + $0x38] sm:$0xff] %v5898
  %5931 = vst [vmem:[%s5 + $0x40] sm:$0xff] %v5899
  %5932 = vst [vmem:[%s5 + $0x48] sm:$0xff] %v5900
  %5933 = vst [vmem:[%s5 + $0x50] sm:$0xff] %v5901
  %5934 = vst [vmem:[%s5 + $0x58] sm:$0xff] %v5902
  %5935 = vst [vmem:[%s5 + $0x60] sm:$0xff] %v5903
  %5936 = vst [vmem:[%s5 + $0x68] sm:$0xff] %v5904
  %5937 = vst [vmem:[%s5 + $0x70] sm:$0xff] %v5905
  %5938 = vst [vmem:[%s5 + $0x78] sm:$0xff] %v5906
  %5939 = vst [vmem:[%s5 + $0x80] sm:$0xff] %v5907
  %5940 = vst [vmem:[%s5 + $0x88] sm:$0xff] %v5908
  %5941 = vst [vmem:[%s5 + $0x90] sm:$0xff] %v5909
  %5942 = vst [vmem:[%s5 + $0x98] sm:$0xff] %v5910
  %5943 = vst [vmem:[%s5 + $0xa0] sm:$0xff] %v5911
  %5944 = vst [vmem:[%s5 + $0xa8] sm:$0xff] %v5912
  %5945 = vst [vmem:[%s5 + $0xb0] sm:$0xff] %v5913
  %5946 = vst [vmem:[%s5 + $0xb8] sm:$0xff] %v5914
  %5947 = vst [vmem:[%s5 + $0xc0] sm:$0xff] %v5915
  %5948 = vst [vmem:[%s5 + $0xc8] sm:$0xff] %v5916
  %5949 = vst [vmem:[%s5 + $0xd0] sm:$0xff] %v5917
  %5950 = vst [vmem:[%s5 + $0xd8] sm:$0xff] %v5918
  %5951 = vst [vmem:[%s5 + $0xe0] sm:$0xff] %v5919
  %5952 = vst [vmem:[%s5 + $0xe8] sm:$0xff] %v5920
  %5953 = vst [vmem:[%s5 + $0xf0] sm:$0xff] %v5921
  %5954 = vst [vmem:[%s5 + $0xf8] sm:$0xff] %v5922
  // Predicated region
  $region22: #{_actor_forward_impl.1} parent=0 // pred_check
    _
  $region23: #{_actor_forward_impl.1} parent=0 // pred_check_branch
    %5956 = sbr.rel (0) target = $region25
  $region24: #{_actor_forward_impl.1} parent=0 // pred_region
    _
  $region25: #{_actor_forward_impl.1} parent=0 // pred_fallthru
    _
  // Predicated region
  $region26: #{_actor_forward_impl.1} parent=0 // pred_check
    _
  $region27: #{_actor_forward_impl.1} parent=0 // pred_check_branch
    %5958 = sbr.rel (0) target = $region29
  $region28: #{_actor_forward_impl.1} parent=0 // pred_region
    _
  $region29: #{_actor_forward_impl.1} parent=0 // pred_fallthru
    _

</llo_original>
